<compile_context>
chip_gen: v5e
topology: v5e:2x2
jax: 0.10.0
libtpu: 0.0.40
codegen_flags: <defaults>
</compile_context>

<pallas_src>
import functools

import jax
import jax.numpy as jnp
from jax.experimental import pallas as pl
from jax.experimental.pallas import tpu as pltpu

_LANE = 128
# Explicit scoped-VMEM limit: v5e default is only 16 MiB; 48 MiB leaves headroom
# under v7x's 64 MiB physical VMEM per TensorCore while allowing big tiles.
_VMEM_LIMIT_BYTES = 48 * 1024 * 1024
# Keep H fully VMEM-resident during aggregation below this size.
_H_RESIDENT_BYTES = 24 * 1024 * 1024


def _pick_tile(n, cap, candidates):
    for t in candidates:
        if t <= cap and n % t == 0:
            return t
    return n  # full-block fallback (block dim == full array dim is legal)


def _pick_tiles(n):
    # TODO(synk): for N not divisible by 8/128 this falls back to a single full
    # block; pad N upstream for very large irregular graphs.
    # tm: row (sublane) tile -- moderate, and keep >= 2 row tiles for megacore.
    tm = _pick_tile(n, min(512, max(8, n // 2)), (512, 256, 128, 64, 32, 16, 8))
    # tk: contraction (lane) tile -- large & contiguous, >= 128 for dense DMA.
    tk = _pick_tile(n, 2048, (2048, 1024, 512, 256, 128))
    if tk < tm or tk % tm != 0:  # keep diagonal self-loop logic simple (tm | tk)
        tk = tm
    return tm, tk


def _pad_lanes(m, axis):
    """Zero-pad `axis` of m up to a multiple of 128 (lane-dense layout)."""
    pad = (-m.shape[axis]) % _LANE
    if pad == 0:
        return m
    widths = [(0, 0)] * m.ndim
    widths[axis] = (0, pad)
    return jnp.pad(m, widths)


# ----------------------------------------------------------------------------
# Kernel 1 (one streaming pass over A):
#   d    = rsqrt(rowsum(A) + 1)          (self-loop fill_value = 1.0)
#   a_lo = A cast to bf16                (exact for 0/1 adjacency)
#   Row sums accumulate into a (tm, 1) VMEM scratch; d written once per row tile.
# ----------------------------------------------------------------------------
def _deg_cast_kernel(a_ref, a_lo_ref, d_ref, acc_ref):
    k = pl.program_id(1)
    a = a_ref[...]
    a_lo_ref[...] = a.astype(a_lo_ref.dtype)       # fused f32 -> bf16 downcast
    part = jnp.sum(a, axis=1, keepdims=True)        # (tm, 1) XLU reduce

    @pl.when(k == 0)
    def _():
        acc_ref[...] = part

    @pl.when(k != 0)
    def _():
        acc_ref[...] = acc_ref[...] + part

    @pl.when(k == pl.num_programs(1) - 1)
    def _():
        deg = acc_ref[...] + 1.0                     # + self loop
        # deg >= 1 after self loops; keep the masked_fill(inf -> 0) semantics.
        d_ref[...] = jnp.where(deg > 0, jax.lax.rsqrt(deg), 0.0)


def deg_and_cast(a, tm, tk):
    n = a.shape[0]
    return pl.pallas_call(
        _deg_cast_kernel,
        out_shape=(jax.ShapeDtypeStruct((n, n), jnp.bfloat16),
                   jax.ShapeDtypeStruct((n, 1), jnp.float32)),
        grid=(n // tm, n // tk),
        in_specs=[pl.BlockSpec((tm, tk), lambda i, k: (i, k))],
        out_specs=(pl.BlockSpec((tm, tk), lambda i, k: (i, k)),
                   pl.BlockSpec((tm, 1), lambda i, k: (i, 0))),
        scratch_shapes=[pltpu.VMEM((tm, 1), jnp.float32)],
        compiler_params=pltpu.CompilerParams(
            dimension_semantics=("parallel", "arbitrary"),
            vmem_limit_bytes=_VMEM_LIMIT_BYTES),
    )(a)


# ----------------------------------------------------------------------------
# Kernel 2: feature transform  H = d ⊙ (x @ W)   (small matmul, row-tiled)
#   Contraction dim uses the full array width (no padding of x's channels);
#   only W's output columns are lane-padded by the caller.
# ----------------------------------------------------------------------------
def _xw_kernel(x_ref, w_ref, d_ref, h_ref):
    h = jnp.dot(x_ref[...], w_ref[...], preferred_element_type=jnp.float32)
    h_ref[...] = d_ref[...] * h   # column scaling of A_norm folded into H


def transform(x, w, d, tm):
    n, c_in = x.shape
    c_out = w.shape[1]
    return pl.pallas_call(
        _xw_kernel,
        out_shape=jax.ShapeDtypeStruct((n, c_out), jnp.float32),
        grid=(n // tm,),
        in_specs=[
            pl.BlockSpec((tm, c_in), lambda i: (i, 0)),   # c_in may be < 128: full-dim block
            pl.BlockSpec((c_in, c_out), lambda i: (0, 0)),
            pl.BlockSpec((tm, 1), lambda i: (i, 0)),
        ],
        out_specs=pl.BlockSpec((tm, c_out), lambda i: (i, 0)),
        compiler_params=pltpu.CompilerParams(
            dimension_semantics=("parallel",),
            vmem_limit_bytes=_VMEM_LIMIT_BYTES),
    )(x, w, d)


# ----------------------------------------------------------------------------
# Kernel 3: aggregation  out = [relu]( d ⊙ ((A + I) @ H) + b )
#   grid = (row tiles, k tiles); f32 VMEM accumulator; bf16 A stream from HBM;
#   self loops realized as a single `acc += H[row_tile]` on the diagonal k tile
#   (no eye materialization).  H is VMEM-resident when it fits.
# ----------------------------------------------------------------------------
def _agg_kernel(a_ref, h_ref, d_ref, b_ref, o_ref, acc_ref, *,
                tm, tk, h_resident, apply_relu, matmul_dtype):
    i = pl.program_id(0)
    k = pl.program_id(1)

    @pl.when(k == 0)
    def _():
        acc_ref[...] = jnp.zeros_like(acc_ref)

    if h_resident:
        h_blk = h_ref[pl.ds(pl.multiple_of(k * tk, tk), tk), :]
    else:
        h_blk = h_ref[...]

    acc_ref[...] += jnp.dot(a_ref[...].astype(matmul_dtype),
                            h_blk.astype(matmul_dtype),
                            preferred_element_type=jnp.float32)

    # Self loops (A + I): identity's contribution to this row tile is exactly
    # H[row_tile]; add it once, on the k tile containing the diagonal (tm | tk).
    diag_k = (i * tm) // tk

    @pl.when(k == diag_k)
    def _():
        if h_resident:
            rows = pl.multiple_of(i * tm, tm)
        else:
            rows = pl.multiple_of(i * tm - k * tk, tm)
        acc_ref[...] += h_ref[pl.ds(rows, tm), :]

    @pl.when(k == pl.num_programs(1) - 1)
    def _():
        out = d_ref[...] * acc_ref[...] + b_ref[...]   # f32 epilogue (v5e-safe)
        if apply_relu:
            out = jnp.maximum(out, 0.0)
        o_ref[...] = out.astype(o_ref.dtype)


def aggregate(a_lo, h, d, b, tm, tk, apply_relu, matmul_dtype):
    n = a_lo.shape[0]
    c = h.shape[1]
    h_resident = (n * c * 4) <= _H_RESIDENT_BYTES
    kernel = functools.partial(_agg_kernel, tm=tm, tk=tk, h_resident=h_resident,
                               apply_relu=apply_relu, matmul_dtype=matmul_dtype)
    if h_resident:
        h_spec = pl.BlockSpec((n, c), lambda i, k: (0, 0))   # DMA'd once, stays in VMEM
    else:
        h_spec = pl.BlockSpec((tk, c), lambda i, k: (k, 0))
    return pl.pallas_call(
        kernel,
        out_shape=jax.ShapeDtypeStruct((n, c), jnp.float32),
        grid=(n // tm, n // tk),
        in_specs=[
            pl.BlockSpec((tm, tk), lambda i, k: (i, k)),     # bf16 A tile (half the HBM bytes)
            h_spec,
            pl.BlockSpec((tm, 1), lambda i, k: (i, 0)),      # d row scale
            pl.BlockSpec((1, c), lambda i, k: (0, 0)),       # bias
        ],
        out_specs=pl.BlockSpec((tm, c), lambda i, k: (i, 0)),
        scratch_shapes=[pltpu.VMEM((tm, c), jnp.float32)],
        compiler_params=pltpu.CompilerParams(
            dimension_semantics=("parallel", "arbitrary"),
            vmem_limit_bytes=_VMEM_LIMIT_BYTES),
    )(a_lo, h, d, b)


# ----------------------------------------------------------------------------
# GCN model: parameter init + forward pass built from the Pallas kernels.
# ----------------------------------------------------------------------------
def glorot(key, shape):
    fan_in, fan_out = shape
    limit = jnp.sqrt(6.0 / (fan_in + fan_out))
    return jax.random.uniform(key, shape, jnp.float32, minval=-limit, maxval=limit)


def init_gcn_params(key, in_channels, hidden_channels, out_channels, num_layers):
    dims = [in_channels] + [hidden_channels] * (num_layers - 1) + [out_channels]
    params = []
    for i in range(num_layers):
        key, sub = jax.random.split(key)
        w = glorot(sub, (dims[i], dims[i + 1]))
        b = jnp.zeros((1, dims[i + 1]), jnp.float32)  # zeros(bias)
        params.append((w, b))
    return params


def gcn_forward(x, a, params, matmul_dtype=jnp.float32):
    # TODO(synk): dropout is a no-op here (inference / training=False).
    # matmul_dtype=jnp.bfloat16 enables the bf16 MXU fast path on v6e/v7x
    # (A is exact in bf16; only H rounds; accumulation always stays f32).
    n = a.shape[0]
    tm, tk = _pick_tiles(n)
    assert tk % tm == 0, (tm, tk)

    # One streaming pass over A: degree vector + bf16 copy of A.  A_norm is
    # never materialized; all later layers read the half-width bf16 A stream.
    a_lo, d = deg_and_cast(a, tm, tk)

    out_c = params[-1][0].shape[1]
    num_layers = len(params)
    for li, (w, b) in enumerate(params):
        # Match W's rows to x's current (possibly lane-padded) width with zero
        # rows; pad only the output (lane) dim to 128.  The first layer's
        # contraction dim stays at its native width (no 4x x-read inflation).
        if w.shape[0] != x.shape[1]:
            w = jnp.pad(w, ((0, x.shape[1] - w.shape[0]), (0, 0)))
        w_p = _pad_lanes(w, 1)
        b_p = _pad_lanes(b, 1)
        h = transform(x, w_p, d, tm)               # H = d * (x @ W), reused per row tile
        apply_relu = li < num_layers - 1
        x = aggregate(a_lo, h, d, b_p, tm, tk, apply_relu, matmul_dtype)
    return x[:, :out_c]                             # strip channel padding


def gcn_forward_ref(x, a, params):
    n = a.shape[0]
    hi = jax.lax.Precision.HIGHEST
    a = a + jnp.eye(n, dtype=a.dtype)
    deg = a.sum(axis=1, keepdims=True)
    d = jnp.where(deg > 0, 1.0 / jnp.sqrt(deg), 0.0)
    a_norm = a * d * d.T
    for (w, b) in params[:-1]:
        x = jnp.maximum(jnp.dot(a_norm, jnp.dot(x, w, precision=hi),
                                precision=hi) + b, 0.0)
    w, b = params[-1]
    return jnp.dot(a_norm, jnp.dot(x, w, precision=hi), precision=hi) + b


if __name__ == "__main__":
    # Small but multi-tile shapes (row-tile grid = 2 for the aggregation matmul).
    N = 1024                       # number of graph nodes
    IN_C, HID_C, OUT_C = 32, 64, 16
    NUM_LAYERS = 3
    DROPOUT = 0.5                  # unused at inference

    key = jax.random.PRNGKey(0)
    k_x, k_a, k_p = jax.random.split(key, 3)

    x = jax.random.normal(k_x, (N, IN_C), jnp.float32)

    # Deterministic symmetric binary adjacency (no self loops; kernels add them).
    rand = jax.random.uniform(k_a, (N, N))
    a = (rand < 0.05).astype(jnp.float32)
    a = jnp.maximum(a, a.T)
    a = a * (1.0 - jnp.eye(N, dtype=jnp.float32))

    params = init_gcn_params(k_p, IN_C, HID_C, OUT_C, NUM_LAYERS)

    out = gcn_forward(x, a, params)
    out = jax.block_until_ready(out)

    ref = gcn_forward_ref(x, a, params)
    assert out.shape == (N, OUT_C)
    assert jnp.allclose(out, ref, atol=1e-3, rtol=1e-3)

    print("KERNEL_OK")
</pallas_src>

<mosaic_0001>
module attributes {stable_mosaic.version = 11 : i64} {
  func.func @_deg_cast_kernel(%arg0: i32, %arg1: i32, %arg2: memref<512x1024xf32, #tpu.memory_space<vmem>>, %arg3: memref<512x1024xbf16, #tpu.memory_space<vmem>>, %arg4: memref<512x1xf32, #tpu.memory_space<vmem>>, %arg5: memref<512x1xf32, #tpu.memory_space<vmem>>) attributes {dimension_semantics = [#tpu.dimension_semantics<parallel>, #tpu.dimension_semantics<arbitrary>], iteration_bounds = array<i64: 2, 1>, scalar_prefetch = 0 : i64, scratch_operands = 1 : i64, tpu.core_type = #tpu.core_type<tc>, window_params = [{transform_indices = @transform_0, window_bounds = array<i64: 512, 1024>}, {transform_indices = @transform_1, window_bounds = array<i64: 512, 1024>}, {transform_indices = @transform_2, window_bounds = array<i64: 512, 1>}]} {
    %c0 = arith.constant 0 : index
    %c0_0 = arith.constant 0 : index
    %0 = vector.load %arg2[%c0, %c0_0] : memref<512x1024xf32, #tpu.memory_space<vmem>>, vector<512x1024xf32>
    %1 = arith.truncf %0 : vector<512x1024xf32> to vector<512x1024xbf16>
    %c0_1 = arith.constant 0 : index
    %c0_2 = arith.constant 0 : index
    %2 = vector.load %arg3[%c0_1, %c0_2] : memref<512x1024xbf16, #tpu.memory_space<vmem>>, vector<512x1024xbf16>
    tpu.vector_store %arg3[%c0_1, %c0_2], %1 {strides = array<i32>} : memref<512x1024xbf16, #tpu.memory_space<vmem>>, vector<512x1024xbf16>,
    %cst = arith.constant dense<0.000000e+00> : vector<512xf32>
    %3 = vector.multi_reduction <add>, %0, %cst [1] : vector<512x1024xf32> to vector<512xf32>
    %4 = vector.shape_cast %3 : vector<512xf32> to vector<512x1xf32>
    %c0_i32 = arith.constant 0 : i32
    %5 = arith.cmpi eq, %arg1, %c0_i32 : i32
    %6 = arith.extui %5 : i1 to i32
    %c0_i32_3 = arith.constant 0 : i32
    %7 = arith.cmpi ne, %6, %c0_i32_3 : i32
    scf.if %7 {
      %c0_8 = arith.constant 0 : index
      %c0_9 = arith.constant 0 : index
      %14 = vector.load %arg5[%c0_8, %c0_9] : memref<512x1xf32, #tpu.memory_space<vmem>>, vector<512x1xf32>
      tpu.vector_store %arg5[%c0_8, %c0_9], %4 {strides = array<i32>} : memref<512x1xf32, #tpu.memory_space<vmem>>, vector<512x1xf32>,
    } else {
    }
    %c0_i32_4 = arith.constant 0 : i32
    %8 = arith.cmpi ne, %arg1, %c0_i32_4 : i32
    %9 = arith.extui %8 : i1 to i32
    %c0_i32_5 = arith.constant 0 : i32
    %10 = arith.cmpi ne, %9, %c0_i32_5 : i32
    scf.if %10 {
      %c0_8 = arith.constant 0 : index
      %c0_9 = arith.constant 0 : index
      %14 = vector.load %arg5[%c0_8, %c0_9] : memref<512x1xf32, #tpu.memory_space<vmem>>, vector<512x1xf32>
      %15 = arith.addf %14, %4 : vector<512x1xf32>
      %c0_10 = arith.constant 0 : index
      %c0_11 = arith.constant 0 : index
      %16 = vector.load %arg5[%c0_10, %c0_11] : memref<512x1xf32, #tpu.memory_space<vmem>>, vector<512x1xf32>
      tpu.vector_store %arg5[%c0_10, %c0_11], %15 {strides = array<i32>} : memref<512x1xf32, #tpu.memory_space<vmem>>, vector<512x1xf32>,
    } else {
    }
    %c0_i32_6 = arith.constant 0 : i32
    %11 = arith.cmpi eq, %arg1, %c0_i32_6 : i32
    %12 = arith.extui %11 : i1 to i32
    %c0_i32_7 = arith.constant 0 : i32
    %13 = arith.cmpi ne, %12, %c0_i32_7 : i32
    scf.if %13 {
      %c0_8 = arith.constant 0 : index
      %c0_9 = arith.constant 0 : index
      %14 = vector.load %arg5[%c0_8, %c0_9] : memref<512x1xf32, #tpu.memory_space<vmem>>, vector<512x1xf32>
      %cst_10 = arith.constant 1.000000e+00 : f32
      %15 = vector.broadcast %cst_10 : f32 to vector<512x1xf32>
      %16 = arith.addf %14, %15 : vector<512x1xf32>
      %cst_11 = arith.constant 0.000000e+00 : f32
      %17 = vector.broadcast %cst_11 : f32 to vector<512x1xf32>
      %18 = arith.cmpf ogt, %16, %17 : vector<512x1xf32>
      %19 = math.rsqrt %16 : vector<512x1xf32>
      %cst_12 = arith.constant 0.000000e+00 : f32
      %20 = vector.broadcast %cst_12 : f32 to vector<512x1xf32>
      %21 = arith.select %18, %19, %20 : vector<512x1xi1>, vector<512x1xf32>
      %c0_13 = arith.constant 0 : index
      %c0_14 = arith.constant 0 : index
      %22 = vector.load %arg4[%c0_13, %c0_14] : memref<512x1xf32, #tpu.memory_space<vmem>>, vector<512x1xf32>
      tpu.vector_store %arg4[%c0_13, %c0_14], %21 {strides = array<i32>} : memref<512x1xf32, #tpu.memory_space<vmem>>, vector<512x1xf32>,
    } else {
    }
    return
  }
  func.func @transform_0(%arg0: i32, %arg1: i32) -> (i32, i32) {
    %c0_i32 = arith.constant 0 : i32
    return %arg0, %arg1 : i32, i32
  }
  func.func @transform_1(%arg0: i32, %arg1: i32) -> (i32, i32) {
    %c0_i32 = arith.constant 0 : i32
    return %arg0, %arg1 : i32, i32
  }
  func.func @transform_2(%arg0: i32, %arg1: i32) -> (i32, i32) {
    %c0_i32 = arith.constant 0 : i32
    %c0_i32_0 = arith.constant 0 : i32
    return %arg0, %c0_i32 : i32, i32
  }
}

</mosaic_0001>

<llo_original>
// kernel: tpu_custom_call.1
$region0: #{tpu_custom_call.1}
  #allocation0 [shape = 'u32[]', space=smem, size = 0x4, offset = 0x4, fixed_abs, tag = 'smem constant byte address 0x4 - core index']
  #allocation1 [shape = 'u32[72,128]{1,0:T(1,128)}', space=vmem, size = 0x9000, scoped, tag = 'internal scratch']
  #allocation2 [shape = 'f32[512,1]{1,0:T(8,128)}', space=vmem, size = 0x40000, scoped, tag = 'scratch operand']
  %s0 = inlined_call_operand.hbm [shape: f32[1024,1024], index: 0, kind: input, shape index: {}]
  %s1 = inlined_call_operand.hbm [shape: bf16[1024,1024], index: 1, kind: output, shape index: {0}]
  %s2 = inlined_call_operand.vmem [shape: f32[1024,1], index: 2, kind: output, shape index: {1}]
  %3 = xla_tuple %s1, %s2
  %s4 = sld [smem:[#allocation0]]
  $region61: #{tpu_custom_call.1} parent=0
    _
  %s6 = ssub.s32 1, %s4
  %s7 = scalar_select 0, %s6, %s4
  $region1: #{tpu_custom_call.1} parent=0
    #allocation3 [shape = 'u8[4194304]{0}', space=vmem, size = 0x400000, scoped, tag = 'input window, operand 0']
    #allocation4 [shape = 's32[2]{0}', space=sflag, size = 0x8, scoped, tag = 'scoped memory for tpu_custom_call.1']
    #allocation5 [shape = 's32[2]{0}', space=sflag, size = 0x8, scoped, tag = 'scoped memory for tpu_custom_call.1']
    #allocation6 [shape = 'u8[2097152]{0}', space=vmem, size = 0x200000, scoped, tag = 'output window, operand 0']
    %8 = vsyncpa [#allocation4], 0
    %s9 = scalar_lea.sflag [#allocation4], 1
    %10 = vsyncpa %s9, 0
    %11 = vsyncpa [#allocation5], 0
    %s12 = scalar_lea.sflag [#allocation5], 1
    %13 = vsyncpa %s12, 0
    loop: start=0, step=1, limit=4
    $region2: #{tpu_custom_call.1} parent=1 // loop_pre_header
      _
    $region3: #{tpu_custom_call.1} parent=1 // loop_header
      %s15 = sphi 0, %s19
      %p16 = scmp.ge.s32.totalorder %s15, 4
      %s22 = sphi 0, %s34
      %s23 = sphi 0, %s30
      %s24 = sphi 0, %s22
      %s25 = sphi 0, %s23
      %s26 = sphi 0, %s24
      %s27 = sphi 0, %s25
      %s39 = sphi 0, %s41
      %s42 = sphi 0, %s39
      %s43 = sphi 0, %s42
      %s59 = sphi 0, %s43
      %s67 = sphi 0, %s69
      %s70 = sphi 0, %s67
      %s71 = sphi 0, %s70
      %s87 = sphi 0, %s71
      %s93 = sphi 0, %s95
      %s96 = sphi 0, %s93
      %s97 = sphi 0, %s96
      %s113 = sphi 0, %s97
    $region4: #{tpu_custom_call.1} parent=1 // loop_header_branch
      %18 = sbr.rel (%p16) target = $region8
    $region5: #{tpu_custom_call.1} parent=1 // loop_body
      %s20 = ssub.s32 %s15, 1
      %s21 = ssub.s32 %s15, 2
      %s28 = sadd.s32 1, %s23
      %p29 = scmp.ge.s32.totalorder %s28, 1
      %s30 = scalar_select %p29, 0, %s28
      %s31 = sadd.s32 1, %s22
      %s32 = scalar_select %p29, %s31, %s22
      %p33 = scmp.ge.s32.totalorder %s32, 2
      %s34 = scalar_select %p33, 0, %s32
      %s35 = ssub.s32 %s22, %s34
      %s36 = ssub.s32 %s23, %s30
      %s37 = sor.u32 %s35, %s36
      %p38 = scmp.eq.s32.totalorder %s37, 0
      %s40 = sadd.s32 %s39, 1
      %s41 = scalar_select %p38, %s39, %s40
      %p44 = pneg %p38
      %p45 = scmp.eq.s32.totalorder %s15, 1
      %p46 = por %p44, %p45
      %p47 = scmp.ne.s32.totalorder %s39, %s42
      %p48 = scmp.eq.s32.totalorder %s15, 0
      %p49 = por %p47, %p48
      %p50 = scmp.ne.s32.totalorder %s39, %s42
      %p51 = scmp.eq.s32.totalorder %s20, 1
      %p52 = por %p50, %p51
      %p53 = scmp.ne.s32.totalorder %s42, %s43
      %p54 = scmp.eq.s32.totalorder %s20, 0
      %p55 = por %p53, %p54
      %p56 = scmp.ne.s32.totalorder %s42, %s43
      %p57 = scmp.eq.s32.totalorder %s21, 1
      %p58 = por %p56, %p57
      %p60 = scmp.ne.s32.totalorder %s43, %s59
      %p61 = scmp.eq.s32.totalorder %s21, 0
      %p62 = por %p60, %p61
      %s63 = ssub.s32 %s22, %s34
      %s64 = ssub.s32 %s23, %s30
      %s65 = sor.u32 %s63, %s64
      %p66 = scmp.eq.s32.totalorder %s65, 0
      %s68 = sadd.s32 %s67, 1
      %s69 = scalar_select %p66, %s67, %s68
      %p72 = pneg %p66
      %p73 = scmp.eq.s32.totalorder %s15, 1
      %p74 = por %p72, %p73
      %p75 = scmp.ne.s32.totalorder %s67, %s70
      %p76 = scmp.eq.s32.totalorder %s15, 0
      %p77 = por %p75, %p76
      %p78 = scmp.ne.s32.totalorder %s67, %s70
      %p79 = scmp.eq.s32.totalorder %s20, 1
      %p80 = por %p78, %p79
      %p81 = scmp.ne.s32.totalorder %s70, %s71
      %p82 = scmp.eq.s32.totalorder %s20, 0
      %p83 = por %p81, %p82
      %p84 = scmp.ne.s32.totalorder %s70, %s71
      %p85 = scmp.eq.s32.totalorder %s21, 1
      %p86 = por %p84, %p85
      %p88 = scmp.ne.s32.totalorder %s71, %s87
      %p89 = scmp.eq.s32.totalorder %s21, 0
      %p90 = por %p88, %p89
      %s91 = ssub.s32 %s22, %s34
      %p92 = scmp.eq.s32.totalorder %s91, 0
      %s94 = sadd.s32 %s93, 1
      %s95 = scalar_select %p92, %s93, %s94
      %p98 = pneg %p92
      %p99 = scmp.eq.s32.totalorder %s15, 1
      %p100 = por %p98, %p99
      %p101 = scmp.ne.s32.totalorder %s93, %s96
      %p102 = scmp.eq.s32.totalorder %s15, 0
      %p103 = por %p101, %p102
      %p104 = scmp.ne.s32.totalorder %s93, %s96
      %p105 = scmp.eq.s32.totalorder %s20, 1
      %p106 = por %p104, %p105
      %p107 = scmp.ne.s32.totalorder %s96, %s97
      %p108 = scmp.eq.s32.totalorder %s20, 0
      %p109 = por %p107, %p108
      %p110 = scmp.ne.s32.totalorder %s96, %s97
      %p111 = scmp.eq.s32.totalorder %s21, 1
      %p112 = por %p110, %p111
      %p114 = scmp.ne.s32.totalorder %s97, %s113
      %p115 = scmp.eq.s32.totalorder %s21, 0
      %p116 = por %p114, %p115
      %p117 = scmp.le.s32.totalorder 1, %s15
      %p118 = scmp.lt.s32.totalorder %s15, 3
      %p119 = pnand %p117, %p118
      %p120 = pneg %p119
      // Predicated region
      $region9: #{tpu_custom_call.1} parent=5 // pred_check
        _
      $region10: #{tpu_custom_call.1} parent=5 // pred_check_branch
        %122 = sbr.rel (%p119) target = $region12
      $region11: #{tpu_custom_call.1} parent=5 // pred_region
        %s123 = ssub.s32 %s15, 1
      $region12: #{tpu_custom_call.1} parent=5 // pred_fallthru
        _
      %p124 = scmp.lt.s32.totalorder %s15, 2
      // Predicated region
      $region13: #{tpu_custom_call.1} parent=5 // pred_check
        %p125 = pneg %p124
      $region14: #{tpu_custom_call.1} parent=5 // pred_check_branch
        %127 = sbr.rel (%p125) target = $region16
      $region15: #{tpu_custom_call.1} parent=5 // pred_region
        // Predicated region
        $region17: #{tpu_custom_call.1} parent=15 // pred_check
          %p128 = pneg %p49
        $region18: #{tpu_custom_call.1} parent=15 // pred_check_branch
          %130 = sbr.rel (%p128) target = $region20
        $region19: #{tpu_custom_call.1} parent=15 // pred_region
          %s131 = sand.u32 %s39, 1
          %s132 = scalar_lea.sflag [#allocation4], %s131
          %s133 = sand.u32 %s39, 1
          %s134 = smul.addr %s133, 4096
          %s135 = scalar_lea.vmem [#allocation3], %s134
          %s136 = smul.u32 64, %s22
          %s137 = smul.u32 8, %s23
          %139 = vsyncadd %s132, 0
          %s140 = smul.addr %s136, 8
          %s141 = sadd.s32 %s137, %s140
          %s142 = smul.addr %s141, 8
          %s143 = scalar_lea.hbm %s0, %s142
          %s144 = sshll.u32 %s143, 4
          %s145 = int_to_ptr.hbm [resolvable:$true] %s144
          %s146 = sshll.u32 %s135, 4
          %s147 = int_to_ptr.vmem [resolvable:$true] %s146
          %152 = dma.hbm_to_vmem [thread:$0]  %s145, 65536, %s147, %s132, 1024, 1024, 64
        $region20: #{tpu_custom_call.1} parent=15 // pred_fallthru
          _
      $region16: #{tpu_custom_call.1} parent=5 // pred_fallthru
        _
      %p153 = scmp.le.s32.totalorder 1, %s15
      %p154 = scmp.lt.s32.totalorder %s15, 3
      %p155 = pnand %p153, %p154
      %p156 = pneg %p155
      // Predicated region
      $region21: #{tpu_custom_call.1} parent=5 // pred_check
        _
      $region22: #{tpu_custom_call.1} parent=5 // pred_check_branch
        %158 = sbr.rel (%p155) target = $region24
      $region23: #{tpu_custom_call.1} parent=5 // pred_region
        %s159 = ssub.s32 %s15, 1
        %s160 = sand.u32 %s42, 1
        %s161 = scalar_lea.sflag [#allocation4], %s160
        %s162 = sand.u32 %s42, 1
        %s163 = smul.addr %s162, 4096
        %s164 = scalar_lea.vmem [#allocation3], %s163
        // Predicated region
        $region25: #{tpu_custom_call.1} parent=23 // pred_check
          %p165 = pneg %p55
        $region26: #{tpu_custom_call.1} parent=23 // pred_check_branch
          %167 = sbr.rel (%p165) target = $region28
        $region27: #{tpu_custom_call.1} parent=23 // pred_region
          %169 = dma.done %s161, 65536
        $region28: #{tpu_custom_call.1} parent=23 // pred_fallthru
          _
        %s170 = sand.u32 %s42, 1
        %s171 = scalar_lea.sflag [#allocation4], %s170
        %s172 = sand.u32 %s42, 1
        %s173 = smul.addr %s172, 4096
        %s174 = scalar_lea.vmem [#allocation3], %s173
        %p175 = pneg %p55
        %p176 = pneg %p52
        %p177 = pneg %p83
        %p178 = pneg %p80
        %s179 = sand.u32 %s70, 1
        %s180 = scalar_lea.sflag [#allocation5], %s179
        %s181 = sand.u32 %s70, 1
        %s182 = smul.addr %s181, 2048
        %s183 = scalar_lea.vmem [#allocation6], %s182
        %p184 = pneg %p109
        %p185 = pneg %p106
        %s186 = smul.u32 64, %s24
        %p187 = scmp.lt.s32.totalorder %s186, 127
        %s188 = scalar_select %p187, %s186, 127
        %s189 = smul.addr %s188, 8
        %s190 = scalar_lea.vmem %s2, %s189
        %s191 = smul.u32 64, %s24
        %s192 = smul.u32 8, %s25
        %s193 = smul.u32 64, %s24
        %s194 = smul.u32 8, %s25
        %s195 = smul.u32 64, %s24
        %p196 = scmp.lt.s32.totalorder %s195, 127
        %s197 = scalar_select %p196, %s195, 127
        %s198 = smul.addr %s197, 8
        %s199 = scalar_lea.vmem %s2, %s198
        %s200 = smul.u32 64, %s24
        %v201 = vld [vmem:[%s164] sm:$0xff]
        %v202 = vld [vmem:[%s164 + $0x8] sm:$0xff]
        %v203 = vld [vmem:[%s164 + $0x10] sm:$0xff]
        %v204 = vld [vmem:[%s164 + $0x18] sm:$0xff]
        %v205 = vld [vmem:[%s164 + $0x20] sm:$0xff]
        %v206 = vld [vmem:[%s164 + $0x28] sm:$0xff]
        %v207 = vld [vmem:[%s164 + $0x30] sm:$0xff]
        %v208 = vld [vmem:[%s164 + $0x38] sm:$0xff]
        %v209 = vld [vmem:[%s164 + $0x40] sm:$0xff]
        %v210 = vld [vmem:[%s164 + $0x48] sm:$0xff]
        %v211 = vld [vmem:[%s164 + $0x50] sm:$0xff]
        %v212 = vld [vmem:[%s164 + $0x58] sm:$0xff]
        %v213 = vld [vmem:[%s164 + $0x60] sm:$0xff]
        %v214 = vld [vmem:[%s164 + $0x68] sm:$0xff]
        %v215 = vld [vmem:[%s164 + $0x70] sm:$0xff]
        %v216 = vld [vmem:[%s164 + $0x78] sm:$0xff]
        %v217 = vld [vmem:[%s164 + $0x80] sm:$0xff]
        %v218 = vld [vmem:[%s164 + $0x88] sm:$0xff]
        %v219 = vld [vmem:[%s164 + $0x90] sm:$0xff]
        %v220 = vld [vmem:[%s164 + $0x98] sm:$0xff]
        %v221 = vld [vmem:[%s164 + $0xa0] sm:$0xff]
        %v222 = vld [vmem:[%s164 + $0xa8] sm:$0xff]
        %v223 = vld [vmem:[%s164 + $0xb0] sm:$0xff]
        %v224 = vld [vmem:[%s164 + $0xb8] sm:$0xff]
        %v225 = vld [vmem:[%s164 + $0xc0] sm:$0xff]
        %v226 = vld [vmem:[%s164 + $0xc8] sm:$0xff]
        %v227 = vld [vmem:[%s164 + $0xd0] sm:$0xff]
        %v228 = vld [vmem:[%s164 + $0xd8] sm:$0xff]
        %v229 = vld [vmem:[%s164 + $0xe0] sm:$0xff]
        %v230 = vld [vmem:[%s164 + $0xe8] sm:$0xff]
        %v231 = vld [vmem:[%s164 + $0xf0] sm:$0xff]
        %v232 = vld [vmem:[%s164 + $0xf8] sm:$0xff]
        %v233 = vld [vmem:[%s164 + $0x100] sm:$0xff]
        %v234 = vld [vmem:[%s164 + $0x108] sm:$0xff]
        %v235 = vld [vmem:[%s164 + $0x110] sm:$0xff]
        %v236 = vld [vmem:[%s164 + $0x118] sm:$0xff]
        %v237 = vld [vmem:[%s164 + $0x120] sm:$0xff]
        %v238 = vld [vmem:[%s164 + $0x128] sm:$0xff]
        %v239 = vld [vmem:[%s164 + $0x130] sm:$0xff]
        %v240 = vld [vmem:[%s164 + $0x138] sm:$0xff]
        %v241 = vld [vmem:[%s164 + $0x140] sm:$0xff]
        %v242 = vld [vmem:[%s164 + $0x148] sm:$0xff]
        %v243 = vld [vmem:[%s164 + $0x150] sm:$0xff]
        %v244 = vld [vmem:[%s164 + $0x158] sm:$0xff]
        %v245 = vld [vmem:[%s164 + $0x160] sm:$0xff]
        %v246 = vld [vmem:[%s164 + $0x168] sm:$0xff]
        %v247 = vld [vmem:[%s164 + $0x170] sm:$0xff]
        %v248 = vld [vmem:[%s164 + $0x178] sm:$0xff]
        %v249 = vld [vmem:[%s164 + $0x180] sm:$0xff]
        %v250 = vld [vmem:[%s164 + $0x188] sm:$0xff]
        %v251 = vld [vmem:[%s164 + $0x190] sm:$0xff]
        %v252 = vld [vmem:[%s164 + $0x198] sm:$0xff]
        %v253 = vld [vmem:[%s164 + $0x1a0] sm:$0xff]
        %v254 = vld [vmem:[%s164 + $0x1a8] sm:$0xff]
        %v255 = vld [vmem:[%s164 + $0x1b0] sm:$0xff]
        %v256 = vld [vmem:[%s164 + $0x1b8] sm:$0xff]
        %v257 = vld [vmem:[%s164 + $0x1c0] sm:$0xff]
        %v258 = vld [vmem:[%s164 + $0x1c8] sm:$0xff]
        %v259 = vld [vmem:[%s164 + $0x1d0] sm:$0xff]
        %v260 = vld [vmem:[%s164 + $0x1d8] sm:$0xff]
        %v261 = vld [vmem:[%s164 + $0x1e0] sm:$0xff]
        %v262 = vld [vmem:[%s164 + $0x1e8] sm:$0xff]
        %v263 = vld [vmem:[%s164 + $0x1f0] sm:$0xff]
        %v264 = vld [vmem:[%s164 + $0x1f8] sm:$0xff]
        %v265 = vld [vmem:[%s164 + $0x200] sm:$0xff]
        %v266 = vld [vmem:[%s164 + $0x208] sm:$0xff]
        %v267 = vld [vmem:[%s164 + $0x210] sm:$0xff]
        %v268 = vld [vmem:[%s164 + $0x218] sm:$0xff]
        %v269 = vld [vmem:[%s164 + $0x220] sm:$0xff]
        %v270 = vld [vmem:[%s164 + $0x228] sm:$0xff]
        %v271 = vld [vmem:[%s164 + $0x230] sm:$0xff]
        %v272 = vld [vmem:[%s164 + $0x238] sm:$0xff]
        %v273 = vld [vmem:[%s164 + $0x240] sm:$0xff]
        %v274 = vld [vmem:[%s164 + $0x248] sm:$0xff]
        %v275 = vld [vmem:[%s164 + $0x250] sm:$0xff]
        %v276 = vld [vmem:[%s164 + $0x258] sm:$0xff]
        %v277 = vld [vmem:[%s164 + $0x260] sm:$0xff]
        %v278 = vld [vmem:[%s164 + $0x268] sm:$0xff]
        %v279 = vld [vmem:[%s164 + $0x270] sm:$0xff]
        %v280 = vld [vmem:[%s164 + $0x278] sm:$0xff]
        %v281 = vld [vmem:[%s164 + $0x280] sm:$0xff]
        %v282 = vld [vmem:[%s164 + $0x288] sm:$0xff]
        %v283 = vld [vmem:[%s164 + $0x290] sm:$0xff]
        %v284 = vld [vmem:[%s164 + $0x298] sm:$0xff]
        %v285 = vld [vmem:[%s164 + $0x2a0] sm:$0xff]
        %v286 = vld [vmem:[%s164 + $0x2a8] sm:$0xff]
        %v287 = vld [vmem:[%s164 + $0x2b0] sm:$0xff]
        %v288 = vld [vmem:[%s164 + $0x2b8] sm:$0xff]
        %v289 = vld [vmem:[%s164 + $0x2c0] sm:$0xff]
        %v290 = vld [vmem:[%s164 + $0x2c8] sm:$0xff]
        %v291 = vld [vmem:[%s164 + $0x2d0] sm:$0xff]
        %v292 = vld [vmem:[%s164 + $0x2d8] sm:$0xff]
        %v293 = vld [vmem:[%s164 + $0x2e0] sm:$0xff]
        %v294 = vld [vmem:[%s164 + $0x2e8] sm:$0xff]
        %v295 = vld [vmem:[%s164 + $0x2f0] sm:$0xff]
        %v296 = vld [vmem:[%s164 + $0x2f8] sm:$0xff]
        %v297 = vld [vmem:[%s164 + $0x300] sm:$0xff]
        %v298 = vld [vmem:[%s164 + $0x308] sm:$0xff]
        %v299 = vld [vmem:[%s164 + $0x310] sm:$0xff]
        %v300 = vld [vmem:[%s164 + $0x318] sm:$0xff]
        %v301 = vld [vmem:[%s164 + $0x320] sm:$0xff]
        %v302 = vld [vmem:[%s164 + $0x328] sm:$0xff]
        %v303 = vld [vmem:[%s164 + $0x330] sm:$0xff]
        %v304 = vld [vmem:[%s164 + $0x338] sm:$0xff]
        %v305 = vld [vmem:[%s164 + $0x340] sm:$0xff]
        %v306 = vld [vmem:[%s164 + $0x348] sm:$0xff]
        %v307 = vld [vmem:[%s164 + $0x350] sm:$0xff]
        %v308 = vld [vmem:[%s164 + $0x358] sm:$0xff]
        %v309 = vld [vmem:[%s164 + $0x360] sm:$0xff]
        %v310 = vld [vmem:[%s164 + $0x368] sm:$0xff]
        %v311 = vld [vmem:[%s164 + $0x370] sm:$0xff]
        %v312 = vld [vmem:[%s164 + $0x378] sm:$0xff]
        %v313 = vld [vmem:[%s164 + $0x380] sm:$0xff]
        %v314 = vld [vmem:[%s164 + $0x388] sm:$0xff]
        %v315 = vld [vmem:[%s164 + $0x390] sm:$0xff]
        %v316 = vld [vmem:[%s164 + $0x398] sm:$0xff]
        %v317 = vld [vmem:[%s164 + $0x3a0] sm:$0xff]
        %v318 = vld [vmem:[%s164 + $0x3a8] sm:$0xff]
        %v319 = vld [vmem:[%s164 + $0x3b0] sm:$0xff]
        %v320 = vld [vmem:[%s164 + $0x3b8] sm:$0xff]
        %v321 = vld [vmem:[%s164 + $0x3c0] sm:$0xff]
        %v322 = vld [vmem:[%s164 + $0x3c8] sm:$0xff]
        %v323 = vld [vmem:[%s164 + $0x3d0] sm:$0xff]
        %v324 = vld [vmem:[%s164 + $0x3d8] sm:$0xff]
        %v325 = vld [vmem:[%s164 + $0x3e0] sm:$0xff]
        %v326 = vld [vmem:[%s164 + $0x3e8] sm:$0xff]
        %v327 = vld [vmem:[%s164 + $0x3f0] sm:$0xff]
        %v328 = vld [vmem:[%s164 + $0x3f8] sm:$0xff]
        %v329 = vld [vmem:[%s164 + $0x400] sm:$0xff]
        %v330 = vld [vmem:[%s164 + $0x408] sm:$0xff]
        %v331 = vld [vmem:[%s164 + $0x410] sm:$0xff]
        %v332 = vld [vmem:[%s164 + $0x418] sm:$0xff]
        %v333 = vld [vmem:[%s164 + $0x420] sm:$0xff]
        %v334 = vld [vmem:[%s164 + $0x428] sm:$0xff]
        %v335 = vld [vmem:[%s164 + $0x430] sm:$0xff]
        %v336 = vld [vmem:[%s164 + $0x438] sm:$0xff]
        %v337 = vld [vmem:[%s164 + $0x440] sm:$0xff]
        %v338 = vld [vmem:[%s164 + $0x448] sm:$0xff]
        %v339 = vld [vmem:[%s164 + $0x450] sm:$0xff]
        %v340 = vld [vmem:[%s164 + $0x458] sm:$0xff]
        %v341 = vld [vmem:[%s164 + $0x460] sm:$0xff]
        %v342 = vld [vmem:[%s164 + $0x468] sm:$0xff]
        %v343 = vld [vmem:[%s164 + $0x470] sm:$0xff]
        %v344 = vld [vmem:[%s164 + $0x478] sm:$0xff]
        %v345 = vld [vmem:[%s164 + $0x480] sm:$0xff]
        %v346 = vld [vmem:[%s164 + $0x488] sm:$0xff]
        %v347 = vld [vmem:[%s164 + $0x490] sm:$0xff]
        %v348 = vld [vmem:[%s164 + $0x498] sm:$0xff]
        %v349 = vld [vmem:[%s164 + $0x4a0] sm:$0xff]
        %v350 = vld [vmem:[%s164 + $0x4a8] sm:$0xff]
        %v351 = vld [vmem:[%s164 + $0x4b0] sm:$0xff]
        %v352 = vld [vmem:[%s164 + $0x4b8] sm:$0xff]
        %v353 = vld [vmem:[%s164 + $0x4c0] sm:$0xff]
        %v354 = vld [vmem:[%s164 + $0x4c8] sm:$0xff]
        %v355 = vld [vmem:[%s164 + $0x4d0] sm:$0xff]
        %v356 = vld [vmem:[%s164 + $0x4d8] sm:$0xff]
        %v357 = vld [vmem:[%s164 + $0x4e0] sm:$0xff]
        %v358 = vld [vmem:[%s164 + $0x4e8] sm:$0xff]
        %v359 = vld [vmem:[%s164 + $0x4f0] sm:$0xff]
        %v360 = vld [vmem:[%s164 + $0x4f8] sm:$0xff]
        %v361 = vld [vmem:[%s164 + $0x500] sm:$0xff]
        %v362 = vld [vmem:[%s164 + $0x508] sm:$0xff]
        %v363 = vld [vmem:[%s164 + $0x510] sm:$0xff]
        %v364 = vld [vmem:[%s164 + $0x518] sm:$0xff]
        %v365 = vld [vmem:[%s164 + $0x520] sm:$0xff]
        %v366 = vld [vmem:[%s164 + $0x528] sm:$0xff]
        %v367 = vld [vmem:[%s164 + $0x530] sm:$0xff]
        %v368 = vld [vmem:[%s164 + $0x538] sm:$0xff]
        %v369 = vld [vmem:[%s164 + $0x540] sm:$0xff]
        %v370 = vld [vmem:[%s164 + $0x548] sm:$0xff]
        %v371 = vld [vmem:[%s164 + $0x550] sm:$0xff]
        %v372 = vld [vmem:[%s164 + $0x558] sm:$0xff]
        %v373 = vld [vmem:[%s164 + $0x560] sm:$0xff]
        %v374 = vld [vmem:[%s164 + $0x568] sm:$0xff]
        %v375 = vld [vmem:[%s164 + $0x570] sm:$0xff]
        %v376 = vld [vmem:[%s164 + $0x578] sm:$0xff]
        %v377 = vld [vmem:[%s164 + $0x580] sm:$0xff]
        %v378 = vld [vmem:[%s164 + $0x588] sm:$0xff]
        %v379 = vld [vmem:[%s164 + $0x590] sm:$0xff]
        %v380 = vld [vmem:[%s164 + $0x598] sm:$0xff]
        %v381 = vld [vmem:[%s164 + $0x5a0] sm:$0xff]
        %v382 = vld [vmem:[%s164 + $0x5a8] sm:$0xff]
        %v383 = vld [vmem:[%s164 + $0x5b0] sm:$0xff]
        %v384 = vld [vmem:[%s164 + $0x5b8] sm:$0xff]
        %v385 = vld [vmem:[%s164 + $0x5c0] sm:$0xff]
        %v386 = vld [vmem:[%s164 + $0x5c8] sm:$0xff]
        %v387 = vld [vmem:[%s164 + $0x5d0] sm:$0xff]
        %v388 = vld [vmem:[%s164 + $0x5d8] sm:$0xff]
        %v389 = vld [vmem:[%s164 + $0x5e0] sm:$0xff]
        %v390 = vld [vmem:[%s164 + $0x5e8] sm:$0xff]
        %v391 = vld [vmem:[%s164 + $0x5f0] sm:$0xff]
        %v392 = vld [vmem:[%s164 + $0x5f8] sm:$0xff]
        %v393 = vld [vmem:[%s164 + $0x600] sm:$0xff]
        %v394 = vld [vmem:[%s164 + $0x608] sm:$0xff]
        %v395 = vld [vmem:[%s164 + $0x610] sm:$0xff]
        %v396 = vld [vmem:[%s164 + $0x618] sm:$0xff]
        %v397 = vld [vmem:[%s164 + $0x620] sm:$0xff]
        %v398 = vld [vmem:[%s164 + $0x628] sm:$0xff]
        %v399 = vld [vmem:[%s164 + $0x630] sm:$0xff]
        %v400 = vld [vmem:[%s164 + $0x638] sm:$0xff]
        %v401 = vld [vmem:[%s164 + $0x640] sm:$0xff]
        %v402 = vld [vmem:[%s164 + $0x648] sm:$0xff]
        %v403 = vld [vmem:[%s164 + $0x650] sm:$0xff]
        %v404 = vld [vmem:[%s164 + $0x658] sm:$0xff]
        %v405 = vld [vmem:[%s164 + $0x660] sm:$0xff]
        %v406 = vld [vmem:[%s164 + $0x668] sm:$0xff]
        %v407 = vld [vmem:[%s164 + $0x670] sm:$0xff]
        %v408 = vld [vmem:[%s164 + $0x678] sm:$0xff]
        %v409 = vld [vmem:[%s164 + $0x680] sm:$0xff]
        %v410 = vld [vmem:[%s164 + $0x688] sm:$0xff]
        %v411 = vld [vmem:[%s164 + $0x690] sm:$0xff]
        %v412 = vld [vmem:[%s164 + $0x698] sm:$0xff]
        %v413 = vld [vmem:[%s164 + $0x6a0] sm:$0xff]
        %v414 = vld [vmem:[%s164 + $0x6a8] sm:$0xff]
        %v415 = vld [vmem:[%s164 + $0x6b0] sm:$0xff]
        %v416 = vld [vmem:[%s164 + $0x6b8] sm:$0xff]
        %v417 = vld [vmem:[%s164 + $0x6c0] sm:$0xff]
        %v418 = vld [vmem:[%s164 + $0x6c8] sm:$0xff]
        %v419 = vld [vmem:[%s164 + $0x6d0] sm:$0xff]
        %v420 = vld [vmem:[%s164 + $0x6d8] sm:$0xff]
        %v421 = vld [vmem:[%s164 + $0x6e0] sm:$0xff]
        %v422 = vld [vmem:[%s164 + $0x6e8] sm:$0xff]
        %v423 = vld [vmem:[%s164 + $0x6f0] sm:$0xff]
        %v424 = vld [vmem:[%s164 + $0x6f8] sm:$0xff]
        %v425 = vld [vmem:[%s164 + $0x700] sm:$0xff]
        %v426 = vld [vmem:[%s164 + $0x708] sm:$0xff]
        %v427 = vld [vmem:[%s164 + $0x710] sm:$0xff]
        %v428 = vld [vmem:[%s164 + $0x718] sm:$0xff]
        %v429 = vld [vmem:[%s164 + $0x720] sm:$0xff]
        %v430 = vld [vmem:[%s164 + $0x728] sm:$0xff]
        %v431 = vld [vmem:[%s164 + $0x730] sm:$0xff]
        %v432 = vld [vmem:[%s164 + $0x738] sm:$0xff]
        %v433 = vld [vmem:[%s164 + $0x740] sm:$0xff]
        %v434 = vld [vmem:[%s164 + $0x748] sm:$0xff]
        %v435 = vld [vmem:[%s164 + $0x750] sm:$0xff]
        %v436 = vld [vmem:[%s164 + $0x758] sm:$0xff]
        %v437 = vld [vmem:[%s164 + $0x760] sm:$0xff]
        %v438 = vld [vmem:[%s164 + $0x768] sm:$0xff]
        %v439 = vld [vmem:[%s164 + $0x770] sm:$0xff]
        %v440 = vld [vmem:[%s164 + $0x778] sm:$0xff]
        %v441 = vld [vmem:[%s164 + $0x780] sm:$0xff]
        %v442 = vld [vmem:[%s164 + $0x788] sm:$0xff]
        %v443 = vld [vmem:[%s164 + $0x790] sm:$0xff]
        %v444 = vld [vmem:[%s164 + $0x798] sm:$0xff]
        %v445 = vld [vmem:[%s164 + $0x7a0] sm:$0xff]
        %v446 = vld [vmem:[%s164 + $0x7a8] sm:$0xff]
        %v447 = vld [vmem:[%s164 + $0x7b0] sm:$0xff]
        %v448 = vld [vmem:[%s164 + $0x7b8] sm:$0xff]
        %v449 = vld [vmem:[%s164 + $0x7c0] sm:$0xff]
        %v450 = vld [vmem:[%s164 + $0x7c8] sm:$0xff]
        %v451 = vld [vmem:[%s164 + $0x7d0] sm:$0xff]
        %v452 = vld [vmem:[%s164 + $0x7d8] sm:$0xff]
        %v453 = vld [vmem:[%s164 + $0x7e0] sm:$0xff]
        %v454 = vld [vmem:[%s164 + $0x7e8] sm:$0xff]
        %v455 = vld [vmem:[%s164 + $0x7f0] sm:$0xff]
        %v456 = vld [vmem:[%s164 + $0x7f8] sm:$0xff]
        %v457 = vld [vmem:[%s164 + $0x800] sm:$0xff]
        %v458 = vld [vmem:[%s164 + $0x808] sm:$0xff]
        %v459 = vld [vmem:[%s164 + $0x810] sm:$0xff]
        %v460 = vld [vmem:[%s164 + $0x818] sm:$0xff]
        %v461 = vld [vmem:[%s164 + $0x820] sm:$0xff]
        %v462 = vld [vmem:[%s164 + $0x828] sm:$0xff]
        %v463 = vld [vmem:[%s164 + $0x830] sm:$0xff]
        %v464 = vld [vmem:[%s164 + $0x838] sm:$0xff]
        %v465 = vld [vmem:[%s164 + $0x840] sm:$0xff]
        %v466 = vld [vmem:[%s164 + $0x848] sm:$0xff]
        %v467 = vld [vmem:[%s164 + $0x850] sm:$0xff]
        %v468 = vld [vmem:[%s164 + $0x858] sm:$0xff]
        %v469 = vld [vmem:[%s164 + $0x860] sm:$0xff]
        %v470 = vld [vmem:[%s164 + $0x868] sm:$0xff]
        %v471 = vld [vmem:[%s164 + $0x870] sm:$0xff]
        %v472 = vld [vmem:[%s164 + $0x878] sm:$0xff]
        %v473 = vld [vmem:[%s164 + $0x880] sm:$0xff]
        %v474 = vld [vmem:[%s164 + $0x888] sm:$0xff]
        %v475 = vld [vmem:[%s164 + $0x890] sm:$0xff]
        %v476 = vld [vmem:[%s164 + $0x898] sm:$0xff]
        %v477 = vld [vmem:[%s164 + $0x8a0] sm:$0xff]
        %v478 = vld [vmem:[%s164 + $0x8a8] sm:$0xff]
        %v479 = vld [vmem:[%s164 + $0x8b0] sm:$0xff]
        %v480 = vld [vmem:[%s164 + $0x8b8] sm:$0xff]
        %v481 = vld [vmem:[%s164 + $0x8c0] sm:$0xff]
        %v482 = vld [vmem:[%s164 + $0x8c8] sm:$0xff]
        %v483 = vld [vmem:[%s164 + $0x8d0] sm:$0xff]
        %v484 = vld [vmem:[%s164 + $0x8d8] sm:$0xff]
        %v485 = vld [vmem:[%s164 + $0x8e0] sm:$0xff]
        %v486 = vld [vmem:[%s164 + $0x8e8] sm:$0xff]
        %v487 = vld [vmem:[%s164 + $0x8f0] sm:$0xff]
        %v488 = vld [vmem:[%s164 + $0x8f8] sm:$0xff]
        %v489 = vld [vmem:[%s164 + $0x900] sm:$0xff]
        %v490 = vld [vmem:[%s164 + $0x908] sm:$0xff]
        %v491 = vld [vmem:[%s164 + $0x910] sm:$0xff]
        %v492 = vld [vmem:[%s164 + $0x918] sm:$0xff]
        %v493 = vld [vmem:[%s164 + $0x920] sm:$0xff]
        %v494 = vld [vmem:[%s164 + $0x928] sm:$0xff]
        %v495 = vld [vmem:[%s164 + $0x930] sm:$0xff]
        %v496 = vld [vmem:[%s164 + $0x938] sm:$0xff]
        %v497 = vld [vmem:[%s164 + $0x940] sm:$0xff]
        %v498 = vld [vmem:[%s164 + $0x948] sm:$0xff]
        %v499 = vld [vmem:[%s164 + $0x950] sm:$0xff]
        %v500 = vld [vmem:[%s164 + $0x958] sm:$0xff]
        %v501 = vld [vmem:[%s164 + $0x960] sm:$0xff]
        %v502 = vld [vmem:[%s164 + $0x968] sm:$0xff]
        %v503 = vld [vmem:[%s164 + $0x970] sm:$0xff]
        %v504 = vld [vmem:[%s164 + $0x978] sm:$0xff]
        %v505 = vld [vmem:[%s164 + $0x980] sm:$0xff]
        %v506 = vld [vmem:[%s164 + $0x988] sm:$0xff]
        %v507 = vld [vmem:[%s164 + $0x990] sm:$0xff]
        %v508 = vld [vmem:[%s164 + $0x998] sm:$0xff]
        %v509 = vld [vmem:[%s164 + $0x9a0] sm:$0xff]
        %v510 = vld [vmem:[%s164 + $0x9a8] sm:$0xff]
        %v511 = vld [vmem:[%s164 + $0x9b0] sm:$0xff]
        %v512 = vld [vmem:[%s164 + $0x9b8] sm:$0xff]
        %v513 = vld [vmem:[%s164 + $0x9c0] sm:$0xff]
        %v514 = vld [vmem:[%s164 + $0x9c8] sm:$0xff]
        %v515 = vld [vmem:[%s164 + $0x9d0] sm:$0xff]
        %v516 = vld [vmem:[%s164 + $0x9d8] sm:$0xff]
        %v517 = vld [vmem:[%s164 + $0x9e0] sm:$0xff]
        %v518 = vld [vmem:[%s164 + $0x9e8] sm:$0xff]
        %v519 = vld [vmem:[%s164 + $0x9f0] sm:$0xff]
        %v520 = vld [vmem:[%s164 + $0x9f8] sm:$0xff]
        %v521 = vld [vmem:[%s164 + $0xa00] sm:$0xff]
        %v522 = vld [vmem:[%s164 + $0xa08] sm:$0xff]
        %v523 = vld [vmem:[%s164 + $0xa10] sm:$0xff]
        %v524 = vld [vmem:[%s164 + $0xa18] sm:$0xff]
        %v525 = vld [vmem:[%s164 + $0xa20] sm:$0xff]
        %v526 = vld [vmem:[%s164 + $0xa28] sm:$0xff]
        %v527 = vld [vmem:[%s164 + $0xa30] sm:$0xff]
        %v528 = vld [vmem:[%s164 + $0xa38] sm:$0xff]
        %v529 = vld [vmem:[%s164 + $0xa40] sm:$0xff]
        %v530 = vld [vmem:[%s164 + $0xa48] sm:$0xff]
        %v531 = vld [vmem:[%s164 + $0xa50] sm:$0xff]
        %v532 = vld [vmem:[%s164 + $0xa58] sm:$0xff]
        %v533 = vld [vmem:[%s164 + $0xa60] sm:$0xff]
        %v534 = vld [vmem:[%s164 + $0xa68] sm:$0xff]
        %v535 = vld [vmem:[%s164 + $0xa70] sm:$0xff]
        %v536 = vld [vmem:[%s164 + $0xa78] sm:$0xff]
        %v537 = vld [vmem:[%s164 + $0xa80] sm:$0xff]
        %v538 = vld [vmem:[%s164 + $0xa88] sm:$0xff]
        %v539 = vld [vmem:[%s164 + $0xa90] sm:$0xff]
        %v540 = vld [vmem:[%s164 + $0xa98] sm:$0xff]
        %v541 = vld [vmem:[%s164 + $0xaa0] sm:$0xff]
        %v542 = vld [vmem:[%s164 + $0xaa8] sm:$0xff]
        %v543 = vld [vmem:[%s164 + $0xab0] sm:$0xff]
        %v544 = vld [vmem:[%s164 + $0xab8] sm:$0xff]
        %v545 = vld [vmem:[%s164 + $0xac0] sm:$0xff]
        %v546 = vld [vmem:[%s164 + $0xac8] sm:$0xff]
        %v547 = vld [vmem:[%s164 + $0xad0] sm:$0xff]
        %v548 = vld [vmem:[%s164 + $0xad8] sm:$0xff]
        %v549 = vld [vmem:[%s164 + $0xae0] sm:$0xff]
        %v550 = vld [vmem:[%s164 + $0xae8] sm:$0xff]
        %v551 = vld [vmem:[%s164 + $0xaf0] sm:$0xff]
        %v552 = vld [vmem:[%s164 + $0xaf8] sm:$0xff]
        %v553 = vld [vmem:[%s164 + $0xb00] sm:$0xff]
        %v554 = vld [vmem:[%s164 + $0xb08] sm:$0xff]
        %v555 = vld [vmem:[%s164 + $0xb10] sm:$0xff]
        %v556 = vld [vmem:[%s164 + $0xb18] sm:$0xff]
        %v557 = vld [vmem:[%s164 + $0xb20] sm:$0xff]
        %v558 = vld [vmem:[%s164 + $0xb28] sm:$0xff]
        %v559 = vld [vmem:[%s164 + $0xb30] sm:$0xff]
        %v560 = vld [vmem:[%s164 + $0xb38] sm:$0xff]
        %v561 = vld [vmem:[%s164 + $0xb40] sm:$0xff]
        %v562 = vld [vmem:[%s164 + $0xb48] sm:$0xff]
        %v563 = vld [vmem:[%s164 + $0xb50] sm:$0xff]
        %v564 = vld [vmem:[%s164 + $0xb58] sm:$0xff]
        %v565 = vld [vmem:[%s164 + $0xb60] sm:$0xff]
        %v566 = vld [vmem:[%s164 + $0xb68] sm:$0xff]
        %v567 = vld [vmem:[%s164 + $0xb70] sm:$0xff]
        %v568 = vld [vmem:[%s164 + $0xb78] sm:$0xff]
        %v569 = vld [vmem:[%s164 + $0xb80] sm:$0xff]
        %v570 = vld [vmem:[%s164 + $0xb88] sm:$0xff]
        %v571 = vld [vmem:[%s164 + $0xb90] sm:$0xff]
        %v572 = vld [vmem:[%s164 + $0xb98] sm:$0xff]
        %v573 = vld [vmem:[%s164 + $0xba0] sm:$0xff]
        %v574 = vld [vmem:[%s164 + $0xba8] sm:$0xff]
        %v575 = vld [vmem:[%s164 + $0xbb0] sm:$0xff]
        %v576 = vld [vmem:[%s164 + $0xbb8] sm:$0xff]
        %v577 = vld [vmem:[%s164 + $0xbc0] sm:$0xff]
        %v578 = vld [vmem:[%s164 + $0xbc8] sm:$0xff]
        %v579 = vld [vmem:[%s164 + $0xbd0] sm:$0xff]
        %v580 = vld [vmem:[%s164 + $0xbd8] sm:$0xff]
        %v581 = vld [vmem:[%s164 + $0xbe0] sm:$0xff]
        %v582 = vld [vmem:[%s164 + $0xbe8] sm:$0xff]
        %v583 = vld [vmem:[%s164 + $0xbf0] sm:$0xff]
        %v584 = vld [vmem:[%s164 + $0xbf8] sm:$0xff]
        %v585 = vld [vmem:[%s164 + $0xc00] sm:$0xff]
        %v586 = vld [vmem:[%s164 + $0xc08] sm:$0xff]
        %v587 = vld [vmem:[%s164 + $0xc10] sm:$0xff]
        %v588 = vld [vmem:[%s164 + $0xc18] sm:$0xff]
        %v589 = vld [vmem:[%s164 + $0xc20] sm:$0xff]
        %v590 = vld [vmem:[%s164 + $0xc28] sm:$0xff]
        %v591 = vld [vmem:[%s164 + $0xc30] sm:$0xff]
        %v592 = vld [vmem:[%s164 + $0xc38] sm:$0xff]
        %v593 = vld [vmem:[%s164 + $0xc40] sm:$0xff]
        %v594 = vld [vmem:[%s164 + $0xc48] sm:$0xff]
        %v595 = vld [vmem:[%s164 + $0xc50] sm:$0xff]
        %v596 = vld [vmem:[%s164 + $0xc58] sm:$0xff]
        %v597 = vld [vmem:[%s164 + $0xc60] sm:$0xff]
        %v598 = vld [vmem:[%s164 + $0xc68] sm:$0xff]
        %v599 = vld [vmem:[%s164 + $0xc70] sm:$0xff]
        %v600 = vld [vmem:[%s164 + $0xc78] sm:$0xff]
        %v601 = vld [vmem:[%s164 + $0xc80] sm:$0xff]
        %v602 = vld [vmem:[%s164 + $0xc88] sm:$0xff]
        %v603 = vld [vmem:[%s164 + $0xc90] sm:$0xff]
        %v604 = vld [vmem:[%s164 + $0xc98] sm:$0xff]
        %v605 = vld [vmem:[%s164 + $0xca0] sm:$0xff]
        %v606 = vld [vmem:[%s164 + $0xca8] sm:$0xff]
        %v607 = vld [vmem:[%s164 + $0xcb0] sm:$0xff]
        %v608 = vld [vmem:[%s164 + $0xcb8] sm:$0xff]
        %v609 = vld [vmem:[%s164 + $0xcc0] sm:$0xff]
        %v610 = vld [vmem:[%s164 + $0xcc8] sm:$0xff]
        %v611 = vld [vmem:[%s164 + $0xcd0] sm:$0xff]
        %v612 = vld [vmem:[%s164 + $0xcd8] sm:$0xff]
        %v613 = vld [vmem:[%s164 + $0xce0] sm:$0xff]
        %v614 = vld [vmem:[%s164 + $0xce8] sm:$0xff]
        %v615 = vld [vmem:[%s164 + $0xcf0] sm:$0xff]
        %v616 = vld [vmem:[%s164 + $0xcf8] sm:$0xff]
        %v617 = vld [vmem:[%s164 + $0xd00] sm:$0xff]
        %v618 = vld [vmem:[%s164 + $0xd08] sm:$0xff]
        %v619 = vld [vmem:[%s164 + $0xd10] sm:$0xff]
        %v620 = vld [vmem:[%s164 + $0xd18] sm:$0xff]
        %v621 = vld [vmem:[%s164 + $0xd20] sm:$0xff]
        %v622 = vld [vmem:[%s164 + $0xd28] sm:$0xff]
        %v623 = vld [vmem:[%s164 + $0xd30] sm:$0xff]
        %v624 = vld [vmem:[%s164 + $0xd38] sm:$0xff]
        %v625 = vld [vmem:[%s164 + $0xd40] sm:$0xff]
        %v626 = vld [vmem:[%s164 + $0xd48] sm:$0xff]
        %v627 = vld [vmem:[%s164 + $0xd50] sm:$0xff]
        %v628 = vld [vmem:[%s164 + $0xd58] sm:$0xff]
        %v629 = vld [vmem:[%s164 + $0xd60] sm:$0xff]
        %v630 = vld [vmem:[%s164 + $0xd68] sm:$0xff]
        %v631 = vld [vmem:[%s164 + $0xd70] sm:$0xff]
        %v632 = vld [vmem:[%s164 + $0xd78] sm:$0xff]
        %v633 = vld [vmem:[%s164 + $0xd80] sm:$0xff]
        %v634 = vld [vmem:[%s164 + $0xd88] sm:$0xff]
        %v635 = vld [vmem:[%s164 + $0xd90] sm:$0xff]
        %v636 = vld [vmem:[%s164 + $0xd98] sm:$0xff]
        %v637 = vld [vmem:[%s164 + $0xda0] sm:$0xff]
        %v638 = vld [vmem:[%s164 + $0xda8] sm:$0xff]
        %v639 = vld [vmem:[%s164 + $0xdb0] sm:$0xff]
        %v640 = vld [vmem:[%s164 + $0xdb8] sm:$0xff]
        %v641 = vld [vmem:[%s164 + $0xdc0] sm:$0xff]
        %v642 = vld [vmem:[%s164 + $0xdc8] sm:$0xff]
        %v643 = vld [vmem:[%s164 + $0xdd0] sm:$0xff]
        %v644 = vld [vmem:[%s164 + $0xdd8] sm:$0xff]
        %v645 = vld [vmem:[%s164 + $0xde0] sm:$0xff]
        %v646 = vld [vmem:[%s164 + $0xde8] sm:$0xff]
        %v647 = vld [vmem:[%s164 + $0xdf0] sm:$0xff]
        %v648 = vld [vmem:[%s164 + $0xdf8] sm:$0xff]
        %v649 = vld [vmem:[%s164 + $0xe00] sm:$0xff]
        %v650 = vld [vmem:[%s164 + $0xe08] sm:$0xff]
        %v651 = vld [vmem:[%s164 + $0xe10] sm:$0xff]
        %v652 = vld [vmem:[%s164 + $0xe18] sm:$0xff]
        %v653 = vld [vmem:[%s164 + $0xe20] sm:$0xff]
        %v654 = vld [vmem:[%s164 + $0xe28] sm:$0xff]
        %v655 = vld [vmem:[%s164 + $0xe30] sm:$0xff]
        %v656 = vld [vmem:[%s164 + $0xe38] sm:$0xff]
        %v657 = vld [vmem:[%s164 + $0xe40] sm:$0xff]
        %v658 = vld [vmem:[%s164 + $0xe48] sm:$0xff]
        %v659 = vld [vmem:[%s164 + $0xe50] sm:$0xff]
        %v660 = vld [vmem:[%s164 + $0xe58] sm:$0xff]
        %v661 = vld [vmem:[%s164 + $0xe60] sm:$0xff]
        %v662 = vld [vmem:[%s164 + $0xe68] sm:$0xff]
        %v663 = vld [vmem:[%s164 + $0xe70] sm:$0xff]
        %v664 = vld [vmem:[%s164 + $0xe78] sm:$0xff]
        %v665 = vld [vmem:[%s164 + $0xe80] sm:$0xff]
        %v666 = vld [vmem:[%s164 + $0xe88] sm:$0xff]
        %v667 = vld [vmem:[%s164 + $0xe90] sm:$0xff]
        %v668 = vld [vmem:[%s164 + $0xe98] sm:$0xff]
        %v669 = vld [vmem:[%s164 + $0xea0] sm:$0xff]
        %v670 = vld [vmem:[%s164 + $0xea8] sm:$0xff]
        %v671 = vld [vmem:[%s164 + $0xeb0] sm:$0xff]
        %v672 = vld [vmem:[%s164 + $0xeb8] sm:$0xff]
        %v673 = vld [vmem:[%s164 + $0xec0] sm:$0xff]
        %v674 = vld [vmem:[%s164 + $0xec8] sm:$0xff]
        %v675 = vld [vmem:[%s164 + $0xed0] sm:$0xff]
        %v676 = vld [vmem:[%s164 + $0xed8] sm:$0xff]
        %v677 = vld [vmem:[%s164 + $0xee0] sm:$0xff]
        %v678 = vld [vmem:[%s164 + $0xee8] sm:$0xff]
        %v679 = vld [vmem:[%s164 + $0xef0] sm:$0xff]
        %v680 = vld [vmem:[%s164 + $0xef8] sm:$0xff]
        %v681 = vld [vmem:[%s164 + $0xf00] sm:$0xff]
        %v682 = vld [vmem:[%s164 + $0xf08] sm:$0xff]
        %v683 = vld [vmem:[%s164 + $0xf10] sm:$0xff]
        %v684 = vld [vmem:[%s164 + $0xf18] sm:$0xff]
        %v685 = vld [vmem:[%s164 + $0xf20] sm:$0xff]
        %v686 = vld [vmem:[%s164 + $0xf28] sm:$0xff]
        %v687 = vld [vmem:[%s164 + $0xf30] sm:$0xff]
        %v688 = vld [vmem:[%s164 + $0xf38] sm:$0xff]
        %v689 = vld [vmem:[%s164 + $0xf40] sm:$0xff]
        %v690 = vld [vmem:[%s164 + $0xf48] sm:$0xff]
        %v691 = vld [vmem:[%s164 + $0xf50] sm:$0xff]
        %v692 = vld [vmem:[%s164 + $0xf58] sm:$0xff]
        %v693 = vld [vmem:[%s164 + $0xf60] sm:$0xff]
        %v694 = vld [vmem:[%s164 + $0xf68] sm:$0xff]
        %v695 = vld [vmem:[%s164 + $0xf70] sm:$0xff]
        %v696 = vld [vmem:[%s164 + $0xf78] sm:$0xff]
        %v697 = vld [vmem:[%s164 + $0xf80] sm:$0xff]
        %v698 = vld [vmem:[%s164 + $0xf88] sm:$0xff]
        %v699 = vld [vmem:[%s164 + $0xf90] sm:$0xff]
        %v700 = vld [vmem:[%s164 + $0xf98] sm:$0xff]
        %v701 = vld [vmem:[%s164 + $0xfa0] sm:$0xff]
        %v702 = vld [vmem:[%s164 + $0xfa8] sm:$0xff]
        %v703 = vld [vmem:[%s164 + $0xfb0] sm:$0xff]
        %v704 = vld [vmem:[%s164 + $0xfb8] sm:$0xff]
        %v705 = vld [vmem:[%s164 + $0xfc0] sm:$0xff]
        %v706 = vld [vmem:[%s164 + $0xfc8] sm:$0xff]
        %v707 = vld [vmem:[%s164 + $0xfd0] sm:$0xff]
        %v708 = vld [vmem:[%s164 + $0xfd8] sm:$0xff]
        %v709 = vld [vmem:[%s164 + $0xfe0] sm:$0xff]
        %v710 = vld [vmem:[%s164 + $0xfe8] sm:$0xff]
        %v711 = vld [vmem:[%s164 + $0xff0] sm:$0xff]
        %v712 = vld [vmem:[%s164 + $0xff8] sm:$0xff]
        %v713 = vpack.c.bf16 %v202, %v201
        %v714 = vpack.c.bf16 %v204, %v203
        %v715 = vpack.c.bf16 %v206, %v205
        %v716 = vpack.c.bf16 %v208, %v207
        %v717 = vpack.c.bf16 %v210, %v209
        %v718 = vpack.c.bf16 %v212, %v211
        %v719 = vpack.c.bf16 %v214, %v213
        %v720 = vpack.c.bf16 %v216, %v215
        %v721 = vpack.c.bf16 %v218, %v217
        %v722 = vpack.c.bf16 %v220, %v219
        %v723 = vpack.c.bf16 %v222, %v221
        %v724 = vpack.c.bf16 %v224, %v223
        %v725 = vpack.c.bf16 %v226, %v225
        %v726 = vpack.c.bf16 %v228, %v227
        %v727 = vpack.c.bf16 %v230, %v229
        %v728 = vpack.c.bf16 %v232, %v231
        %v729 = vpack.c.bf16 %v234, %v233
        %v730 = vpack.c.bf16 %v236, %v235
        %v731 = vpack.c.bf16 %v238, %v237
        %v732 = vpack.c.bf16 %v240, %v239
        %v733 = vpack.c.bf16 %v242, %v241
        %v734 = vpack.c.bf16 %v244, %v243
        %v735 = vpack.c.bf16 %v246, %v245
        %v736 = vpack.c.bf16 %v248, %v247
        %v737 = vpack.c.bf16 %v250, %v249
        %v738 = vpack.c.bf16 %v252, %v251
        %v739 = vpack.c.bf16 %v254, %v253
        %v740 = vpack.c.bf16 %v256, %v255
        %v741 = vpack.c.bf16 %v258, %v257
        %v742 = vpack.c.bf16 %v260, %v259
        %v743 = vpack.c.bf16 %v262, %v261
        %v744 = vpack.c.bf16 %v264, %v263
        %v745 = vpack.c.bf16 %v266, %v265
        %v746 = vpack.c.bf16 %v268, %v267
        %v747 = vpack.c.bf16 %v270, %v269
        %v748 = vpack.c.bf16 %v272, %v271
        %v749 = vpack.c.bf16 %v274, %v273
        %v750 = vpack.c.bf16 %v276, %v275
        %v751 = vpack.c.bf16 %v278, %v277
        %v752 = vpack.c.bf16 %v280, %v279
        %v753 = vpack.c.bf16 %v282, %v281
        %v754 = vpack.c.bf16 %v284, %v283
        %v755 = vpack.c.bf16 %v286, %v285
        %v756 = vpack.c.bf16 %v288, %v287
        %v757 = vpack.c.bf16 %v290, %v289
        %v758 = vpack.c.bf16 %v292, %v291
        %v759 = vpack.c.bf16 %v294, %v293
        %v760 = vpack.c.bf16 %v296, %v295
        %v761 = vpack.c.bf16 %v298, %v297
        %v762 = vpack.c.bf16 %v300, %v299
        %v763 = vpack.c.bf16 %v302, %v301
        %v764 = vpack.c.bf16 %v304, %v303
        %v765 = vpack.c.bf16 %v306, %v305
        %v766 = vpack.c.bf16 %v308, %v307
        %v767 = vpack.c.bf16 %v310, %v309
        %v768 = vpack.c.bf16 %v312, %v311
        %v769 = vpack.c.bf16 %v314, %v313
        %v770 = vpack.c.bf16 %v316, %v315
        %v771 = vpack.c.bf16 %v318, %v317
        %v772 = vpack.c.bf16 %v320, %v319
        %v773 = vpack.c.bf16 %v322, %v321
        %v774 = vpack.c.bf16 %v324, %v323
        %v775 = vpack.c.bf16 %v326, %v325
        %v776 = vpack.c.bf16 %v328, %v327
        %v777 = vpack.c.bf16 %v330, %v329
        %v778 = vpack.c.bf16 %v332, %v331
        %v779 = vpack.c.bf16 %v334, %v333
        %v780 = vpack.c.bf16 %v336, %v335
        %v781 = vpack.c.bf16 %v338, %v337
        %v782 = vpack.c.bf16 %v340, %v339
        %v783 = vpack.c.bf16 %v342, %v341
        %v784 = vpack.c.bf16 %v344, %v343
        %v785 = vpack.c.bf16 %v346, %v345
        %v786 = vpack.c.bf16 %v348, %v347
        %v787 = vpack.c.bf16 %v350, %v349
        %v788 = vpack.c.bf16 %v352, %v351
        %v789 = vpack.c.bf16 %v354, %v353
        %v790 = vpack.c.bf16 %v356, %v355
        %v791 = vpack.c.bf16 %v358, %v357
        %v792 = vpack.c.bf16 %v360, %v359
        %v793 = vpack.c.bf16 %v362, %v361
        %v794 = vpack.c.bf16 %v364, %v363
        %v795 = vpack.c.bf16 %v366, %v365
        %v796 = vpack.c.bf16 %v368, %v367
        %v797 = vpack.c.bf16 %v370, %v369
        %v798 = vpack.c.bf16 %v372, %v371
        %v799 = vpack.c.bf16 %v374, %v373
        %v800 = vpack.c.bf16 %v376, %v375
        %v801 = vpack.c.bf16 %v378, %v377
        %v802 = vpack.c.bf16 %v380, %v379
        %v803 = vpack.c.bf16 %v382, %v381
        %v804 = vpack.c.bf16 %v384, %v383
        %v805 = vpack.c.bf16 %v386, %v385
        %v806 = vpack.c.bf16 %v388, %v387
        %v807 = vpack.c.bf16 %v390, %v389
        %v808 = vpack.c.bf16 %v392, %v391
        %v809 = vpack.c.bf16 %v394, %v393
        %v810 = vpack.c.bf16 %v396, %v395
        %v811 = vpack.c.bf16 %v398, %v397
        %v812 = vpack.c.bf16 %v400, %v399
        %v813 = vpack.c.bf16 %v402, %v401
        %v814 = vpack.c.bf16 %v404, %v403
        %v815 = vpack.c.bf16 %v406, %v405
        %v816 = vpack.c.bf16 %v408, %v407
        %v817 = vpack.c.bf16 %v410, %v409
        %v818 = vpack.c.bf16 %v412, %v411
        %v819 = vpack.c.bf16 %v414, %v413
        %v820 = vpack.c.bf16 %v416, %v415
        %v821 = vpack.c.bf16 %v418, %v417
        %v822 = vpack.c.bf16 %v420, %v419
        %v823 = vpack.c.bf16 %v422, %v421
        %v824 = vpack.c.bf16 %v424, %v423
        %v825 = vpack.c.bf16 %v426, %v425
        %v826 = vpack.c.bf16 %v428, %v427
        %v827 = vpack.c.bf16 %v430, %v429
        %v828 = vpack.c.bf16 %v432, %v431
        %v829 = vpack.c.bf16 %v434, %v433
        %v830 = vpack.c.bf16 %v436, %v435
        %v831 = vpack.c.bf16 %v438, %v437
        %v832 = vpack.c.bf16 %v440, %v439
        %v833 = vpack.c.bf16 %v442, %v441
        %v834 = vpack.c.bf16 %v444, %v443
        %v835 = vpack.c.bf16 %v446, %v445
        %v836 = vpack.c.bf16 %v448, %v447
        %v837 = vpack.c.bf16 %v450, %v449
        %v838 = vpack.c.bf16 %v452, %v451
        %v839 = vpack.c.bf16 %v454, %v453
        %v840 = vpack.c.bf16 %v456, %v455
        %v841 = vpack.c.bf16 %v458, %v457
        %v842 = vpack.c.bf16 %v460, %v459
        %v843 = vpack.c.bf16 %v462, %v461
        %v844 = vpack.c.bf16 %v464, %v463
        %v845 = vpack.c.bf16 %v466, %v465
        %v846 = vpack.c.bf16 %v468, %v467
        %v847 = vpack.c.bf16 %v470, %v469
        %v848 = vpack.c.bf16 %v472, %v471
        %v849 = vpack.c.bf16 %v474, %v473
        %v850 = vpack.c.bf16 %v476, %v475
        %v851 = vpack.c.bf16 %v478, %v477
        %v852 = vpack.c.bf16 %v480, %v479
        %v853 = vpack.c.bf16 %v482, %v481
        %v854 = vpack.c.bf16 %v484, %v483
        %v855 = vpack.c.bf16 %v486, %v485
        %v856 = vpack.c.bf16 %v488, %v487
        %v857 = vpack.c.bf16 %v490, %v489
        %v858 = vpack.c.bf16 %v492, %v491
        %v859 = vpack.c.bf16 %v494, %v493
        %v860 = vpack.c.bf16 %v496, %v495
        %v861 = vpack.c.bf16 %v498, %v497
        %v862 = vpack.c.bf16 %v500, %v499
        %v863 = vpack.c.bf16 %v502, %v501
        %v864 = vpack.c.bf16 %v504, %v503
        %v865 = vpack.c.bf16 %v506, %v505
        %v866 = vpack.c.bf16 %v508, %v507
        %v867 = vpack.c.bf16 %v510, %v509
        %v868 = vpack.c.bf16 %v512, %v511
        %v869 = vpack.c.bf16 %v514, %v513
        %v870 = vpack.c.bf16 %v516, %v515
        %v871 = vpack.c.bf16 %v518, %v517
        %v872 = vpack.c.bf16 %v520, %v519
        %v873 = vpack.c.bf16 %v522, %v521
        %v874 = vpack.c.bf16 %v524, %v523
        %v875 = vpack.c.bf16 %v526, %v525
        %v876 = vpack.c.bf16 %v528, %v527
        %v877 = vpack.c.bf16 %v530, %v529
        %v878 = vpack.c.bf16 %v532, %v531
        %v879 = vpack.c.bf16 %v534, %v533
        %v880 = vpack.c.bf16 %v536, %v535
        %v881 = vpack.c.bf16 %v538, %v537
        %v882 = vpack.c.bf16 %v540, %v539
        %v883 = vpack.c.bf16 %v542, %v541
        %v884 = vpack.c.bf16 %v544, %v543
        %v885 = vpack.c.bf16 %v546, %v545
        %v886 = vpack.c.bf16 %v548, %v547
        %v887 = vpack.c.bf16 %v550, %v549
        %v888 = vpack.c.bf16 %v552, %v551
        %v889 = vpack.c.bf16 %v554, %v553
        %v890 = vpack.c.bf16 %v556, %v555
        %v891 = vpack.c.bf16 %v558, %v557
        %v892 = vpack.c.bf16 %v560, %v559
        %v893 = vpack.c.bf16 %v562, %v561
        %v894 = vpack.c.bf16 %v564, %v563
        %v895 = vpack.c.bf16 %v566, %v565
        %v896 = vpack.c.bf16 %v568, %v567
        %v897 = vpack.c.bf16 %v570, %v569
        %v898 = vpack.c.bf16 %v572, %v571
        %v899 = vpack.c.bf16 %v574, %v573
        %v900 = vpack.c.bf16 %v576, %v575
        %v901 = vpack.c.bf16 %v578, %v577
        %v902 = vpack.c.bf16 %v580, %v579
        %v903 = vpack.c.bf16 %v582, %v581
        %v904 = vpack.c.bf16 %v584, %v583
        %v905 = vpack.c.bf16 %v586, %v585
        %v906 = vpack.c.bf16 %v588, %v587
        %v907 = vpack.c.bf16 %v590, %v589
        %v908 = vpack.c.bf16 %v592, %v591
        %v909 = vpack.c.bf16 %v594, %v593
        %v910 = vpack.c.bf16 %v596, %v595
        %v911 = vpack.c.bf16 %v598, %v597
        %v912 = vpack.c.bf16 %v600, %v599
        %v913 = vpack.c.bf16 %v602, %v601
        %v914 = vpack.c.bf16 %v604, %v603
        %v915 = vpack.c.bf16 %v606, %v605
        %v916 = vpack.c.bf16 %v608, %v607
        %v917 = vpack.c.bf16 %v610, %v609
        %v918 = vpack.c.bf16 %v612, %v611
        %v919 = vpack.c.bf16 %v614, %v613
        %v920 = vpack.c.bf16 %v616, %v615
        %v921 = vpack.c.bf16 %v618, %v617
        %v922 = vpack.c.bf16 %v620, %v619
        %v923 = vpack.c.bf16 %v622, %v621
        %v924 = vpack.c.bf16 %v624, %v623
        %v925 = vpack.c.bf16 %v626, %v625
        %v926 = vpack.c.bf16 %v628, %v627
        %v927 = vpack.c.bf16 %v630, %v629
        %v928 = vpack.c.bf16 %v632, %v631
        %v929 = vpack.c.bf16 %v634, %v633
        %v930 = vpack.c.bf16 %v636, %v635
        %v931 = vpack.c.bf16 %v638, %v637
        %v932 = vpack.c.bf16 %v640, %v639
        %v933 = vpack.c.bf16 %v642, %v641
        %v934 = vpack.c.bf16 %v644, %v643
        %v935 = vpack.c.bf16 %v646, %v645
        %v936 = vpack.c.bf16 %v648, %v647
        %v937 = vpack.c.bf16 %v650, %v649
        %v938 = vpack.c.bf16 %v652, %v651
        %v939 = vpack.c.bf16 %v654, %v653
        %v940 = vpack.c.bf16 %v656, %v655
        %v941 = vpack.c.bf16 %v658, %v657
        %v942 = vpack.c.bf16 %v660, %v659
        %v943 = vpack.c.bf16 %v662, %v661
        %v944 = vpack.c.bf16 %v664, %v663
        %v945 = vpack.c.bf16 %v666, %v665
        %v946 = vpack.c.bf16 %v668, %v667
        %v947 = vpack.c.bf16 %v670, %v669
        %v948 = vpack.c.bf16 %v672, %v671
        %v949 = vpack.c.bf16 %v674, %v673
        %v950 = vpack.c.bf16 %v676, %v675
        %v951 = vpack.c.bf16 %v678, %v677
        %v952 = vpack.c.bf16 %v680, %v679
        %v953 = vpack.c.bf16 %v682, %v681
        %v954 = vpack.c.bf16 %v684, %v683
        %v955 = vpack.c.bf16 %v686, %v685
        %v956 = vpack.c.bf16 %v688, %v687
        %v957 = vpack.c.bf16 %v690, %v689
        %v958 = vpack.c.bf16 %v692, %v691
        %v959 = vpack.c.bf16 %v694, %v693
        %v960 = vpack.c.bf16 %v696, %v695
        %v961 = vpack.c.bf16 %v698, %v697
        %v962 = vpack.c.bf16 %v700, %v699
        %v963 = vpack.c.bf16 %v702, %v701
        %v964 = vpack.c.bf16 %v704, %v703
        %v965 = vpack.c.bf16 %v706, %v705
        %v966 = vpack.c.bf16 %v708, %v707
        %v967 = vpack.c.bf16 %v710, %v709
        %v968 = vpack.c.bf16 %v712, %v711
        %969 = vst [vmem:[%s183] sm:$0xff] %v713
        %970 = vst [vmem:[%s183 + $0x8] sm:$0xff] %v714
        %971 = vst [vmem:[%s183 + $0x10] sm:$0xff] %v715
        %972 = vst [vmem:[%s183 + $0x18] sm:$0xff] %v716
        %973 = vst [vmem:[%s183 + $0x20] sm:$0xff] %v717
        %974 = vst [vmem:[%s183 + $0x28] sm:$0xff] %v718
        %975 = vst [vmem:[%s183 + $0x30] sm:$0xff] %v719
        %976 = vst [vmem:[%s183 + $0x38] sm:$0xff] %v720
        %977 = vst [vmem:[%s183 + $0x40] sm:$0xff] %v721
        %978 = vst [vmem:[%s183 + $0x48] sm:$0xff] %v722
        %979 = vst [vmem:[%s183 + $0x50] sm:$0xff] %v723
        %980 = vst [vmem:[%s183 + $0x58] sm:$0xff] %v724
        %981 = vst [vmem:[%s183 + $0x60] sm:$0xff] %v725
        %982 = vst [vmem:[%s183 + $0x68] sm:$0xff] %v726
        %983 = vst [vmem:[%s183 + $0x70] sm:$0xff] %v727
        %984 = vst [vmem:[%s183 + $0x78] sm:$0xff] %v728
        %985 = vst [vmem:[%s183 + $0x80] sm:$0xff] %v729
        %986 = vst [vmem:[%s183 + $0x88] sm:$0xff] %v730
        %987 = vst [vmem:[%s183 + $0x90] sm:$0xff] %v731
        %988 = vst [vmem:[%s183 + $0x98] sm:$0xff] %v732
        %989 = vst [vmem:[%s183 + $0xa0] sm:$0xff] %v733
        %990 = vst [vmem:[%s183 + $0xa8] sm:$0xff] %v734
        %991 = vst [vmem:[%s183 + $0xb0] sm:$0xff] %v735
        %992 = vst [vmem:[%s183 + $0xb8] sm:$0xff] %v736
        %993 = vst [vmem:[%s183 + $0xc0] sm:$0xff] %v737
        %994 = vst [vmem:[%s183 + $0xc8] sm:$0xff] %v738
        %995 = vst [vmem:[%s183 + $0xd0] sm:$0xff] %v739
        %996 = vst [vmem:[%s183 + $0xd8] sm:$0xff] %v740
        %997 = vst [vmem:[%s183 + $0xe0] sm:$0xff] %v741
        %998 = vst [vmem:[%s183 + $0xe8] sm:$0xff] %v742
        %999 = vst [vmem:[%s183 + $0xf0] sm:$0xff] %v743
        %1000 = vst [vmem:[%s183 + $0xf8] sm:$0xff] %v744
        %1001 = vst [vmem:[%s183 + $0x100] sm:$0xff] %v745
        %1002 = vst [vmem:[%s183 + $0x108] sm:$0xff] %v746
        %1003 = vst [vmem:[%s183 + $0x110] sm:$0xff] %v747
        %1004 = vst [vmem:[%s183 + $0x118] sm:$0xff] %v748
        %1005 = vst [vmem:[%s183 + $0x120] sm:$0xff] %v749
        %1006 = vst [vmem:[%s183 + $0x128] sm:$0xff] %v750
        %1007 = vst [vmem:[%s183 + $0x130] sm:$0xff] %v751
        %1008 = vst [vmem:[%s183 + $0x138] sm:$0xff] %v752
        %1009 = vst [vmem:[%s183 + $0x140] sm:$0xff] %v753
        %1010 = vst [vmem:[%s183 + $0x148] sm:$0xff] %v754
        %1011 = vst [vmem:[%s183 + $0x150] sm:$0xff] %v755
        %1012 = vst [vmem:[%s183 + $0x158] sm:$0xff] %v756
        %1013 = vst [vmem:[%s183 + $0x160] sm:$0xff] %v757
        %1014 = vst [vmem:[%s183 + $0x168] sm:$0xff] %v758
        %1015 = vst [vmem:[%s183 + $0x170] sm:$0xff] %v759
        %1016 = vst [vmem:[%s183 + $0x178] sm:$0xff] %v760
        %1017 = vst [vmem:[%s183 + $0x180] sm:$0xff] %v761
        %1018 = vst [vmem:[%s183 + $0x188] sm:$0xff] %v762
        %1019 = vst [vmem:[%s183 + $0x190] sm:$0xff] %v763
        %1020 = vst [vmem:[%s183 + $0x198] sm:$0xff] %v764
        %1021 = vst [vmem:[%s183 + $0x1a0] sm:$0xff] %v765
        %1022 = vst [vmem:[%s183 + $0x1a8] sm:$0xff] %v766
        %1023 = vst [vmem:[%s183 + $0x1b0] sm:$0xff] %v767
        %1024 = vst [vmem:[%s183 + $0x1b8] sm:$0xff] %v768
        %1025 = vst [vmem:[%s183 + $0x1c0] sm:$0xff] %v769
        %1026 = vst [vmem:[%s183 + $0x1c8] sm:$0xff] %v770
        %1027 = vst [vmem:[%s183 + $0x1d0] sm:$0xff] %v771
        %1028 = vst [vmem:[%s183 + $0x1d8] sm:$0xff] %v772
        %1029 = vst [vmem:[%s183 + $0x1e0] sm:$0xff] %v773
        %1030 = vst [vmem:[%s183 + $0x1e8] sm:$0xff] %v774
        %1031 = vst [vmem:[%s183 + $0x1f0] sm:$0xff] %v775
        %1032 = vst [vmem:[%s183 + $0x1f8] sm:$0xff] %v776
        %1033 = vst [vmem:[%s183 + $0x200] sm:$0xff] %v777
        %1034 = vst [vmem:[%s183 + $0x208] sm:$0xff] %v778
        %1035 = vst [vmem:[%s183 + $0x210] sm:$0xff] %v779
        %1036 = vst [vmem:[%s183 + $0x218] sm:$0xff] %v780
        %1037 = vst [vmem:[%s183 + $0x220] sm:$0xff] %v781
        %1038 = vst [vmem:[%s183 + $0x228] sm:$0xff] %v782
        %1039 = vst [vmem:[%s183 + $0x230] sm:$0xff] %v783
        %1040 = vst [vmem:[%s183 + $0x238] sm:$0xff] %v784
        %1041 = vst [vmem:[%s183 + $0x240] sm:$0xff] %v785
        %1042 = vst [vmem:[%s183 + $0x248] sm:$0xff] %v786
        %1043 = vst [vmem:[%s183 + $0x250] sm:$0xff] %v787
        %1044 = vst [vmem:[%s183 + $0x258] sm:$0xff] %v788
        %1045 = vst [vmem:[%s183 + $0x260] sm:$0xff] %v789
        %1046 = vst [vmem:[%s183 + $0x268] sm:$0xff] %v790
        %1047 = vst [vmem:[%s183 + $0x270] sm:$0xff] %v791
        %1048 = vst [vmem:[%s183 + $0x278] sm:$0xff] %v792
        %1049 = vst [vmem:[%s183 + $0x280] sm:$0xff] %v793
        %1050 = vst [vmem:[%s183 + $0x288] sm:$0xff] %v794
        %1051 = vst [vmem:[%s183 + $0x290] sm:$0xff] %v795
        %1052 = vst [vmem:[%s183 + $0x298] sm:$0xff] %v796
        %1053 = vst [vmem:[%s183 + $0x2a0] sm:$0xff] %v797
        %1054 = vst [vmem:[%s183 + $0x2a8] sm:$0xff] %v798
        %1055 = vst [vmem:[%s183 + $0x2b0] sm:$0xff] %v799
        %1056 = vst [vmem:[%s183 + $0x2b8] sm:$0xff] %v800
        %1057 = vst [vmem:[%s183 + $0x2c0] sm:$0xff] %v801
        %1058 = vst [vmem:[%s183 + $0x2c8] sm:$0xff] %v802
        %1059 = vst [vmem:[%s183 + $0x2d0] sm:$0xff] %v803
        %1060 = vst [vmem:[%s183 + $0x2d8] sm:$0xff] %v804
        %1061 = vst [vmem:[%s183 + $0x2e0] sm:$0xff] %v805
        %1062 = vst [vmem:[%s183 + $0x2e8] sm:$0xff] %v806
        %1063 = vst [vmem:[%s183 + $0x2f0] sm:$0xff] %v807
        %1064 = vst [vmem:[%s183 + $0x2f8] sm:$0xff] %v808
        %1065 = vst [vmem:[%s183 + $0x300] sm:$0xff] %v809
        %1066 = vst [vmem:[%s183 + $0x308] sm:$0xff] %v810
        %1067 = vst [vmem:[%s183 + $0x310] sm:$0xff] %v811
        %1068 = vst [vmem:[%s183 + $0x318] sm:$0xff] %v812
        %1069 = vst [vmem:[%s183 + $0x320] sm:$0xff] %v813
        %1070 = vst [vmem:[%s183 + $0x328] sm:$0xff] %v814
        %1071 = vst [vmem:[%s183 + $0x330] sm:$0xff] %v815
        %1072 = vst [vmem:[%s183 + $0x338] sm:$0xff] %v816
        %1073 = vst [vmem:[%s183 + $0x340] sm:$0xff] %v817
        %1074 = vst [vmem:[%s183 + $0x348] sm:$0xff] %v818
        %1075 = vst [vmem:[%s183 + $0x350] sm:$0xff] %v819
        %1076 = vst [vmem:[%s183 + $0x358] sm:$0xff] %v820
        %1077 = vst [vmem:[%s183 + $0x360] sm:$0xff] %v821
        %1078 = vst [vmem:[%s183 + $0x368] sm:$0xff] %v822
        %1079 = vst [vmem:[%s183 + $0x370] sm:$0xff] %v823
        %1080 = vst [vmem:[%s183 + $0x378] sm:$0xff] %v824
        %1081 = vst [vmem:[%s183 + $0x380] sm:$0xff] %v825
        %1082 = vst [vmem:[%s183 + $0x388] sm:$0xff] %v826
        %1083 = vst [vmem:[%s183 + $0x390] sm:$0xff] %v827
        %1084 = vst [vmem:[%s183 + $0x398] sm:$0xff] %v828
        %1085 = vst [vmem:[%s183 + $0x3a0] sm:$0xff] %v829
        %1086 = vst [vmem:[%s183 + $0x3a8] sm:$0xff] %v830
        %1087 = vst [vmem:[%s183 + $0x3b0] sm:$0xff] %v831
        %1088 = vst [vmem:[%s183 + $0x3b8] sm:$0xff] %v832
        %1089 = vst [vmem:[%s183 + $0x3c0] sm:$0xff] %v833
        %1090 = vst [vmem:[%s183 + $0x3c8] sm:$0xff] %v834
        %1091 = vst [vmem:[%s183 + $0x3d0] sm:$0xff] %v835
        %1092 = vst [vmem:[%s183 + $0x3d8] sm:$0xff] %v836
        %1093 = vst [vmem:[%s183 + $0x3e0] sm:$0xff] %v837
        %1094 = vst [vmem:[%s183 + $0x3e8] sm:$0xff] %v838
        %1095 = vst [vmem:[%s183 + $0x3f0] sm:$0xff] %v839
        %1096 = vst [vmem:[%s183 + $0x3f8] sm:$0xff] %v840
        %1097 = vst [vmem:[%s183 + $0x400] sm:$0xff] %v841
        %1098 = vst [vmem:[%s183 + $0x408] sm:$0xff] %v842
        %1099 = vst [vmem:[%s183 + $0x410] sm:$0xff] %v843
        %1100 = vst [vmem:[%s183 + $0x418] sm:$0xff] %v844
        %1101 = vst [vmem:[%s183 + $0x420] sm:$0xff] %v845
        %1102 = vst [vmem:[%s183 + $0x428] sm:$0xff] %v846
        %1103 = vst [vmem:[%s183 + $0x430] sm:$0xff] %v847
        %1104 = vst [vmem:[%s183 + $0x438] sm:$0xff] %v848
        %1105 = vst [vmem:[%s183 + $0x440] sm:$0xff] %v849
        %1106 = vst [vmem:[%s183 + $0x448] sm:$0xff] %v850
        %1107 = vst [vmem:[%s183 + $0x450] sm:$0xff] %v851
        %1108 = vst [vmem:[%s183 + $0x458] sm:$0xff] %v852
        %1109 = vst [vmem:[%s183 + $0x460] sm:$0xff] %v853
        %1110 = vst [vmem:[%s183 + $0x468] sm:$0xff] %v854
        %1111 = vst [vmem:[%s183 + $0x470] sm:$0xff] %v855
        %1112 = vst [vmem:[%s183 + $0x478] sm:$0xff] %v856
        %1113 = vst [vmem:[%s183 + $0x480] sm:$0xff] %v857
        %1114 = vst [vmem:[%s183 + $0x488] sm:$0xff] %v858
        %1115 = vst [vmem:[%s183 + $0x490] sm:$0xff] %v859
        %1116 = vst [vmem:[%s183 + $0x498] sm:$0xff] %v860
        %1117 = vst [vmem:[%s183 + $0x4a0] sm:$0xff] %v861
        %1118 = vst [vmem:[%s183 + $0x4a8] sm:$0xff] %v862
        %1119 = vst [vmem:[%s183 + $0x4b0] sm:$0xff] %v863
        %1120 = vst [vmem:[%s183 + $0x4b8] sm:$0xff] %v864
        %1121 = vst [vmem:[%s183 + $0x4c0] sm:$0xff] %v865
        %1122 = vst [vmem:[%s183 + $0x4c8] sm:$0xff] %v866
        %1123 = vst [vmem:[%s183 + $0x4d0] sm:$0xff] %v867
        %1124 = vst [vmem:[%s183 + $0x4d8] sm:$0xff] %v868
        %1125 = vst [vmem:[%s183 + $0x4e0] sm:$0xff] %v869
        %1126 = vst [vmem:[%s183 + $0x4e8] sm:$0xff] %v870
        %1127 = vst [vmem:[%s183 + $0x4f0] sm:$0xff] %v871
        %1128 = vst [vmem:[%s183 + $0x4f8] sm:$0xff] %v872
        %1129 = vst [vmem:[%s183 + $0x500] sm:$0xff] %v873
        %1130 = vst [vmem:[%s183 + $0x508] sm:$0xff] %v874
        %1131 = vst [vmem:[%s183 + $0x510] sm:$0xff] %v875
        %1132 = vst [vmem:[%s183 + $0x518] sm:$0xff] %v876
        %1133 = vst [vmem:[%s183 + $0x520] sm:$0xff] %v877
        %1134 = vst [vmem:[%s183 + $0x528] sm:$0xff] %v878
        %1135 = vst [vmem:[%s183 + $0x530] sm:$0xff] %v879
        %1136 = vst [vmem:[%s183 + $0x538] sm:$0xff] %v880
        %1137 = vst [vmem:[%s183 + $0x540] sm:$0xff] %v881
        %1138 = vst [vmem:[%s183 + $0x548] sm:$0xff] %v882
        %1139 = vst [vmem:[%s183 + $0x550] sm:$0xff] %v883
        %1140 = vst [vmem:[%s183 + $0x558] sm:$0xff] %v884
        %1141 = vst [vmem:[%s183 + $0x560] sm:$0xff] %v885
        %1142 = vst [vmem:[%s183 + $0x568] sm:$0xff] %v886
        %1143 = vst [vmem:[%s183 + $0x570] sm:$0xff] %v887
        %1144 = vst [vmem:[%s183 + $0x578] sm:$0xff] %v888
        %1145 = vst [vmem:[%s183 + $0x580] sm:$0xff] %v889
        %1146 = vst [vmem:[%s183 + $0x588] sm:$0xff] %v890
        %1147 = vst [vmem:[%s183 + $0x590] sm:$0xff] %v891
        %1148 = vst [vmem:[%s183 + $0x598] sm:$0xff] %v892
        %1149 = vst [vmem:[%s183 + $0x5a0] sm:$0xff] %v893
        %1150 = vst [vmem:[%s183 + $0x5a8] sm:$0xff] %v894
        %1151 = vst [vmem:[%s183 + $0x5b0] sm:$0xff] %v895
        %1152 = vst [vmem:[%s183 + $0x5b8] sm:$0xff] %v896
        %1153 = vst [vmem:[%s183 + $0x5c0] sm:$0xff] %v897
        %1154 = vst [vmem:[%s183 + $0x5c8] sm:$0xff] %v898
        %1155 = vst [vmem:[%s183 + $0x5d0] sm:$0xff] %v899
        %1156 = vst [vmem:[%s183 + $0x5d8] sm:$0xff] %v900
        %1157 = vst [vmem:[%s183 + $0x5e0] sm:$0xff] %v901
        %1158 = vst [vmem:[%s183 + $0x5e8] sm:$0xff] %v902
        %1159 = vst [vmem:[%s183 + $0x5f0] sm:$0xff] %v903
        %1160 = vst [vmem:[%s183 + $0x5f8] sm:$0xff] %v904
        %1161 = vst [vmem:[%s183 + $0x600] sm:$0xff] %v905
        %1162 = vst [vmem:[%s183 + $0x608] sm:$0xff] %v906
        %1163 = vst [vmem:[%s183 + $0x610] sm:$0xff] %v907
        %1164 = vst [vmem:[%s183 + $0x618] sm:$0xff] %v908
        %1165 = vst [vmem:[%s183 + $0x620] sm:$0xff] %v909
        %1166 = vst [vmem:[%s183 + $0x628] sm:$0xff] %v910
        %1167 = vst [vmem:[%s183 + $0x630] sm:$0xff] %v911
        %1168 = vst [vmem:[%s183 + $0x638] sm:$0xff] %v912
        %1169 = vst [vmem:[%s183 + $0x640] sm:$0xff] %v913
        %1170 = vst [vmem:[%s183 + $0x648] sm:$0xff] %v914
        %1171 = vst [vmem:[%s183 + $0x650] sm:$0xff] %v915
        %1172 = vst [vmem:[%s183 + $0x658] sm:$0xff] %v916
        %1173 = vst [vmem:[%s183 + $0x660] sm:$0xff] %v917
        %1174 = vst [vmem:[%s183 + $0x668] sm:$0xff] %v918
        %1175 = vst [vmem:[%s183 + $0x670] sm:$0xff] %v919
        %1176 = vst [vmem:[%s183 + $0x678] sm:$0xff] %v920
        %1177 = vst [vmem:[%s183 + $0x680] sm:$0xff] %v921
        %1178 = vst [vmem:[%s183 + $0x688] sm:$0xff] %v922
        %1179 = vst [vmem:[%s183 + $0x690] sm:$0xff] %v923
        %1180 = vst [vmem:[%s183 + $0x698] sm:$0xff] %v924
        %1181 = vst [vmem:[%s183 + $0x6a0] sm:$0xff] %v925
        %1182 = vst [vmem:[%s183 + $0x6a8] sm:$0xff] %v926
        %1183 = vst [vmem:[%s183 + $0x6b0] sm:$0xff] %v927
        %1184 = vst [vmem:[%s183 + $0x6b8] sm:$0xff] %v928
        %1185 = vst [vmem:[%s183 + $0x6c0] sm:$0xff] %v929
        %1186 = vst [vmem:[%s183 + $0x6c8] sm:$0xff] %v930
        %1187 = vst [vmem:[%s183 + $0x6d0] sm:$0xff] %v931
        %1188 = vst [vmem:[%s183 + $0x6d8] sm:$0xff] %v932
        %1189 = vst [vmem:[%s183 + $0x6e0] sm:$0xff] %v933
        %1190 = vst [vmem:[%s183 + $0x6e8] sm:$0xff] %v934
        %1191 = vst [vmem:[%s183 + $0x6f0] sm:$0xff] %v935
        %1192 = vst [vmem:[%s183 + $0x6f8] sm:$0xff] %v936
        %1193 = vst [vmem:[%s183 + $0x700] sm:$0xff] %v937
        %1194 = vst [vmem:[%s183 + $0x708] sm:$0xff] %v938
        %1195 = vst [vmem:[%s183 + $0x710] sm:$0xff] %v939
        %1196 = vst [vmem:[%s183 + $0x718] sm:$0xff] %v940
        %1197 = vst [vmem:[%s183 + $0x720] sm:$0xff] %v941
        %1198 = vst [vmem:[%s183 + $0x728] sm:$0xff] %v942
        %1199 = vst [vmem:[%s183 + $0x730] sm:$0xff] %v943
        %1200 = vst [vmem:[%s183 + $0x738] sm:$0xff] %v944
        %1201 = vst [vmem:[%s183 + $0x740] sm:$0xff] %v945
        %1202 = vst [vmem:[%s183 + $0x748] sm:$0xff] %v946
        %1203 = vst [vmem:[%s183 + $0x750] sm:$0xff] %v947
        %1204 = vst [vmem:[%s183 + $0x758] sm:$0xff] %v948
        %1205 = vst [vmem:[%s183 + $0x760] sm:$0xff] %v949
        %1206 = vst [vmem:[%s183 + $0x768] sm:$0xff] %v950
        %1207 = vst [vmem:[%s183 + $0x770] sm:$0xff] %v951
        %1208 = vst [vmem:[%s183 + $0x778] sm:$0xff] %v952
        %1209 = vst [vmem:[%s183 + $0x780] sm:$0xff] %v953
        %1210 = vst [vmem:[%s183 + $0x788] sm:$0xff] %v954
        %1211 = vst [vmem:[%s183 + $0x790] sm:$0xff] %v955
        %1212 = vst [vmem:[%s183 + $0x798] sm:$0xff] %v956
        %1213 = vst [vmem:[%s183 + $0x7a0] sm:$0xff] %v957
        %1214 = vst [vmem:[%s183 + $0x7a8] sm:$0xff] %v958
        %1215 = vst [vmem:[%s183 + $0x7b0] sm:$0xff] %v959
        %1216 = vst [vmem:[%s183 + $0x7b8] sm:$0xff] %v960
        %1217 = vst [vmem:[%s183 + $0x7c0] sm:$0xff] %v961
        %1218 = vst [vmem:[%s183 + $0x7c8] sm:$0xff] %v962
        %1219 = vst [vmem:[%s183 + $0x7d0] sm:$0xff] %v963
        %1220 = vst [vmem:[%s183 + $0x7d8] sm:$0xff] %v964
        %1221 = vst [vmem:[%s183 + $0x7e0] sm:$0xff] %v965
        %1222 = vst [vmem:[%s183 + $0x7e8] sm:$0xff] %v966
        %1223 = vst [vmem:[%s183 + $0x7f0] sm:$0xff] %v967
        %1224 = vst [vmem:[%s183 + $0x7f8] sm:$0xff] %v968
        %v1225 = vadd.f32 %v201, %v202
        %v1226 = vadd.f32 %v1225, %v203
        %v1227 = vadd.f32 %v1226, %v204
        %v1228 = vadd.f32 %v1227, %v205
        %v1229 = vadd.f32 %v1228, %v206
        %v1230 = vadd.f32 %v1229, %v207
        %v1231 = vadd.f32 %v1230, %v208
        %1232 = vadd.xlane.f32.xlu0 %v1231
        %v1233 = vpop.xlane.xlu0 %1232
        %v1234 = vadd.f32 %v209, %v210
        %v1235 = vadd.f32 %v1234, %v211
        %v1236 = vadd.f32 %v1235, %v212
        %v1237 = vadd.f32 %v1236, %v213
        %v1238 = vadd.f32 %v1237, %v214
        %v1239 = vadd.f32 %v1238, %v215
        %v1240 = vadd.f32 %v1239, %v216
        %1241 = vadd.xlane.f32.xlu0 %v1240
        %v1242 = vpop.xlane.xlu0 %1241
        %v1243 = vadd.f32 %v217, %v218
        %v1244 = vadd.f32 %v1243, %v219
        %v1245 = vadd.f32 %v1244, %v220
        %v1246 = vadd.f32 %v1245, %v221
        %v1247 = vadd.f32 %v1246, %v222
        %v1248 = vadd.f32 %v1247, %v223
        %v1249 = vadd.f32 %v1248, %v224
        %1250 = vadd.xlane.f32.xlu0 %v1249
        %v1251 = vpop.xlane.xlu0 %1250
        %v1252 = vadd.f32 %v225, %v226
        %v1253 = vadd.f32 %v1252, %v227
        %v1254 = vadd.f32 %v1253, %v228
        %v1255 = vadd.f32 %v1254, %v229
        %v1256 = vadd.f32 %v1255, %v230
        %v1257 = vadd.f32 %v1256, %v231
        %v1258 = vadd.f32 %v1257, %v232
        %1259 = vadd.xlane.f32.xlu0 %v1258
        %v1260 = vpop.xlane.xlu0 %1259
        %v1261 = vadd.f32 %v233, %v234
        %v1262 = vadd.f32 %v1261, %v235
        %v1263 = vadd.f32 %v1262, %v236
        %v1264 = vadd.f32 %v1263, %v237
        %v1265 = vadd.f32 %v1264, %v238
        %v1266 = vadd.f32 %v1265, %v239
        %v1267 = vadd.f32 %v1266, %v240
        %1268 = vadd.xlane.f32.xlu0 %v1267
        %v1269 = vpop.xlane.xlu0 %1268
        %v1270 = vadd.f32 %v241, %v242
        %v1271 = vadd.f32 %v1270, %v243
        %v1272 = vadd.f32 %v1271, %v244
        %v1273 = vadd.f32 %v1272, %v245
        %v1274 = vadd.f32 %v1273, %v246
        %v1275 = vadd.f32 %v1274, %v247
        %v1276 = vadd.f32 %v1275, %v248
        %1277 = vadd.xlane.f32.xlu0 %v1276
        %v1278 = vpop.xlane.xlu0 %1277
        %v1279 = vadd.f32 %v249, %v250
        %v1280 = vadd.f32 %v1279, %v251
        %v1281 = vadd.f32 %v1280, %v252
        %v1282 = vadd.f32 %v1281, %v253
        %v1283 = vadd.f32 %v1282, %v254
        %v1284 = vadd.f32 %v1283, %v255
        %v1285 = vadd.f32 %v1284, %v256
        %1286 = vadd.xlane.f32.xlu0 %v1285
        %v1287 = vpop.xlane.xlu0 %1286
        %v1288 = vadd.f32 %v257, %v258
        %v1289 = vadd.f32 %v1288, %v259
        %v1290 = vadd.f32 %v1289, %v260
        %v1291 = vadd.f32 %v1290, %v261
        %v1292 = vadd.f32 %v1291, %v262
        %v1293 = vadd.f32 %v1292, %v263
        %v1294 = vadd.f32 %v1293, %v264
        %1295 = vadd.xlane.f32.xlu0 %v1294
        %v1296 = vpop.xlane.xlu0 %1295
        %v1297 = vadd.f32 %v265, %v266
        %v1298 = vadd.f32 %v1297, %v267
        %v1299 = vadd.f32 %v1298, %v268
        %v1300 = vadd.f32 %v1299, %v269
        %v1301 = vadd.f32 %v1300, %v270
        %v1302 = vadd.f32 %v1301, %v271
        %v1303 = vadd.f32 %v1302, %v272
        %1304 = vadd.xlane.f32.xlu0 %v1303
        %v1305 = vpop.xlane.xlu0 %1304
        %v1306 = vadd.f32 %v273, %v274
        %v1307 = vadd.f32 %v1306, %v275
        %v1308 = vadd.f32 %v1307, %v276
        %v1309 = vadd.f32 %v1308, %v277
        %v1310 = vadd.f32 %v1309, %v278
        %v1311 = vadd.f32 %v1310, %v279
        %v1312 = vadd.f32 %v1311, %v280
        %1313 = vadd.xlane.f32.xlu0 %v1312
        %v1314 = vpop.xlane.xlu0 %1313
        %v1315 = vadd.f32 %v281, %v282
        %v1316 = vadd.f32 %v1315, %v283
        %v1317 = vadd.f32 %v1316, %v284
        %v1318 = vadd.f32 %v1317, %v285
        %v1319 = vadd.f32 %v1318, %v286
        %v1320 = vadd.f32 %v1319, %v287
        %v1321 = vadd.f32 %v1320, %v288
        %1322 = vadd.xlane.f32.xlu0 %v1321
        %v1323 = vpop.xlane.xlu0 %1322
        %v1324 = vadd.f32 %v289, %v290
        %v1325 = vadd.f32 %v1324, %v291
        %v1326 = vadd.f32 %v1325, %v292
        %v1327 = vadd.f32 %v1326, %v293
        %v1328 = vadd.f32 %v1327, %v294
        %v1329 = vadd.f32 %v1328, %v295
        %v1330 = vadd.f32 %v1329, %v296
        %1331 = vadd.xlane.f32.xlu0 %v1330
        %v1332 = vpop.xlane.xlu0 %1331
        %v1333 = vadd.f32 %v297, %v298
        %v1334 = vadd.f32 %v1333, %v299
        %v1335 = vadd.f32 %v1334, %v300
        %v1336 = vadd.f32 %v1335, %v301
        %v1337 = vadd.f32 %v1336, %v302
        %v1338 = vadd.f32 %v1337, %v303
        %v1339 = vadd.f32 %v1338, %v304
        %1340 = vadd.xlane.f32.xlu0 %v1339
        %v1341 = vpop.xlane.xlu0 %1340
        %v1342 = vadd.f32 %v305, %v306
        %v1343 = vadd.f32 %v1342, %v307
        %v1344 = vadd.f32 %v1343, %v308
        %v1345 = vadd.f32 %v1344, %v309
        %v1346 = vadd.f32 %v1345, %v310
        %v1347 = vadd.f32 %v1346, %v311
        %v1348 = vadd.f32 %v1347, %v312
        %1349 = vadd.xlane.f32.xlu0 %v1348
        %v1350 = vpop.xlane.xlu0 %1349
        %v1351 = vadd.f32 %v313, %v314
        %v1352 = vadd.f32 %v1351, %v315
        %v1353 = vadd.f32 %v1352, %v316
        %v1354 = vadd.f32 %v1353, %v317
        %v1355 = vadd.f32 %v1354, %v318
        %v1356 = vadd.f32 %v1355, %v319
        %v1357 = vadd.f32 %v1356, %v320
        %1358 = vadd.xlane.f32.xlu0 %v1357
        %v1359 = vpop.xlane.xlu0 %1358
        %v1360 = vadd.f32 %v321, %v322
        %v1361 = vadd.f32 %v1360, %v323
        %v1362 = vadd.f32 %v1361, %v324
        %v1363 = vadd.f32 %v1362, %v325
        %v1364 = vadd.f32 %v1363, %v326
        %v1365 = vadd.f32 %v1364, %v327
        %v1366 = vadd.f32 %v1365, %v328
        %1367 = vadd.xlane.f32.xlu0 %v1366
        %v1368 = vpop.xlane.xlu0 %1367
        %v1369 = vadd.f32 %v329, %v330
        %v1370 = vadd.f32 %v1369, %v331
        %v1371 = vadd.f32 %v1370, %v332
        %v1372 = vadd.f32 %v1371, %v333
        %v1373 = vadd.f32 %v1372, %v334
        %v1374 = vadd.f32 %v1373, %v335
        %v1375 = vadd.f32 %v1374, %v336
        %1376 = vadd.xlane.f32.xlu0 %v1375
        %v1377 = vpop.xlane.xlu0 %1376
        %v1378 = vadd.f32 %v337, %v338
        %v1379 = vadd.f32 %v1378, %v339
        %v1380 = vadd.f32 %v1379, %v340
        %v1381 = vadd.f32 %v1380, %v341
        %v1382 = vadd.f32 %v1381, %v342
        %v1383 = vadd.f32 %v1382, %v343
        %v1384 = vadd.f32 %v1383, %v344
        %1385 = vadd.xlane.f32.xlu0 %v1384
        %v1386 = vpop.xlane.xlu0 %1385
        %v1387 = vadd.f32 %v345, %v346
        %v1388 = vadd.f32 %v1387, %v347
        %v1389 = vadd.f32 %v1388, %v348
        %v1390 = vadd.f32 %v1389, %v349
        %v1391 = vadd.f32 %v1390, %v350
        %v1392 = vadd.f32 %v1391, %v351
        %v1393 = vadd.f32 %v1392, %v352
        %1394 = vadd.xlane.f32.xlu0 %v1393
        %v1395 = vpop.xlane.xlu0 %1394
        %v1396 = vadd.f32 %v353, %v354
        %v1397 = vadd.f32 %v1396, %v355
        %v1398 = vadd.f32 %v1397, %v356
        %v1399 = vadd.f32 %v1398, %v357
        %v1400 = vadd.f32 %v1399, %v358
        %v1401 = vadd.f32 %v1400, %v359
        %v1402 = vadd.f32 %v1401, %v360
        %1403 = vadd.xlane.f32.xlu0 %v1402
        %v1404 = vpop.xlane.xlu0 %1403
        %v1405 = vadd.f32 %v361, %v362
        %v1406 = vadd.f32 %v1405, %v363
        %v1407 = vadd.f32 %v1406, %v364
        %v1408 = vadd.f32 %v1407, %v365
        %v1409 = vadd.f32 %v1408, %v366
        %v1410 = vadd.f32 %v1409, %v367
        %v1411 = vadd.f32 %v1410, %v368
        %1412 = vadd.xlane.f32.xlu0 %v1411
        %v1413 = vpop.xlane.xlu0 %1412
        %v1414 = vadd.f32 %v369, %v370
        %v1415 = vadd.f32 %v1414, %v371
        %v1416 = vadd.f32 %v1415, %v372
        %v1417 = vadd.f32 %v1416, %v373
        %v1418 = vadd.f32 %v1417, %v374
        %v1419 = vadd.f32 %v1418, %v375
        %v1420 = vadd.f32 %v1419, %v376
        %1421 = vadd.xlane.f32.xlu0 %v1420
        %v1422 = vpop.xlane.xlu0 %1421
        %v1423 = vadd.f32 %v377, %v378
        %v1424 = vadd.f32 %v1423, %v379
        %v1425 = vadd.f32 %v1424, %v380
        %v1426 = vadd.f32 %v1425, %v381
        %v1427 = vadd.f32 %v1426, %v382
        %v1428 = vadd.f32 %v1427, %v383
        %v1429 = vadd.f32 %v1428, %v384
        %1430 = vadd.xlane.f32.xlu0 %v1429
        %v1431 = vpop.xlane.xlu0 %1430
        %v1432 = vadd.f32 %v385, %v386
        %v1433 = vadd.f32 %v1432, %v387
        %v1434 = vadd.f32 %v1433, %v388
        %v1435 = vadd.f32 %v1434, %v389
        %v1436 = vadd.f32 %v1435, %v390
        %v1437 = vadd.f32 %v1436, %v391
        %v1438 = vadd.f32 %v1437, %v392
        %1439 = vadd.xlane.f32.xlu0 %v1438
        %v1440 = vpop.xlane.xlu0 %1439
        %v1441 = vadd.f32 %v393, %v394
        %v1442 = vadd.f32 %v1441, %v395
        %v1443 = vadd.f32 %v1442, %v396
        %v1444 = vadd.f32 %v1443, %v397
        %v1445 = vadd.f32 %v1444, %v398
        %v1446 = vadd.f32 %v1445, %v399
        %v1447 = vadd.f32 %v1446, %v400
        %1448 = vadd.xlane.f32.xlu0 %v1447
        %v1449 = vpop.xlane.xlu0 %1448
        %v1450 = vadd.f32 %v401, %v402
        %v1451 = vadd.f32 %v1450, %v403
        %v1452 = vadd.f32 %v1451, %v404
        %v1453 = vadd.f32 %v1452, %v405
        %v1454 = vadd.f32 %v1453, %v406
        %v1455 = vadd.f32 %v1454, %v407
        %v1456 = vadd.f32 %v1455, %v408
        %1457 = vadd.xlane.f32.xlu0 %v1456
        %v1458 = vpop.xlane.xlu0 %1457
        %v1459 = vadd.f32 %v409, %v410
        %v1460 = vadd.f32 %v1459, %v411
        %v1461 = vadd.f32 %v1460, %v412
        %v1462 = vadd.f32 %v1461, %v413
        %v1463 = vadd.f32 %v1462, %v414
        %v1464 = vadd.f32 %v1463, %v415
        %v1465 = vadd.f32 %v1464, %v416
        %1466 = vadd.xlane.f32.xlu0 %v1465
        %v1467 = vpop.xlane.xlu0 %1466
        %v1468 = vadd.f32 %v417, %v418
        %v1469 = vadd.f32 %v1468, %v419
        %v1470 = vadd.f32 %v1469, %v420
        %v1471 = vadd.f32 %v1470, %v421
        %v1472 = vadd.f32 %v1471, %v422
        %v1473 = vadd.f32 %v1472, %v423
        %v1474 = vadd.f32 %v1473, %v424
        %1475 = vadd.xlane.f32.xlu0 %v1474
        %v1476 = vpop.xlane.xlu0 %1475
        %v1477 = vadd.f32 %v425, %v426
        %v1478 = vadd.f32 %v1477, %v427
        %v1479 = vadd.f32 %v1478, %v428
        %v1480 = vadd.f32 %v1479, %v429
        %v1481 = vadd.f32 %v1480, %v430
        %v1482 = vadd.f32 %v1481, %v431
        %v1483 = vadd.f32 %v1482, %v432
        %1484 = vadd.xlane.f32.xlu0 %v1483
        %v1485 = vpop.xlane.xlu0 %1484
        %v1486 = vadd.f32 %v433, %v434
        %v1487 = vadd.f32 %v1486, %v435
        %v1488 = vadd.f32 %v1487, %v436
        %v1489 = vadd.f32 %v1488, %v437
        %v1490 = vadd.f32 %v1489, %v438
        %v1491 = vadd.f32 %v1490, %v439
        %v1492 = vadd.f32 %v1491, %v440
        %1493 = vadd.xlane.f32.xlu0 %v1492
        %v1494 = vpop.xlane.xlu0 %1493
        %v1495 = vadd.f32 %v441, %v442
        %v1496 = vadd.f32 %v1495, %v443
        %v1497 = vadd.f32 %v1496, %v444
        %v1498 = vadd.f32 %v1497, %v445
        %v1499 = vadd.f32 %v1498, %v446
        %v1500 = vadd.f32 %v1499, %v447
        %v1501 = vadd.f32 %v1500, %v448
        %1502 = vadd.xlane.f32.xlu0 %v1501
        %v1503 = vpop.xlane.xlu0 %1502
        %v1504 = vadd.f32 %v449, %v450
        %v1505 = vadd.f32 %v1504, %v451
        %v1506 = vadd.f32 %v1505, %v452
        %v1507 = vadd.f32 %v1506, %v453
        %v1508 = vadd.f32 %v1507, %v454
        %v1509 = vadd.f32 %v1508, %v455
        %v1510 = vadd.f32 %v1509, %v456
        %1511 = vadd.xlane.f32.xlu0 %v1510
        %v1512 = vpop.xlane.xlu0 %1511
        %v1513 = vadd.f32 %v457, %v458
        %v1514 = vadd.f32 %v1513, %v459
        %v1515 = vadd.f32 %v1514, %v460
        %v1516 = vadd.f32 %v1515, %v461
        %v1517 = vadd.f32 %v1516, %v462
        %v1518 = vadd.f32 %v1517, %v463
        %v1519 = vadd.f32 %v1518, %v464
        %1520 = vadd.xlane.f32.xlu0 %v1519
        %v1521 = vpop.xlane.xlu0 %1520
        %v1522 = vadd.f32 %v465, %v466
        %v1523 = vadd.f32 %v1522, %v467
        %v1524 = vadd.f32 %v1523, %v468
        %v1525 = vadd.f32 %v1524, %v469
        %v1526 = vadd.f32 %v1525, %v470
        %v1527 = vadd.f32 %v1526, %v471
        %v1528 = vadd.f32 %v1527, %v472
        %1529 = vadd.xlane.f32.xlu0 %v1528
        %v1530 = vpop.xlane.xlu0 %1529
        %v1531 = vadd.f32 %v473, %v474
        %v1532 = vadd.f32 %v1531, %v475
        %v1533 = vadd.f32 %v1532, %v476
        %v1534 = vadd.f32 %v1533, %v477
        %v1535 = vadd.f32 %v1534, %v478
        %v1536 = vadd.f32 %v1535, %v479
        %v1537 = vadd.f32 %v1536, %v480
        %1538 = vadd.xlane.f32.xlu0 %v1537
        %v1539 = vpop.xlane.xlu0 %1538
        %v1540 = vadd.f32 %v481, %v482
        %v1541 = vadd.f32 %v1540, %v483
        %v1542 = vadd.f32 %v1541, %v484
        %v1543 = vadd.f32 %v1542, %v485
        %v1544 = vadd.f32 %v1543, %v486
        %v1545 = vadd.f32 %v1544, %v487
        %v1546 = vadd.f32 %v1545, %v488
        %1547 = vadd.xlane.f32.xlu0 %v1546
        %v1548 = vpop.xlane.xlu0 %1547
        %v1549 = vadd.f32 %v489, %v490
        %v1550 = vadd.f32 %v1549, %v491
        %v1551 = vadd.f32 %v1550, %v492
        %v1552 = vadd.f32 %v1551, %v493
        %v1553 = vadd.f32 %v1552, %v494
        %v1554 = vadd.f32 %v1553, %v495
        %v1555 = vadd.f32 %v1554, %v496
        %1556 = vadd.xlane.f32.xlu0 %v1555
        %v1557 = vpop.xlane.xlu0 %1556
        %v1558 = vadd.f32 %v497, %v498
        %v1559 = vadd.f32 %v1558, %v499
        %v1560 = vadd.f32 %v1559, %v500
        %v1561 = vadd.f32 %v1560, %v501
        %v1562 = vadd.f32 %v1561, %v502
        %v1563 = vadd.f32 %v1562, %v503
        %v1564 = vadd.f32 %v1563, %v504
        %1565 = vadd.xlane.f32.xlu0 %v1564
        %v1566 = vpop.xlane.xlu0 %1565
        %v1567 = vadd.f32 %v505, %v506
        %v1568 = vadd.f32 %v1567, %v507
        %v1569 = vadd.f32 %v1568, %v508
        %v1570 = vadd.f32 %v1569, %v509
        %v1571 = vadd.f32 %v1570, %v510
        %v1572 = vadd.f32 %v1571, %v511
        %v1573 = vadd.f32 %v1572, %v512
        %1574 = vadd.xlane.f32.xlu0 %v1573
        %v1575 = vpop.xlane.xlu0 %1574
        %v1576 = vadd.f32 %v513, %v514
        %v1577 = vadd.f32 %v1576, %v515
        %v1578 = vadd.f32 %v1577, %v516
        %v1579 = vadd.f32 %v1578, %v517
        %v1580 = vadd.f32 %v1579, %v518
        %v1581 = vadd.f32 %v1580, %v519
        %v1582 = vadd.f32 %v1581, %v520
        %1583 = vadd.xlane.f32.xlu0 %v1582
        %v1584 = vpop.xlane.xlu0 %1583
        %v1585 = vadd.f32 %v521, %v522
        %v1586 = vadd.f32 %v1585, %v523
        %v1587 = vadd.f32 %v1586, %v524
        %v1588 = vadd.f32 %v1587, %v525
        %v1589 = vadd.f32 %v1588, %v526
        %v1590 = vadd.f32 %v1589, %v527
        %v1591 = vadd.f32 %v1590, %v528
        %1592 = vadd.xlane.f32.xlu0 %v1591
        %v1593 = vpop.xlane.xlu0 %1592
        %v1594 = vadd.f32 %v529, %v530
        %v1595 = vadd.f32 %v1594, %v531
        %v1596 = vadd.f32 %v1595, %v532
        %v1597 = vadd.f32 %v1596, %v533
        %v1598 = vadd.f32 %v1597, %v534
        %v1599 = vadd.f32 %v1598, %v535
        %v1600 = vadd.f32 %v1599, %v536
        %1601 = vadd.xlane.f32.xlu0 %v1600
        %v1602 = vpop.xlane.xlu0 %1601
        %v1603 = vadd.f32 %v537, %v538
        %v1604 = vadd.f32 %v1603, %v539
        %v1605 = vadd.f32 %v1604, %v540
        %v1606 = vadd.f32 %v1605, %v541
        %v1607 = vadd.f32 %v1606, %v542
        %v1608 = vadd.f32 %v1607, %v543
        %v1609 = vadd.f32 %v1608, %v544
        %1610 = vadd.xlane.f32.xlu0 %v1609
        %v1611 = vpop.xlane.xlu0 %1610
        %v1612 = vadd.f32 %v545, %v546
        %v1613 = vadd.f32 %v1612, %v547
        %v1614 = vadd.f32 %v1613, %v548
        %v1615 = vadd.f32 %v1614, %v549
        %v1616 = vadd.f32 %v1615, %v550
        %v1617 = vadd.f32 %v1616, %v551
        %v1618 = vadd.f32 %v1617, %v552
        %1619 = vadd.xlane.f32.xlu0 %v1618
        %v1620 = vpop.xlane.xlu0 %1619
        %v1621 = vadd.f32 %v553, %v554
        %v1622 = vadd.f32 %v1621, %v555
        %v1623 = vadd.f32 %v1622, %v556
        %v1624 = vadd.f32 %v1623, %v557
        %v1625 = vadd.f32 %v1624, %v558
        %v1626 = vadd.f32 %v1625, %v559
        %v1627 = vadd.f32 %v1626, %v560
        %1628 = vadd.xlane.f32.xlu0 %v1627
        %v1629 = vpop.xlane.xlu0 %1628
        %v1630 = vadd.f32 %v561, %v562
        %v1631 = vadd.f32 %v1630, %v563
        %v1632 = vadd.f32 %v1631, %v564
        %v1633 = vadd.f32 %v1632, %v565
        %v1634 = vadd.f32 %v1633, %v566
        %v1635 = vadd.f32 %v1634, %v567
        %v1636 = vadd.f32 %v1635, %v568
        %1637 = vadd.xlane.f32.xlu0 %v1636
        %v1638 = vpop.xlane.xlu0 %1637
        %v1639 = vadd.f32 %v569, %v570
        %v1640 = vadd.f32 %v1639, %v571
        %v1641 = vadd.f32 %v1640, %v572
        %v1642 = vadd.f32 %v1641, %v573
        %v1643 = vadd.f32 %v1642, %v574
        %v1644 = vadd.f32 %v1643, %v575
        %v1645 = vadd.f32 %v1644, %v576
        %1646 = vadd.xlane.f32.xlu0 %v1645
        %v1647 = vpop.xlane.xlu0 %1646
        %v1648 = vadd.f32 %v577, %v578
        %v1649 = vadd.f32 %v1648, %v579
        %v1650 = vadd.f32 %v1649, %v580
        %v1651 = vadd.f32 %v1650, %v581
        %v1652 = vadd.f32 %v1651, %v582
        %v1653 = vadd.f32 %v1652, %v583
        %v1654 = vadd.f32 %v1653, %v584
        %1655 = vadd.xlane.f32.xlu0 %v1654
        %v1656 = vpop.xlane.xlu0 %1655
        %v1657 = vadd.f32 %v585, %v586
        %v1658 = vadd.f32 %v1657, %v587
        %v1659 = vadd.f32 %v1658, %v588
        %v1660 = vadd.f32 %v1659, %v589
        %v1661 = vadd.f32 %v1660, %v590
        %v1662 = vadd.f32 %v1661, %v591
        %v1663 = vadd.f32 %v1662, %v592
        %1664 = vadd.xlane.f32.xlu0 %v1663
        %v1665 = vpop.xlane.xlu0 %1664
        %v1666 = vadd.f32 %v593, %v594
        %v1667 = vadd.f32 %v1666, %v595
        %v1668 = vadd.f32 %v1667, %v596
        %v1669 = vadd.f32 %v1668, %v597
        %v1670 = vadd.f32 %v1669, %v598
        %v1671 = vadd.f32 %v1670, %v599
        %v1672 = vadd.f32 %v1671, %v600
        %1673 = vadd.xlane.f32.xlu0 %v1672
        %v1674 = vpop.xlane.xlu0 %1673
        %v1675 = vadd.f32 %v601, %v602
        %v1676 = vadd.f32 %v1675, %v603
        %v1677 = vadd.f32 %v1676, %v604
        %v1678 = vadd.f32 %v1677, %v605
        %v1679 = vadd.f32 %v1678, %v606
        %v1680 = vadd.f32 %v1679, %v607
        %v1681 = vadd.f32 %v1680, %v608
        %1682 = vadd.xlane.f32.xlu0 %v1681
        %v1683 = vpop.xlane.xlu0 %1682
        %v1684 = vadd.f32 %v609, %v610
        %v1685 = vadd.f32 %v1684, %v611
        %v1686 = vadd.f32 %v1685, %v612
        %v1687 = vadd.f32 %v1686, %v613
        %v1688 = vadd.f32 %v1687, %v614
        %v1689 = vadd.f32 %v1688, %v615
        %v1690 = vadd.f32 %v1689, %v616
        %1691 = vadd.xlane.f32.xlu0 %v1690
        %v1692 = vpop.xlane.xlu0 %1691
        %v1693 = vadd.f32 %v617, %v618
        %v1694 = vadd.f32 %v1693, %v619
        %v1695 = vadd.f32 %v1694, %v620
        %v1696 = vadd.f32 %v1695, %v621
        %v1697 = vadd.f32 %v1696, %v622
        %v1698 = vadd.f32 %v1697, %v623
        %v1699 = vadd.f32 %v1698, %v624
        %1700 = vadd.xlane.f32.xlu0 %v1699
        %v1701 = vpop.xlane.xlu0 %1700
        %v1702 = vadd.f32 %v625, %v626
        %v1703 = vadd.f32 %v1702, %v627
        %v1704 = vadd.f32 %v1703, %v628
        %v1705 = vadd.f32 %v1704, %v629
        %v1706 = vadd.f32 %v1705, %v630
        %v1707 = vadd.f32 %v1706, %v631
        %v1708 = vadd.f32 %v1707, %v632
        %1709 = vadd.xlane.f32.xlu0 %v1708
        %v1710 = vpop.xlane.xlu0 %1709
        %v1711 = vadd.f32 %v633, %v634
        %v1712 = vadd.f32 %v1711, %v635
        %v1713 = vadd.f32 %v1712, %v636
        %v1714 = vadd.f32 %v1713, %v637
        %v1715 = vadd.f32 %v1714, %v638
        %v1716 = vadd.f32 %v1715, %v639
        %v1717 = vadd.f32 %v1716, %v640
        %1718 = vadd.xlane.f32.xlu0 %v1717
        %v1719 = vpop.xlane.xlu0 %1718
        %v1720 = vadd.f32 %v641, %v642
        %v1721 = vadd.f32 %v1720, %v643
        %v1722 = vadd.f32 %v1721, %v644
        %v1723 = vadd.f32 %v1722, %v645
        %v1724 = vadd.f32 %v1723, %v646
        %v1725 = vadd.f32 %v1724, %v647
        %v1726 = vadd.f32 %v1725, %v648
        %1727 = vadd.xlane.f32.xlu0 %v1726
        %v1728 = vpop.xlane.xlu0 %1727
        %v1729 = vadd.f32 %v649, %v650
        %v1730 = vadd.f32 %v1729, %v651
        %v1731 = vadd.f32 %v1730, %v652
        %v1732 = vadd.f32 %v1731, %v653
        %v1733 = vadd.f32 %v1732, %v654
        %v1734 = vadd.f32 %v1733, %v655
        %v1735 = vadd.f32 %v1734, %v656
        %1736 = vadd.xlane.f32.xlu0 %v1735
        %v1737 = vpop.xlane.xlu0 %1736
        %v1738 = vadd.f32 %v657, %v658
        %v1739 = vadd.f32 %v1738, %v659
        %v1740 = vadd.f32 %v1739, %v660
        %v1741 = vadd.f32 %v1740, %v661
        %v1742 = vadd.f32 %v1741, %v662
        %v1743 = vadd.f32 %v1742, %v663
        %v1744 = vadd.f32 %v1743, %v664
        %1745 = vadd.xlane.f32.xlu0 %v1744
        %v1746 = vpop.xlane.xlu0 %1745
        %v1747 = vadd.f32 %v665, %v666
        %v1748 = vadd.f32 %v1747, %v667
        %v1749 = vadd.f32 %v1748, %v668
        %v1750 = vadd.f32 %v1749, %v669
        %v1751 = vadd.f32 %v1750, %v670
        %v1752 = vadd.f32 %v1751, %v671
        %v1753 = vadd.f32 %v1752, %v672
        %1754 = vadd.xlane.f32.xlu0 %v1753
        %v1755 = vpop.xlane.xlu0 %1754
        %v1756 = vadd.f32 %v673, %v674
        %v1757 = vadd.f32 %v1756, %v675
        %v1758 = vadd.f32 %v1757, %v676
        %v1759 = vadd.f32 %v1758, %v677
        %v1760 = vadd.f32 %v1759, %v678
        %v1761 = vadd.f32 %v1760, %v679
        %v1762 = vadd.f32 %v1761, %v680
        %1763 = vadd.xlane.f32.xlu0 %v1762
        %v1764 = vpop.xlane.xlu0 %1763
        %v1765 = vadd.f32 %v681, %v682
        %v1766 = vadd.f32 %v1765, %v683
        %v1767 = vadd.f32 %v1766, %v684
        %v1768 = vadd.f32 %v1767, %v685
        %v1769 = vadd.f32 %v1768, %v686
        %v1770 = vadd.f32 %v1769, %v687
        %v1771 = vadd.f32 %v1770, %v688
        %1772 = vadd.xlane.f32.xlu0 %v1771
        %v1773 = vpop.xlane.xlu0 %1772
        %v1774 = vadd.f32 %v689, %v690
        %v1775 = vadd.f32 %v1774, %v691
        %v1776 = vadd.f32 %v1775, %v692
        %v1777 = vadd.f32 %v1776, %v693
        %v1778 = vadd.f32 %v1777, %v694
        %v1779 = vadd.f32 %v1778, %v695
        %v1780 = vadd.f32 %v1779, %v696
        %1781 = vadd.xlane.f32.xlu0 %v1780
        %v1782 = vpop.xlane.xlu0 %1781
        %v1783 = vadd.f32 %v697, %v698
        %v1784 = vadd.f32 %v1783, %v699
        %v1785 = vadd.f32 %v1784, %v700
        %v1786 = vadd.f32 %v1785, %v701
        %v1787 = vadd.f32 %v1786, %v702
        %v1788 = vadd.f32 %v1787, %v703
        %v1789 = vadd.f32 %v1788, %v704
        %1790 = vadd.xlane.f32.xlu0 %v1789
        %v1791 = vpop.xlane.xlu0 %1790
        %v1792 = vadd.f32 %v705, %v706
        %v1793 = vadd.f32 %v1792, %v707
        %v1794 = vadd.f32 %v1793, %v708
        %v1795 = vadd.f32 %v1794, %v709
        %v1796 = vadd.f32 %v1795, %v710
        %v1797 = vadd.f32 %v1796, %v711
        %v1798 = vadd.f32 %v1797, %v712
        %1799 = vadd.xlane.f32.xlu0 %v1798
        %v1800 = vpop.xlane.xlu0 %1799
        %p1801 = scmp.eq.s32.totalorder %s25, 0
        // Predicated region
        $region29: #{tpu_custom_call.1} parent=23 // pred_check
          %p1802 = pneg %p1801
        $region30: #{tpu_custom_call.1} parent=23 // pred_check_branch
          %1804 = sbr.rel (%p1802) target = $region32
        $region31: #{tpu_custom_call.1} parent=23 // pred_region
          %vm1805 = vcmask 7168
          %1806 = vst.msk [vmem:[#allocation2] sm:$0xff] %vm1805, %v1233
          %1807 = vst.msk [vmem:[#allocation2 + $0x8] sm:$0xff] %vm1805, %v1242
          %1808 = vst.msk [vmem:[#allocation2 + $0x10] sm:$0xff] %vm1805, %v1251
          %1809 = vst.msk [vmem:[#allocation2 + $0x18] sm:$0xff] %vm1805, %v1260
          %1810 = vst.msk [vmem:[#allocation2 + $0x20] sm:$0xff] %vm1805, %v1269
          %1811 = vst.msk [vmem:[#allocation2 + $0x28] sm:$0xff] %vm1805, %v1278
          %1812 = vst.msk [vmem:[#allocation2 + $0x30] sm:$0xff] %vm1805, %v1287
          %1813 = vst.msk [vmem:[#allocation2 + $0x38] sm:$0xff] %vm1805, %v1296
          %1814 = vst.msk [vmem:[#allocation2 + $0x40] sm:$0xff] %vm1805, %v1305
          %1815 = vst.msk [vmem:[#allocation2 + $0x48] sm:$0xff] %vm1805, %v1314
          %1816 = vst.msk [vmem:[#allocation2 + $0x50] sm:$0xff] %vm1805, %v1323
          %1817 = vst.msk [vmem:[#allocation2 + $0x58] sm:$0xff] %vm1805, %v1332
          %1818 = vst.msk [vmem:[#allocation2 + $0x60] sm:$0xff] %vm1805, %v1341
          %1819 = vst.msk [vmem:[#allocation2 + $0x68] sm:$0xff] %vm1805, %v1350
          %1820 = vst.msk [vmem:[#allocation2 + $0x70] sm:$0xff] %vm1805, %v1359
          %1821 = vst.msk [vmem:[#allocation2 + $0x78] sm:$0xff] %vm1805, %v1368
          %1822 = vst.msk [vmem:[#allocation2 + $0x80] sm:$0xff] %vm1805, %v1377
          %1823 = vst.msk [vmem:[#allocation2 + $0x88] sm:$0xff] %vm1805, %v1386
          %1824 = vst.msk [vmem:[#allocation2 + $0x90] sm:$0xff] %vm1805, %v1395
          %1825 = vst.msk [vmem:[#allocation2 + $0x98] sm:$0xff] %vm1805, %v1404
          %1826 = vst.msk [vmem:[#allocation2 + $0xa0] sm:$0xff] %vm1805, %v1413
          %1827 = vst.msk [vmem:[#allocation2 + $0xa8] sm:$0xff] %vm1805, %v1422
          %1828 = vst.msk [vmem:[#allocation2 + $0xb0] sm:$0xff] %vm1805, %v1431
          %1829 = vst.msk [vmem:[#allocation2 + $0xb8] sm:$0xff] %vm1805, %v1440
          %1830 = vst.msk [vmem:[#allocation2 + $0xc0] sm:$0xff] %vm1805, %v1449
          %1831 = vst.msk [vmem:[#allocation2 + $0xc8] sm:$0xff] %vm1805, %v1458
          %1832 = vst.msk [vmem:[#allocation2 + $0xd0] sm:$0xff] %vm1805, %v1467
          %1833 = vst.msk [vmem:[#allocation2 + $0xd8] sm:$0xff] %vm1805, %v1476
          %1834 = vst.msk [vmem:[#allocation2 + $0xe0] sm:$0xff] %vm1805, %v1485
          %1835 = vst.msk [vmem:[#allocation2 + $0xe8] sm:$0xff] %vm1805, %v1494
          %1836 = vst.msk [vmem:[#allocation2 + $0xf0] sm:$0xff] %vm1805, %v1503
          %1837 = vst.msk [vmem:[#allocation2 + $0xf8] sm:$0xff] %vm1805, %v1512
          %1838 = vst.msk [vmem:[#allocation2 + $0x100] sm:$0xff] %vm1805, %v1521
          %1839 = vst.msk [vmem:[#allocation2 + $0x108] sm:$0xff] %vm1805, %v1530
          %1840 = vst.msk [vmem:[#allocation2 + $0x110] sm:$0xff] %vm1805, %v1539
          %1841 = vst.msk [vmem:[#allocation2 + $0x118] sm:$0xff] %vm1805, %v1548
          %1842 = vst.msk [vmem:[#allocation2 + $0x120] sm:$0xff] %vm1805, %v1557
          %1843 = vst.msk [vmem:[#allocation2 + $0x128] sm:$0xff] %vm1805, %v1566
          %1844 = vst.msk [vmem:[#allocation2 + $0x130] sm:$0xff] %vm1805, %v1575
          %1845 = vst.msk [vmem:[#allocation2 + $0x138] sm:$0xff] %vm1805, %v1584
          %1846 = vst.msk [vmem:[#allocation2 + $0x140] sm:$0xff] %vm1805, %v1593
          %1847 = vst.msk [vmem:[#allocation2 + $0x148] sm:$0xff] %vm1805, %v1602
          %1848 = vst.msk [vmem:[#allocation2 + $0x150] sm:$0xff] %vm1805, %v1611
          %1849 = vst.msk [vmem:[#allocation2 + $0x158] sm:$0xff] %vm1805, %v1620
          %1850 = vst.msk [vmem:[#allocation2 + $0x160] sm:$0xff] %vm1805, %v1629
          %1851 = vst.msk [vmem:[#allocation2 + $0x168] sm:$0xff] %vm1805, %v1638
          %1852 = vst.msk [vmem:[#allocation2 + $0x170] sm:$0xff] %vm1805, %v1647
          %1853 = vst.msk [vmem:[#allocation2 + $0x178] sm:$0xff] %vm1805, %v1656
          %1854 = vst.msk [vmem:[#allocation2 + $0x180] sm:$0xff] %vm1805, %v1665
          %1855 = vst.msk [vmem:[#allocation2 + $0x188] sm:$0xff] %vm1805, %v1674
          %1856 = vst.msk [vmem:[#allocation2 + $0x190] sm:$0xff] %vm1805, %v1683
          %1857 = vst.msk [vmem:[#allocation2 + $0x198] sm:$0xff] %vm1805, %v1692
          %1858 = vst.msk [vmem:[#allocation2 + $0x1a0] sm:$0xff] %vm1805, %v1701
          %1859 = vst.msk [vmem:[#allocation2 + $0x1a8] sm:$0xff] %vm1805, %v1710
          %1860 = vst.msk [vmem:[#allocation2 + $0x1b0] sm:$0xff] %vm1805, %v1719
          %1861 = vst.msk [vmem:[#allocation2 + $0x1b8] sm:$0xff] %vm1805, %v1728
          %1862 = vst.msk [vmem:[#allocation2 + $0x1c0] sm:$0xff] %vm1805, %v1737
          %1863 = vst.msk [vmem:[#allocation2 + $0x1c8] sm:$0xff] %vm1805, %v1746
          %1864 = vst.msk [vmem:[#allocation2 + $0x1d0] sm:$0xff] %vm1805, %v1755
          %1865 = vst.msk [vmem:[#allocation2 + $0x1d8] sm:$0xff] %vm1805, %v1764
          %1866 = vst.msk [vmem:[#allocation2 + $0x1e0] sm:$0xff] %vm1805, %v1773
          %1867 = vst.msk [vmem:[#allocation2 + $0x1e8] sm:$0xff] %vm1805, %v1782
          %1868 = vst.msk [vmem:[#allocation2 + $0x1f0] sm:$0xff] %vm1805, %v1791
          %1869 = vst.msk [vmem:[#allocation2 + $0x1f8] sm:$0xff] %vm1805, %v1800
        $region32: #{tpu_custom_call.1} parent=23 // pred_fallthru
          _
        %p1870 = scmp.ne.s32.totalorder %s25, 0
        // Predicated region
        $region33: #{tpu_custom_call.1} parent=23 // pred_check
          %p1871 = pneg %p1870
        $region34: #{tpu_custom_call.1} parent=23 // pred_check_branch
          %1873 = sbr.rel (%p1871) target = $region36
        $region35: #{tpu_custom_call.1} parent=23 // pred_region
          %v1874 = vld [vmem:[#allocation2] sm:$0xff]
          %v1875 = vld [vmem:[#allocation2 + $0x8] sm:$0xff]
          %v1876 = vld [vmem:[#allocation2 + $0x10] sm:$0xff]
          %v1877 = vld [vmem:[#allocation2 + $0x18] sm:$0xff]
          %v1878 = vld [vmem:[#allocation2 + $0x20] sm:$0xff]
          %v1879 = vld [vmem:[#allocation2 + $0x28] sm:$0xff]
          %v1880 = vld [vmem:[#allocation2 + $0x30] sm:$0xff]
          %v1881 = vld [vmem:[#allocation2 + $0x38] sm:$0xff]
          %v1882 = vld [vmem:[#allocation2 + $0x40] sm:$0xff]
          %v1883 = vld [vmem:[#allocation2 + $0x48] sm:$0xff]
          %v1884 = vld [vmem:[#allocation2 + $0x50] sm:$0xff]
          %v1885 = vld [vmem:[#allocation2 + $0x58] sm:$0xff]
          %v1886 = vld [vmem:[#allocation2 + $0x60] sm:$0xff]
          %v1887 = vld [vmem:[#allocation2 + $0x68] sm:$0xff]
          %v1888 = vld [vmem:[#allocation2 + $0x70] sm:$0xff]
          %v1889 = vld [vmem:[#allocation2 + $0x78] sm:$0xff]
          %v1890 = vld [vmem:[#allocation2 + $0x80] sm:$0xff]
          %v1891 = vld [vmem:[#allocation2 + $0x88] sm:$0xff]
          %v1892 = vld [vmem:[#allocation2 + $0x90] sm:$0xff]
          %v1893 = vld [vmem:[#allocation2 + $0x98] sm:$0xff]
          %v1894 = vld [vmem:[#allocation2 + $0xa0] sm:$0xff]
          %v1895 = vld [vmem:[#allocation2 + $0xa8] sm:$0xff]
          %v1896 = vld [vmem:[#allocation2 + $0xb0] sm:$0xff]
          %v1897 = vld [vmem:[#allocation2 + $0xb8] sm:$0xff]
          %v1898 = vld [vmem:[#allocation2 + $0xc0] sm:$0xff]
          %v1899 = vld [vmem:[#allocation2 + $0xc8] sm:$0xff]
          %v1900 = vld [vmem:[#allocation2 + $0xd0] sm:$0xff]
          %v1901 = vld [vmem:[#allocation2 + $0xd8] sm:$0xff]
          %v1902 = vld [vmem:[#allocation2 + $0xe0] sm:$0xff]
          %v1903 = vld [vmem:[#allocation2 + $0xe8] sm:$0xff]
          %v1904 = vld [vmem:[#allocation2 + $0xf0] sm:$0xff]
          %v1905 = vld [vmem:[#allocation2 + $0xf8] sm:$0xff]
          %v1906 = vld [vmem:[#allocation2 + $0x100] sm:$0xff]
          %v1907 = vld [vmem:[#allocation2 + $0x108] sm:$0xff]
          %v1908 = vld [vmem:[#allocation2 + $0x110] sm:$0xff]
          %v1909 = vld [vmem:[#allocation2 + $0x118] sm:$0xff]
          %v1910 = vld [vmem:[#allocation2 + $0x120] sm:$0xff]
          %v1911 = vld [vmem:[#allocation2 + $0x128] sm:$0xff]
          %v1912 = vld [vmem:[#allocation2 + $0x130] sm:$0xff]
          %v1913 = vld [vmem:[#allocation2 + $0x138] sm:$0xff]
          %v1914 = vld [vmem:[#allocation2 + $0x140] sm:$0xff]
          %v1915 = vld [vmem:[#allocation2 + $0x148] sm:$0xff]
          %v1916 = vld [vmem:[#allocation2 + $0x150] sm:$0xff]
          %v1917 = vld [vmem:[#allocation2 + $0x158] sm:$0xff]
          %v1918 = vld [vmem:[#allocation2 + $0x160] sm:$0xff]
          %v1919 = vld [vmem:[#allocation2 + $0x168] sm:$0xff]
          %v1920 = vld [vmem:[#allocation2 + $0x170] sm:$0xff]
          %v1921 = vld [vmem:[#allocation2 + $0x178] sm:$0xff]
          %v1922 = vld [vmem:[#allocation2 + $0x180] sm:$0xff]
          %v1923 = vld [vmem:[#allocation2 + $0x188] sm:$0xff]
          %v1924 = vld [vmem:[#allocation2 + $0x190] sm:$0xff]
          %v1925 = vld [vmem:[#allocation2 + $0x198] sm:$0xff]
          %v1926 = vld [vmem:[#allocation2 + $0x1a0] sm:$0xff]
          %v1927 = vld [vmem:[#allocation2 + $0x1a8] sm:$0xff]
          %v1928 = vld [vmem:[#allocation2 + $0x1b0] sm:$0xff]
          %v1929 = vld [vmem:[#allocation2 + $0x1b8] sm:$0xff]
          %v1930 = vld [vmem:[#allocation2 + $0x1c0] sm:$0xff]
          %v1931 = vld [vmem:[#allocation2 + $0x1c8] sm:$0xff]
          %v1932 = vld [vmem:[#allocation2 + $0x1d0] sm:$0xff]
          %v1933 = vld [vmem:[#allocation2 + $0x1d8] sm:$0xff]
          %v1934 = vld [vmem:[#allocation2 + $0x1e0] sm:$0xff]
          %v1935 = vld [vmem:[#allocation2 + $0x1e8] sm:$0xff]
          %v1936 = vld [vmem:[#allocation2 + $0x1f0] sm:$0xff]
          %v1937 = vld [vmem:[#allocation2 + $0x1f8] sm:$0xff]
          %v1938 = vadd.f32 %v1874, %v1233
          %v1939 = vadd.f32 %v1875, %v1242
          %v1940 = vadd.f32 %v1876, %v1251
          %v1941 = vadd.f32 %v1877, %v1260
          %v1942 = vadd.f32 %v1878, %v1269
          %v1943 = vadd.f32 %v1879, %v1278
          %v1944 = vadd.f32 %v1880, %v1287
          %v1945 = vadd.f32 %v1881, %v1296
          %v1946 = vadd.f32 %v1882, %v1305
          %v1947 = vadd.f32 %v1883, %v1314
          %v1948 = vadd.f32 %v1884, %v1323
          %v1949 = vadd.f32 %v1885, %v1332
          %v1950 = vadd.f32 %v1886, %v1341
          %v1951 = vadd.f32 %v1887, %v1350
          %v1952 = vadd.f32 %v1888, %v1359
          %v1953 = vadd.f32 %v1889, %v1368
          %v1954 = vadd.f32 %v1890, %v1377
          %v1955 = vadd.f32 %v1891, %v1386
          %v1956 = vadd.f32 %v1892, %v1395
          %v1957 = vadd.f32 %v1893, %v1404
          %v1958 = vadd.f32 %v1894, %v1413
          %v1959 = vadd.f32 %v1895, %v1422
          %v1960 = vadd.f32 %v1896, %v1431
          %v1961 = vadd.f32 %v1897, %v1440
          %v1962 = vadd.f32 %v1898, %v1449
          %v1963 = vadd.f32 %v1899, %v1458
          %v1964 = vadd.f32 %v1900, %v1467
          %v1965 = vadd.f32 %v1901, %v1476
          %v1966 = vadd.f32 %v1902, %v1485
          %v1967 = vadd.f32 %v1903, %v1494
          %v1968 = vadd.f32 %v1904, %v1503
          %v1969 = vadd.f32 %v1905, %v1512
          %v1970 = vadd.f32 %v1906, %v1521
          %v1971 = vadd.f32 %v1907, %v1530
          %v1972 = vadd.f32 %v1908, %v1539
          %v1973 = vadd.f32 %v1909, %v1548
          %v1974 = vadd.f32 %v1910, %v1557
          %v1975 = vadd.f32 %v1911, %v1566
          %v1976 = vadd.f32 %v1912, %v1575
          %v1977 = vadd.f32 %v1913, %v1584
          %v1978 = vadd.f32 %v1914, %v1593
          %v1979 = vadd.f32 %v1915, %v1602
          %v1980 = vadd.f32 %v1916, %v1611
          %v1981 = vadd.f32 %v1917, %v1620
          %v1982 = vadd.f32 %v1918, %v1629
          %v1983 = vadd.f32 %v1919, %v1638
          %v1984 = vadd.f32 %v1920, %v1647
          %v1985 = vadd.f32 %v1921, %v1656
          %v1986 = vadd.f32 %v1922, %v1665
          %v1987 = vadd.f32 %v1923, %v1674
          %v1988 = vadd.f32 %v1924, %v1683
          %v1989 = vadd.f32 %v1925, %v1692
          %v1990 = vadd.f32 %v1926, %v1701
          %v1991 = vadd.f32 %v1927, %v1710
          %v1992 = vadd.f32 %v1928, %v1719
          %v1993 = vadd.f32 %v1929, %v1728
          %v1994 = vadd.f32 %v1930, %v1737
          %v1995 = vadd.f32 %v1931, %v1746
          %v1996 = vadd.f32 %v1932, %v1755
          %v1997 = vadd.f32 %v1933, %v1764
          %v1998 = vadd.f32 %v1934, %v1773
          %v1999 = vadd.f32 %v1935, %v1782
          %v2000 = vadd.f32 %v1936, %v1791
          %v2001 = vadd.f32 %v1937, %v1800
          %vm2002 = vcmask 7168
          %2003 = vst.msk [vmem:[#allocation2] sm:$0xff] %vm2002, %v1938
          %2004 = vst.msk [vmem:[#allocation2 + $0x8] sm:$0xff] %vm2002, %v1939
          %2005 = vst.msk [vmem:[#allocation2 + $0x10] sm:$0xff] %vm2002, %v1940
          %2006 = vst.msk [vmem:[#allocation2 + $0x18] sm:$0xff] %vm2002, %v1941
          %2007 = vst.msk [vmem:[#allocation2 + $0x20] sm:$0xff] %vm2002, %v1942
          %2008 = vst.msk [vmem:[#allocation2 + $0x28] sm:$0xff] %vm2002, %v1943
          %2009 = vst.msk [vmem:[#allocation2 + $0x30] sm:$0xff] %vm2002, %v1944
          %2010 = vst.msk [vmem:[#allocation2 + $0x38] sm:$0xff] %vm2002, %v1945
          %2011 = vst.msk [vmem:[#allocation2 + $0x40] sm:$0xff] %vm2002, %v1946
          %2012 = vst.msk [vmem:[#allocation2 + $0x48] sm:$0xff] %vm2002, %v1947
          %2013 = vst.msk [vmem:[#allocation2 + $0x50] sm:$0xff] %vm2002, %v1948
          %2014 = vst.msk [vmem:[#allocation2 + $0x58] sm:$0xff] %vm2002, %v1949
          %2015 = vst.msk [vmem:[#allocation2 + $0x60] sm:$0xff] %vm2002, %v1950
          %2016 = vst.msk [vmem:[#allocation2 + $0x68] sm:$0xff] %vm2002, %v1951
          %2017 = vst.msk [vmem:[#allocation2 + $0x70] sm:$0xff] %vm2002, %v1952
          %2018 = vst.msk [vmem:[#allocation2 + $0x78] sm:$0xff] %vm2002, %v1953
          %2019 = vst.msk [vmem:[#allocation2 + $0x80] sm:$0xff] %vm2002, %v1954
          %2020 = vst.msk [vmem:[#allocation2 + $0x88] sm:$0xff] %vm2002, %v1955
          %2021 = vst.msk [vmem:[#allocation2 + $0x90] sm:$0xff] %vm2002, %v1956
          %2022 = vst.msk [vmem:[#allocation2 + $0x98] sm:$0xff] %vm2002, %v1957
          %2023 = vst.msk [vmem:[#allocation2 + $0xa0] sm:$0xff] %vm2002, %v1958
          %2024 = vst.msk [vmem:[#allocation2 + $0xa8] sm:$0xff] %vm2002, %v1959
          %2025 = vst.msk [vmem:[#allocation2 + $0xb0] sm:$0xff] %vm2002, %v1960
          %2026 = vst.msk [vmem:[#allocation2 + $0xb8] sm:$0xff] %vm2002, %v1961
          %2027 = vst.msk [vmem:[#allocation2 + $0xc0] sm:$0xff] %vm2002, %v1962
          %2028 = vst.msk [vmem:[#allocation2 + $0xc8] sm:$0xff] %vm2002, %v1963
          %2029 = vst.msk [vmem:[#allocation2 + $0xd0] sm:$0xff] %vm2002, %v1964
          %2030 = vst.msk [vmem:[#allocation2 + $0xd8] sm:$0xff] %vm2002, %v1965
          %2031 = vst.msk [vmem:[#allocation2 + $0xe0] sm:$0xff] %vm2002, %v1966
          %2032 = vst.msk [vmem:[#allocation2 + $0xe8] sm:$0xff] %vm2002, %v1967
          %2033 = vst.msk [vmem:[#allocation2 + $0xf0] sm:$0xff] %vm2002, %v1968
          %2034 = vst.msk [vmem:[#allocation2 + $0xf8] sm:$0xff] %vm2002, %v1969
          %2035 = vst.msk [vmem:[#allocation2 + $0x100] sm:$0xff] %vm2002, %v1970
          %2036 = vst.msk [vmem:[#allocation2 + $0x108] sm:$0xff] %vm2002, %v1971
          %2037 = vst.msk [vmem:[#allocation2 + $0x110] sm:$0xff] %vm2002, %v1972
          %2038 = vst.msk [vmem:[#allocation2 + $0x118] sm:$0xff] %vm2002, %v1973
          %2039 = vst.msk [vmem:[#allocation2 + $0x120] sm:$0xff] %vm2002, %v1974
          %2040 = vst.msk [vmem:[#allocation2 + $0x128] sm:$0xff] %vm2002, %v1975
          %2041 = vst.msk [vmem:[#allocation2 + $0x130] sm:$0xff] %vm2002, %v1976
          %2042 = vst.msk [vmem:[#allocation2 + $0x138] sm:$0xff] %vm2002, %v1977
          %2043 = vst.msk [vmem:[#allocation2 + $0x140] sm:$0xff] %vm2002, %v1978
          %2044 = vst.msk [vmem:[#allocation2 + $0x148] sm:$0xff] %vm2002, %v1979
          %2045 = vst.msk [vmem:[#allocation2 + $0x150] sm:$0xff] %vm2002, %v1980
          %2046 = vst.msk [vmem:[#allocation2 + $0x158] sm:$0xff] %vm2002, %v1981
          %2047 = vst.msk [vmem:[#allocation2 + $0x160] sm:$0xff] %vm2002, %v1982
          %2048 = vst.msk [vmem:[#allocation2 + $0x168] sm:$0xff] %vm2002, %v1983
          %2049 = vst.msk [vmem:[#allocation2 + $0x170] sm:$0xff] %vm2002, %v1984
          %2050 = vst.msk [vmem:[#allocation2 + $0x178] sm:$0xff] %vm2002, %v1985
          %2051 = vst.msk [vmem:[#allocation2 + $0x180] sm:$0xff] %vm2002, %v1986
          %2052 = vst.msk [vmem:[#allocation2 + $0x188] sm:$0xff] %vm2002, %v1987
          %2053 = vst.msk [vmem:[#allocation2 + $0x190] sm:$0xff] %vm2002, %v1988
          %2054 = vst.msk [vmem:[#allocation2 + $0x198] sm:$0xff] %vm2002, %v1989
          %2055 = vst.msk [vmem:[#allocation2 + $0x1a0] sm:$0xff] %vm2002, %v1990
          %2056 = vst.msk [vmem:[#allocation2 + $0x1a8] sm:$0xff] %vm2002, %v1991
          %2057 = vst.msk [vmem:[#allocation2 + $0x1b0] sm:$0xff] %vm2002, %v1992
          %2058 = vst.msk [vmem:[#allocation2 + $0x1b8] sm:$0xff] %vm2002, %v1993
          %2059 = vst.msk [vmem:[#allocation2 + $0x1c0] sm:$0xff] %vm2002, %v1994
          %2060 = vst.msk [vmem:[#allocation2 + $0x1c8] sm:$0xff] %vm2002, %v1995
          %2061 = vst.msk [vmem:[#allocation2 + $0x1d0] sm:$0xff] %vm2002, %v1996
          %2062 = vst.msk [vmem:[#allocation2 + $0x1d8] sm:$0xff] %vm2002, %v1997
          %2063 = vst.msk [vmem:[#allocation2 + $0x1e0] sm:$0xff] %vm2002, %v1998
          %2064 = vst.msk [vmem:[#allocation2 + $0x1e8] sm:$0xff] %vm2002, %v1999
          %2065 = vst.msk [vmem:[#allocation2 + $0x1f0] sm:$0xff] %vm2002, %v2000
          %2066 = vst.msk [vmem:[#allocation2 + $0x1f8] sm:$0xff] %vm2002, %v2001
        $region36: #{tpu_custom_call.1} parent=23 // pred_fallthru
          _
        // Predicated region
        $region37: #{tpu_custom_call.1} parent=23 // pred_check
          %p2067 = pneg %p1801
        $region38: #{tpu_custom_call.1} parent=23 // pred_check_branch
          %2069 = sbr.rel (%p2067) target = $region40
        $region39: #{tpu_custom_call.1} parent=23 // pred_region
          %v2070 = vld [vmem:[#allocation2] sm:$0xff]
          %v2071 = vld [vmem:[#allocation2 + $0x8] sm:$0xff]
          %v2072 = vld [vmem:[#allocation2 + $0x10] sm:$0xff]
          %v2073 = vld [vmem:[#allocation2 + $0x18] sm:$0xff]
          %v2074 = vld [vmem:[#allocation2 + $0x20] sm:$0xff]
          %v2075 = vld [vmem:[#allocation2 + $0x28] sm:$0xff]
          %v2076 = vld [vmem:[#allocation2 + $0x30] sm:$0xff]
          %v2077 = vld [vmem:[#allocation2 + $0x38] sm:$0xff]
          %v2078 = vld [vmem:[#allocation2 + $0x40] sm:$0xff]
          %v2079 = vld [vmem:[#allocation2 + $0x48] sm:$0xff]
          %v2080 = vld [vmem:[#allocation2 + $0x50] sm:$0xff]
          %v2081 = vld [vmem:[#allocation2 + $0x58] sm:$0xff]
          %v2082 = vld [vmem:[#allocation2 + $0x60] sm:$0xff]
          %v2083 = vld [vmem:[#allocation2 + $0x68] sm:$0xff]
          %v2084 = vld [vmem:[#allocation2 + $0x70] sm:$0xff]
          %v2085 = vld [vmem:[#allocation2 + $0x78] sm:$0xff]
          %v2086 = vld [vmem:[#allocation2 + $0x80] sm:$0xff]
          %v2087 = vld [vmem:[#allocation2 + $0x88] sm:$0xff]
          %v2088 = vld [vmem:[#allocation2 + $0x90] sm:$0xff]
          %v2089 = vld [vmem:[#allocation2 + $0x98] sm:$0xff]
          %v2090 = vld [vmem:[#allocation2 + $0xa0] sm:$0xff]
          %v2091 = vld [vmem:[#allocation2 + $0xa8] sm:$0xff]
          %v2092 = vld [vmem:[#allocation2 + $0xb0] sm:$0xff]
          %v2093 = vld [vmem:[#allocation2 + $0xb8] sm:$0xff]
          %v2094 = vld [vmem:[#allocation2 + $0xc0] sm:$0xff]
          %v2095 = vld [vmem:[#allocation2 + $0xc8] sm:$0xff]
          %v2096 = vld [vmem:[#allocation2 + $0xd0] sm:$0xff]
          %v2097 = vld [vmem:[#allocation2 + $0xd8] sm:$0xff]
          %v2098 = vld [vmem:[#allocation2 + $0xe0] sm:$0xff]
          %v2099 = vld [vmem:[#allocation2 + $0xe8] sm:$0xff]
          %v2100 = vld [vmem:[#allocation2 + $0xf0] sm:$0xff]
          %v2101 = vld [vmem:[#allocation2 + $0xf8] sm:$0xff]
          %v2102 = vld [vmem:[#allocation2 + $0x100] sm:$0xff]
          %v2103 = vld [vmem:[#allocation2 + $0x108] sm:$0xff]
          %v2104 = vld [vmem:[#allocation2 + $0x110] sm:$0xff]
          %v2105 = vld [vmem:[#allocation2 + $0x118] sm:$0xff]
          %v2106 = vld [vmem:[#allocation2 + $0x120] sm:$0xff]
          %v2107 = vld [vmem:[#allocation2 + $0x128] sm:$0xff]
          %v2108 = vld [vmem:[#allocation2 + $0x130] sm:$0xff]
          %v2109 = vld [vmem:[#allocation2 + $0x138] sm:$0xff]
          %v2110 = vld [vmem:[#allocation2 + $0x140] sm:$0xff]
          %v2111 = vld [vmem:[#allocation2 + $0x148] sm:$0xff]
          %v2112 = vld [vmem:[#allocation2 + $0x150] sm:$0xff]
          %v2113 = vld [vmem:[#allocation2 + $0x158] sm:$0xff]
          %v2114 = vld [vmem:[#allocation2 + $0x160] sm:$0xff]
          %v2115 = vld [vmem:[#allocation2 + $0x168] sm:$0xff]
          %v2116 = vld [vmem:[#allocation2 + $0x170] sm:$0xff]
          %v2117 = vld [vmem:[#allocation2 + $0x178] sm:$0xff]
          %v2118 = vld [vmem:[#allocation2 + $0x180] sm:$0xff]
          %v2119 = vld [vmem:[#allocation2 + $0x188] sm:$0xff]
          %v2120 = vld [vmem:[#allocation2 + $0x190] sm:$0xff]
          %v2121 = vld [vmem:[#allocation2 + $0x198] sm:$0xff]
          %v2122 = vld [vmem:[#allocation2 + $0x1a0] sm:$0xff]
          %v2123 = vld [vmem:[#allocation2 + $0x1a8] sm:$0xff]
          %v2124 = vld [vmem:[#allocation2 + $0x1b0] sm:$0xff]
          %v2125 = vld [vmem:[#allocation2 + $0x1b8] sm:$0xff]
          %v2126 = vld [vmem:[#allocation2 + $0x1c0] sm:$0xff]
          %v2127 = vld [vmem:[#allocation2 + $0x1c8] sm:$0xff]
          %v2128 = vld [vmem:[#allocation2 + $0x1d0] sm:$0xff]
          %v2129 = vld [vmem:[#allocation2 + $0x1d8] sm:$0xff]
          %v2130 = vld [vmem:[#allocation2 + $0x1e0] sm:$0xff]
          %v2131 = vld [vmem:[#allocation2 + $0x1e8] sm:$0xff]
          %v2132 = vld [vmem:[#allocation2 + $0x1f0] sm:$0xff]
          %v2133 = vld [vmem:[#allocation2 + $0x1f8] sm:$0xff]
          %v2134 = vadd.f32 %v2070, 1.0
          %v2135 = vadd.f32 %v2071, 1.0
          %v2136 = vadd.f32 %v2072, 1.0
          %v2137 = vadd.f32 %v2073, 1.0
          %v2138 = vadd.f32 %v2074, 1.0
          %v2139 = vadd.f32 %v2075, 1.0
          %v2140 = vadd.f32 %v2076, 1.0
          %v2141 = vadd.f32 %v2077, 1.0
          %v2142 = vadd.f32 %v2078, 1.0
          %v2143 = vadd.f32 %v2079, 1.0
          %v2144 = vadd.f32 %v2080, 1.0
          %v2145 = vadd.f32 %v2081, 1.0
          %v2146 = vadd.f32 %v2082, 1.0
          %v2147 = vadd.f32 %v2083, 1.0
          %v2148 = vadd.f32 %v2084, 1.0
          %v2149 = vadd.f32 %v2085, 1.0
          %v2150 = vadd.f32 %v2086, 1.0
          %v2151 = vadd.f32 %v2087, 1.0
          %v2152 = vadd.f32 %v2088, 1.0
          %v2153 = vadd.f32 %v2089, 1.0
          %v2154 = vadd.f32 %v2090, 1.0
          %v2155 = vadd.f32 %v2091, 1.0
          %v2156 = vadd.f32 %v2092, 1.0
          %v2157 = vadd.f32 %v2093, 1.0
          %v2158 = vadd.f32 %v2094, 1.0
          %v2159 = vadd.f32 %v2095, 1.0
          %v2160 = vadd.f32 %v2096, 1.0
          %v2161 = vadd.f32 %v2097, 1.0
          %v2162 = vadd.f32 %v2098, 1.0
          %v2163 = vadd.f32 %v2099, 1.0
          %v2164 = vadd.f32 %v2100, 1.0
          %v2165 = vadd.f32 %v2101, 1.0
          %v2166 = vadd.f32 %v2102, 1.0
          %v2167 = vadd.f32 %v2103, 1.0
          %v2168 = vadd.f32 %v2104, 1.0
          %v2169 = vadd.f32 %v2105, 1.0
          %v2170 = vadd.f32 %v2106, 1.0
          %v2171 = vadd.f32 %v2107, 1.0
          %v2172 = vadd.f32 %v2108, 1.0
          %v2173 = vadd.f32 %v2109, 1.0
          %v2174 = vadd.f32 %v2110, 1.0
          %v2175 = vadd.f32 %v2111, 1.0
          %v2176 = vadd.f32 %v2112, 1.0
          %v2177 = vadd.f32 %v2113, 1.0
          %v2178 = vadd.f32 %v2114, 1.0
          %v2179 = vadd.f32 %v2115, 1.0
          %v2180 = vadd.f32 %v2116, 1.0
          %v2181 = vadd.f32 %v2117, 1.0
          %v2182 = vadd.f32 %v2118, 1.0
          %v2183 = vadd.f32 %v2119, 1.0
          %v2184 = vadd.f32 %v2120, 1.0
          %v2185 = vadd.f32 %v2121, 1.0
          %v2186 = vadd.f32 %v2122, 1.0
          %v2187 = vadd.f32 %v2123, 1.0
          %v2188 = vadd.f32 %v2124, 1.0
          %v2189 = vadd.f32 %v2125, 1.0
          %v2190 = vadd.f32 %v2126, 1.0
          %v2191 = vadd.f32 %v2127, 1.0
          %v2192 = vadd.f32 %v2128, 1.0
          %v2193 = vadd.f32 %v2129, 1.0
          %v2194 = vadd.f32 %v2130, 1.0
          %v2195 = vadd.f32 %v2131, 1.0
          %v2196 = vadd.f32 %v2132, 1.0
          %v2197 = vadd.f32 %v2133, 1.0
          %vm2198 = vcmp.gt.f32.partialorder %v2134, 0.0
          %vm2199 = vcmp.gt.f32.partialorder %v2135, 0.0
          %vm2200 = vcmp.gt.f32.partialorder %v2136, 0.0
          %vm2201 = vcmp.gt.f32.partialorder %v2137, 0.0
          %vm2202 = vcmp.gt.f32.partialorder %v2138, 0.0
          %vm2203 = vcmp.gt.f32.partialorder %v2139, 0.0
          %vm2204 = vcmp.gt.f32.partialorder %v2140, 0.0
          %vm2205 = vcmp.gt.f32.partialorder %v2141, 0.0
          %vm2206 = vcmp.gt.f32.partialorder %v2142, 0.0
          %vm2207 = vcmp.gt.f32.partialorder %v2143, 0.0
          %vm2208 = vcmp.gt.f32.partialorder %v2144, 0.0
          %vm2209 = vcmp.gt.f32.partialorder %v2145, 0.0
          %vm2210 = vcmp.gt.f32.partialorder %v2146, 0.0
          %vm2211 = vcmp.gt.f32.partialorder %v2147, 0.0
          %vm2212 = vcmp.gt.f32.partialorder %v2148, 0.0
          %vm2213 = vcmp.gt.f32.partialorder %v2149, 0.0
          %vm2214 = vcmp.gt.f32.partialorder %v2150, 0.0
          %vm2215 = vcmp.gt.f32.partialorder %v2151, 0.0
          %vm2216 = vcmp.gt.f32.partialorder %v2152, 0.0
          %vm2217 = vcmp.gt.f32.partialorder %v2153, 0.0
          %vm2218 = vcmp.gt.f32.partialorder %v2154, 0.0
          %vm2219 = vcmp.gt.f32.partialorder %v2155, 0.0
          %vm2220 = vcmp.gt.f32.partialorder %v2156, 0.0
          %vm2221 = vcmp.gt.f32.partialorder %v2157, 0.0
          %vm2222 = vcmp.gt.f32.partialorder %v2158, 0.0
          %vm2223 = vcmp.gt.f32.partialorder %v2159, 0.0
          %vm2224 = vcmp.gt.f32.partialorder %v2160, 0.0
          %vm2225 = vcmp.gt.f32.partialorder %v2161, 0.0
          %vm2226 = vcmp.gt.f32.partialorder %v2162, 0.0
          %vm2227 = vcmp.gt.f32.partialorder %v2163, 0.0
          %vm2228 = vcmp.gt.f32.partialorder %v2164, 0.0
          %vm2229 = vcmp.gt.f32.partialorder %v2165, 0.0
          %vm2230 = vcmp.gt.f32.partialorder %v2166, 0.0
          %vm2231 = vcmp.gt.f32.partialorder %v2167, 0.0
          %vm2232 = vcmp.gt.f32.partialorder %v2168, 0.0
          %vm2233 = vcmp.gt.f32.partialorder %v2169, 0.0
          %vm2234 = vcmp.gt.f32.partialorder %v2170, 0.0
          %vm2235 = vcmp.gt.f32.partialorder %v2171, 0.0
          %vm2236 = vcmp.gt.f32.partialorder %v2172, 0.0
          %vm2237 = vcmp.gt.f32.partialorder %v2173, 0.0
          %vm2238 = vcmp.gt.f32.partialorder %v2174, 0.0
          %vm2239 = vcmp.gt.f32.partialorder %v2175, 0.0
          %vm2240 = vcmp.gt.f32.partialorder %v2176, 0.0
          %vm2241 = vcmp.gt.f32.partialorder %v2177, 0.0
          %vm2242 = vcmp.gt.f32.partialorder %v2178, 0.0
          %vm2243 = vcmp.gt.f32.partialorder %v2179, 0.0
          %vm2244 = vcmp.gt.f32.partialorder %v2180, 0.0
          %vm2245 = vcmp.gt.f32.partialorder %v2181, 0.0
          %vm2246 = vcmp.gt.f32.partialorder %v2182, 0.0
          %vm2247 = vcmp.gt.f32.partialorder %v2183, 0.0
          %vm2248 = vcmp.gt.f32.partialorder %v2184, 0.0
          %vm2249 = vcmp.gt.f32.partialorder %v2185, 0.0
          %vm2250 = vcmp.gt.f32.partialorder %v2186, 0.0
          %vm2251 = vcmp.gt.f32.partialorder %v2187, 0.0
          %vm2252 = vcmp.gt.f32.partialorder %v2188, 0.0
          %vm2253 = vcmp.gt.f32.partialorder %v2189, 0.0
          %vm2254 = vcmp.gt.f32.partialorder %v2190, 0.0
          %vm2255 = vcmp.gt.f32.partialorder %v2191, 0.0
          %vm2256 = vcmp.gt.f32.partialorder %v2192, 0.0
          %vm2257 = vcmp.gt.f32.partialorder %v2193, 0.0
          %vm2258 = vcmp.gt.f32.partialorder %v2194, 0.0
          %vm2259 = vcmp.gt.f32.partialorder %v2195, 0.0
          %vm2260 = vcmp.gt.f32.partialorder %v2196, 0.0
          %vm2261 = vcmp.gt.f32.partialorder %v2197, 0.0
          %v2262 = vrsqrt.pop %v2134
          %v2263 = vmul.f32 %v2262, %v2134
          %v2264 = vmul.f32 %v2263, %v2262
          %v2265 = vmul.f32 0.5, %v2264
          %v2266 = vsub.f32 1.5, %v2265
          %v2267 = vmul.f32 %v2262, %v2266
          %vm2268 = vweird.f32 %v2134
          %vm2269 = vweird.f32 %v2262
          %vm2270 = vmor %vm2268, %vm2269
          %v2271 = vsel %vm2270, %v2262, %v2267
          %v2272 = vrsqrt.pop %v2135
          %v2273 = vmul.f32 %v2272, %v2135
          %v2274 = vmul.f32 %v2273, %v2272
          %v2275 = vmul.f32 0.5, %v2274
          %v2276 = vsub.f32 1.5, %v2275
          %v2277 = vmul.f32 %v2272, %v2276
          %vm2278 = vweird.f32 %v2135
          %vm2279 = vweird.f32 %v2272
          %vm2280 = vmor %vm2278, %vm2279
          %v2281 = vsel %vm2280, %v2272, %v2277
          %v2282 = vrsqrt.pop %v2136
          %v2283 = vmul.f32 %v2282, %v2136
          %v2284 = vmul.f32 %v2283, %v2282
          %v2285 = vmul.f32 0.5, %v2284
          %v2286 = vsub.f32 1.5, %v2285
          %v2287 = vmul.f32 %v2282, %v2286
          %vm2288 = vweird.f32 %v2136
          %vm2289 = vweird.f32 %v2282
          %vm2290 = vmor %vm2288, %vm2289
          %v2291 = vsel %vm2290, %v2282, %v2287
          %v2292 = vrsqrt.pop %v2137
          %v2293 = vmul.f32 %v2292, %v2137
          %v2294 = vmul.f32 %v2293, %v2292
          %v2295 = vmul.f32 0.5, %v2294
          %v2296 = vsub.f32 1.5, %v2295
          %v2297 = vmul.f32 %v2292, %v2296
          %vm2298 = vweird.f32 %v2137
          %vm2299 = vweird.f32 %v2292
          %vm2300 = vmor %vm2298, %vm2299
          %v2301 = vsel %vm2300, %v2292, %v2297
          %v2302 = vrsqrt.pop %v2138
          %v2303 = vmul.f32 %v2302, %v2138
          %v2304 = vmul.f32 %v2303, %v2302
          %v2305 = vmul.f32 0.5, %v2304
          %v2306 = vsub.f32 1.5, %v2305
          %v2307 = vmul.f32 %v2302, %v2306
          %vm2308 = vweird.f32 %v2138
          %vm2309 = vweird.f32 %v2302
          %vm2310 = vmor %vm2308, %vm2309
          %v2311 = vsel %vm2310, %v2302, %v2307
          %v2312 = vrsqrt.pop %v2139
          %v2313 = vmul.f32 %v2312, %v2139
          %v2314 = vmul.f32 %v2313, %v2312
          %v2315 = vmul.f32 0.5, %v2314
          %v2316 = vsub.f32 1.5, %v2315
          %v2317 = vmul.f32 %v2312, %v2316
          %vm2318 = vweird.f32 %v2139
          %vm2319 = vweird.f32 %v2312
          %vm2320 = vmor %vm2318, %vm2319
          %v2321 = vsel %vm2320, %v2312, %v2317
          %v2322 = vrsqrt.pop %v2140
          %v2323 = vmul.f32 %v2322, %v2140
          %v2324 = vmul.f32 %v2323, %v2322
          %v2325 = vmul.f32 0.5, %v2324
          %v2326 = vsub.f32 1.5, %v2325
          %v2327 = vmul.f32 %v2322, %v2326
          %vm2328 = vweird.f32 %v2140
          %vm2329 = vweird.f32 %v2322
          %vm2330 = vmor %vm2328, %vm2329
          %v2331 = vsel %vm2330, %v2322, %v2327
          %v2332 = vrsqrt.pop %v2141
          %v2333 = vmul.f32 %v2332, %v2141
          %v2334 = vmul.f32 %v2333, %v2332
          %v2335 = vmul.f32 0.5, %v2334
          %v2336 = vsub.f32 1.5, %v2335
          %v2337 = vmul.f32 %v2332, %v2336
          %vm2338 = vweird.f32 %v2141
          %vm2339 = vweird.f32 %v2332
          %vm2340 = vmor %vm2338, %vm2339
          %v2341 = vsel %vm2340, %v2332, %v2337
          %v2342 = vrsqrt.pop %v2142
          %v2343 = vmul.f32 %v2342, %v2142
          %v2344 = vmul.f32 %v2343, %v2342
          %v2345 = vmul.f32 0.5, %v2344
          %v2346 = vsub.f32 1.5, %v2345
          %v2347 = vmul.f32 %v2342, %v2346
          %vm2348 = vweird.f32 %v2142
          %vm2349 = vweird.f32 %v2342
          %vm2350 = vmor %vm2348, %vm2349
          %v2351 = vsel %vm2350, %v2342, %v2347
          %v2352 = vrsqrt.pop %v2143
          %v2353 = vmul.f32 %v2352, %v2143
          %v2354 = vmul.f32 %v2353, %v2352
          %v2355 = vmul.f32 0.5, %v2354
          %v2356 = vsub.f32 1.5, %v2355
          %v2357 = vmul.f32 %v2352, %v2356
          %vm2358 = vweird.f32 %v2143
          %vm2359 = vweird.f32 %v2352
          %vm2360 = vmor %vm2358, %vm2359
          %v2361 = vsel %vm2360, %v2352, %v2357
          %v2362 = vrsqrt.pop %v2144
          %v2363 = vmul.f32 %v2362, %v2144
          %v2364 = vmul.f32 %v2363, %v2362
          %v2365 = vmul.f32 0.5, %v2364
          %v2366 = vsub.f32 1.5, %v2365
          %v2367 = vmul.f32 %v2362, %v2366
          %vm2368 = vweird.f32 %v2144
          %vm2369 = vweird.f32 %v2362
          %vm2370 = vmor %vm2368, %vm2369
          %v2371 = vsel %vm2370, %v2362, %v2367
          %v2372 = vrsqrt.pop %v2145
          %v2373 = vmul.f32 %v2372, %v2145
          %v2374 = vmul.f32 %v2373, %v2372
          %v2375 = vmul.f32 0.5, %v2374
          %v2376 = vsub.f32 1.5, %v2375
          %v2377 = vmul.f32 %v2372, %v2376
          %vm2378 = vweird.f32 %v2145
          %vm2379 = vweird.f32 %v2372
          %vm2380 = vmor %vm2378, %vm2379
          %v2381 = vsel %vm2380, %v2372, %v2377
          %v2382 = vrsqrt.pop %v2146
          %v2383 = vmul.f32 %v2382, %v2146
          %v2384 = vmul.f32 %v2383, %v2382
          %v2385 = vmul.f32 0.5, %v2384
          %v2386 = vsub.f32 1.5, %v2385
          %v2387 = vmul.f32 %v2382, %v2386
          %vm2388 = vweird.f32 %v2146
          %vm2389 = vweird.f32 %v2382
          %vm2390 = vmor %vm2388, %vm2389
          %v2391 = vsel %vm2390, %v2382, %v2387
          %v2392 = vrsqrt.pop %v2147
          %v2393 = vmul.f32 %v2392, %v2147
          %v2394 = vmul.f32 %v2393, %v2392
          %v2395 = vmul.f32 0.5, %v2394
          %v2396 = vsub.f32 1.5, %v2395
          %v2397 = vmul.f32 %v2392, %v2396
          %vm2398 = vweird.f32 %v2147
          %vm2399 = vweird.f32 %v2392
          %vm2400 = vmor %vm2398, %vm2399
          %v2401 = vsel %vm2400, %v2392, %v2397
          %v2402 = vrsqrt.pop %v2148
          %v2403 = vmul.f32 %v2402, %v2148
          %v2404 = vmul.f32 %v2403, %v2402
          %v2405 = vmul.f32 0.5, %v2404
          %v2406 = vsub.f32 1.5, %v2405
          %v2407 = vmul.f32 %v2402, %v2406
          %vm2408 = vweird.f32 %v2148
          %vm2409 = vweird.f32 %v2402
          %vm2410 = vmor %vm2408, %vm2409
          %v2411 = vsel %vm2410, %v2402, %v2407
          %v2412 = vrsqrt.pop %v2149
          %v2413 = vmul.f32 %v2412, %v2149
          %v2414 = vmul.f32 %v2413, %v2412
          %v2415 = vmul.f32 0.5, %v2414
          %v2416 = vsub.f32 1.5, %v2415
          %v2417 = vmul.f32 %v2412, %v2416
          %vm2418 = vweird.f32 %v2149
          %vm2419 = vweird.f32 %v2412
          %vm2420 = vmor %vm2418, %vm2419
          %v2421 = vsel %vm2420, %v2412, %v2417
          %v2422 = vrsqrt.pop %v2150
          %v2423 = vmul.f32 %v2422, %v2150
          %v2424 = vmul.f32 %v2423, %v2422
          %v2425 = vmul.f32 0.5, %v2424
          %v2426 = vsub.f32 1.5, %v2425
          %v2427 = vmul.f32 %v2422, %v2426
          %vm2428 = vweird.f32 %v2150
          %vm2429 = vweird.f32 %v2422
          %vm2430 = vmor %vm2428, %vm2429
          %v2431 = vsel %vm2430, %v2422, %v2427
          %v2432 = vrsqrt.pop %v2151
          %v2433 = vmul.f32 %v2432, %v2151
          %v2434 = vmul.f32 %v2433, %v2432
          %v2435 = vmul.f32 0.5, %v2434
          %v2436 = vsub.f32 1.5, %v2435
          %v2437 = vmul.f32 %v2432, %v2436
          %vm2438 = vweird.f32 %v2151
          %vm2439 = vweird.f32 %v2432
          %vm2440 = vmor %vm2438, %vm2439
          %v2441 = vsel %vm2440, %v2432, %v2437
          %v2442 = vrsqrt.pop %v2152
          %v2443 = vmul.f32 %v2442, %v2152
          %v2444 = vmul.f32 %v2443, %v2442
          %v2445 = vmul.f32 0.5, %v2444
          %v2446 = vsub.f32 1.5, %v2445
          %v2447 = vmul.f32 %v2442, %v2446
          %vm2448 = vweird.f32 %v2152
          %vm2449 = vweird.f32 %v2442
          %vm2450 = vmor %vm2448, %vm2449
          %v2451 = vsel %vm2450, %v2442, %v2447
          %v2452 = vrsqrt.pop %v2153
          %v2453 = vmul.f32 %v2452, %v2153
          %v2454 = vmul.f32 %v2453, %v2452
          %v2455 = vmul.f32 0.5, %v2454
          %v2456 = vsub.f32 1.5, %v2455
          %v2457 = vmul.f32 %v2452, %v2456
          %vm2458 = vweird.f32 %v2153
          %vm2459 = vweird.f32 %v2452
          %vm2460 = vmor %vm2458, %vm2459
          %v2461 = vsel %vm2460, %v2452, %v2457
          %v2462 = vrsqrt.pop %v2154
          %v2463 = vmul.f32 %v2462, %v2154
          %v2464 = vmul.f32 %v2463, %v2462
          %v2465 = vmul.f32 0.5, %v2464
          %v2466 = vsub.f32 1.5, %v2465
          %v2467 = vmul.f32 %v2462, %v2466
          %vm2468 = vweird.f32 %v2154
          %vm2469 = vweird.f32 %v2462
          %vm2470 = vmor %vm2468, %vm2469
          %v2471 = vsel %vm2470, %v2462, %v2467
          %v2472 = vrsqrt.pop %v2155
          %v2473 = vmul.f32 %v2472, %v2155
          %v2474 = vmul.f32 %v2473, %v2472
          %v2475 = vmul.f32 0.5, %v2474
          %v2476 = vsub.f32 1.5, %v2475
          %v2477 = vmul.f32 %v2472, %v2476
          %vm2478 = vweird.f32 %v2155
          %vm2479 = vweird.f32 %v2472
          %vm2480 = vmor %vm2478, %vm2479
          %v2481 = vsel %vm2480, %v2472, %v2477
          %v2482 = vrsqrt.pop %v2156
          %v2483 = vmul.f32 %v2482, %v2156
          %v2484 = vmul.f32 %v2483, %v2482
          %v2485 = vmul.f32 0.5, %v2484
          %v2486 = vsub.f32 1.5, %v2485
          %v2487 = vmul.f32 %v2482, %v2486
          %vm2488 = vweird.f32 %v2156
          %vm2489 = vweird.f32 %v2482
          %vm2490 = vmor %vm2488, %vm2489
          %v2491 = vsel %vm2490, %v2482, %v2487
          %v2492 = vrsqrt.pop %v2157
          %v2493 = vmul.f32 %v2492, %v2157
          %v2494 = vmul.f32 %v2493, %v2492
          %v2495 = vmul.f32 0.5, %v2494
          %v2496 = vsub.f32 1.5, %v2495
          %v2497 = vmul.f32 %v2492, %v2496
          %vm2498 = vweird.f32 %v2157
          %vm2499 = vweird.f32 %v2492
          %vm2500 = vmor %vm2498, %vm2499
          %v2501 = vsel %vm2500, %v2492, %v2497
          %v2502 = vrsqrt.pop %v2158
          %v2503 = vmul.f32 %v2502, %v2158
          %v2504 = vmul.f32 %v2503, %v2502
          %v2505 = vmul.f32 0.5, %v2504
          %v2506 = vsub.f32 1.5, %v2505
          %v2507 = vmul.f32 %v2502, %v2506
          %vm2508 = vweird.f32 %v2158
          %vm2509 = vweird.f32 %v2502
          %vm2510 = vmor %vm2508, %vm2509
          %v2511 = vsel %vm2510, %v2502, %v2507
          %v2512 = vrsqrt.pop %v2159
          %v2513 = vmul.f32 %v2512, %v2159
          %v2514 = vmul.f32 %v2513, %v2512
          %v2515 = vmul.f32 0.5, %v2514
          %v2516 = vsub.f32 1.5, %v2515
          %v2517 = vmul.f32 %v2512, %v2516
          %vm2518 = vweird.f32 %v2159
          %vm2519 = vweird.f32 %v2512
          %vm2520 = vmor %vm2518, %vm2519
          %v2521 = vsel %vm2520, %v2512, %v2517
          %v2522 = vrsqrt.pop %v2160
          %v2523 = vmul.f32 %v2522, %v2160
          %v2524 = vmul.f32 %v2523, %v2522
          %v2525 = vmul.f32 0.5, %v2524
          %v2526 = vsub.f32 1.5, %v2525
          %v2527 = vmul.f32 %v2522, %v2526
          %vm2528 = vweird.f32 %v2160
          %vm2529 = vweird.f32 %v2522
          %vm2530 = vmor %vm2528, %vm2529
          %v2531 = vsel %vm2530, %v2522, %v2527
          %v2532 = vrsqrt.pop %v2161
          %v2533 = vmul.f32 %v2532, %v2161
          %v2534 = vmul.f32 %v2533, %v2532
          %v2535 = vmul.f32 0.5, %v2534
          %v2536 = vsub.f32 1.5, %v2535
          %v2537 = vmul.f32 %v2532, %v2536
          %vm2538 = vweird.f32 %v2161
          %vm2539 = vweird.f32 %v2532
          %vm2540 = vmor %vm2538, %vm2539
          %v2541 = vsel %vm2540, %v2532, %v2537
          %v2542 = vrsqrt.pop %v2162
          %v2543 = vmul.f32 %v2542, %v2162
          %v2544 = vmul.f32 %v2543, %v2542
          %v2545 = vmul.f32 0.5, %v2544
          %v2546 = vsub.f32 1.5, %v2545
          %v2547 = vmul.f32 %v2542, %v2546
          %vm2548 = vweird.f32 %v2162
          %vm2549 = vweird.f32 %v2542
          %vm2550 = vmor %vm2548, %vm2549
          %v2551 = vsel %vm2550, %v2542, %v2547
          %v2552 = vrsqrt.pop %v2163
          %v2553 = vmul.f32 %v2552, %v2163
          %v2554 = vmul.f32 %v2553, %v2552
          %v2555 = vmul.f32 0.5, %v2554
          %v2556 = vsub.f32 1.5, %v2555
          %v2557 = vmul.f32 %v2552, %v2556
          %vm2558 = vweird.f32 %v2163
          %vm2559 = vweird.f32 %v2552
          %vm2560 = vmor %vm2558, %vm2559
          %v2561 = vsel %vm2560, %v2552, %v2557
          %v2562 = vrsqrt.pop %v2164
          %v2563 = vmul.f32 %v2562, %v2164
          %v2564 = vmul.f32 %v2563, %v2562
          %v2565 = vmul.f32 0.5, %v2564
          %v2566 = vsub.f32 1.5, %v2565
          %v2567 = vmul.f32 %v2562, %v2566
          %vm2568 = vweird.f32 %v2164
          %vm2569 = vweird.f32 %v2562
          %vm2570 = vmor %vm2568, %vm2569
          %v2571 = vsel %vm2570, %v2562, %v2567
          %v2572 = vrsqrt.pop %v2165
          %v2573 = vmul.f32 %v2572, %v2165
          %v2574 = vmul.f32 %v2573, %v2572
          %v2575 = vmul.f32 0.5, %v2574
          %v2576 = vsub.f32 1.5, %v2575
          %v2577 = vmul.f32 %v2572, %v2576
          %vm2578 = vweird.f32 %v2165
          %vm2579 = vweird.f32 %v2572
          %vm2580 = vmor %vm2578, %vm2579
          %v2581 = vsel %vm2580, %v2572, %v2577
          %v2582 = vrsqrt.pop %v2166
          %v2583 = vmul.f32 %v2582, %v2166
          %v2584 = vmul.f32 %v2583, %v2582
          %v2585 = vmul.f32 0.5, %v2584
          %v2586 = vsub.f32 1.5, %v2585
          %v2587 = vmul.f32 %v2582, %v2586
          %vm2588 = vweird.f32 %v2166
          %vm2589 = vweird.f32 %v2582
          %vm2590 = vmor %vm2588, %vm2589
          %v2591 = vsel %vm2590, %v2582, %v2587
          %v2592 = vrsqrt.pop %v2167
          %v2593 = vmul.f32 %v2592, %v2167
          %v2594 = vmul.f32 %v2593, %v2592
          %v2595 = vmul.f32 0.5, %v2594
          %v2596 = vsub.f32 1.5, %v2595
          %v2597 = vmul.f32 %v2592, %v2596
          %vm2598 = vweird.f32 %v2167
          %vm2599 = vweird.f32 %v2592
          %vm2600 = vmor %vm2598, %vm2599
          %v2601 = vsel %vm2600, %v2592, %v2597
          %v2602 = vrsqrt.pop %v2168
          %v2603 = vmul.f32 %v2602, %v2168
          %v2604 = vmul.f32 %v2603, %v2602
          %v2605 = vmul.f32 0.5, %v2604
          %v2606 = vsub.f32 1.5, %v2605
          %v2607 = vmul.f32 %v2602, %v2606
          %vm2608 = vweird.f32 %v2168
          %vm2609 = vweird.f32 %v2602
          %vm2610 = vmor %vm2608, %vm2609
          %v2611 = vsel %vm2610, %v2602, %v2607
          %v2612 = vrsqrt.pop %v2169
          %v2613 = vmul.f32 %v2612, %v2169
          %v2614 = vmul.f32 %v2613, %v2612
          %v2615 = vmul.f32 0.5, %v2614
          %v2616 = vsub.f32 1.5, %v2615
          %v2617 = vmul.f32 %v2612, %v2616
          %vm2618 = vweird.f32 %v2169
          %vm2619 = vweird.f32 %v2612
          %vm2620 = vmor %vm2618, %vm2619
          %v2621 = vsel %vm2620, %v2612, %v2617
          %v2622 = vrsqrt.pop %v2170
          %v2623 = vmul.f32 %v2622, %v2170
          %v2624 = vmul.f32 %v2623, %v2622
          %v2625 = vmul.f32 0.5, %v2624
          %v2626 = vsub.f32 1.5, %v2625
          %v2627 = vmul.f32 %v2622, %v2626
          %vm2628 = vweird.f32 %v2170
          %vm2629 = vweird.f32 %v2622
          %vm2630 = vmor %vm2628, %vm2629
          %v2631 = vsel %vm2630, %v2622, %v2627
          %v2632 = vrsqrt.pop %v2171
          %v2633 = vmul.f32 %v2632, %v2171
          %v2634 = vmul.f32 %v2633, %v2632
          %v2635 = vmul.f32 0.5, %v2634
          %v2636 = vsub.f32 1.5, %v2635
          %v2637 = vmul.f32 %v2632, %v2636
          %vm2638 = vweird.f32 %v2171
          %vm2639 = vweird.f32 %v2632
          %vm2640 = vmor %vm2638, %vm2639
          %v2641 = vsel %vm2640, %v2632, %v2637
          %v2642 = vrsqrt.pop %v2172
          %v2643 = vmul.f32 %v2642, %v2172
          %v2644 = vmul.f32 %v2643, %v2642
          %v2645 = vmul.f32 0.5, %v2644
          %v2646 = vsub.f32 1.5, %v2645
          %v2647 = vmul.f32 %v2642, %v2646
          %vm2648 = vweird.f32 %v2172
          %vm2649 = vweird.f32 %v2642
          %vm2650 = vmor %vm2648, %vm2649
          %v2651 = vsel %vm2650, %v2642, %v2647
          %v2652 = vrsqrt.pop %v2173
          %v2653 = vmul.f32 %v2652, %v2173
          %v2654 = vmul.f32 %v2653, %v2652
          %v2655 = vmul.f32 0.5, %v2654
          %v2656 = vsub.f32 1.5, %v2655
          %v2657 = vmul.f32 %v2652, %v2656
          %vm2658 = vweird.f32 %v2173
          %vm2659 = vweird.f32 %v2652
          %vm2660 = vmor %vm2658, %vm2659
          %v2661 = vsel %vm2660, %v2652, %v2657
          %v2662 = vrsqrt.pop %v2174
          %v2663 = vmul.f32 %v2662, %v2174
          %v2664 = vmul.f32 %v2663, %v2662
          %v2665 = vmul.f32 0.5, %v2664
          %v2666 = vsub.f32 1.5, %v2665
          %v2667 = vmul.f32 %v2662, %v2666
          %vm2668 = vweird.f32 %v2174
          %vm2669 = vweird.f32 %v2662
          %vm2670 = vmor %vm2668, %vm2669
          %v2671 = vsel %vm2670, %v2662, %v2667
          %v2672 = vrsqrt.pop %v2175
          %v2673 = vmul.f32 %v2672, %v2175
          %v2674 = vmul.f32 %v2673, %v2672
          %v2675 = vmul.f32 0.5, %v2674
          %v2676 = vsub.f32 1.5, %v2675
          %v2677 = vmul.f32 %v2672, %v2676
          %vm2678 = vweird.f32 %v2175
          %vm2679 = vweird.f32 %v2672
          %vm2680 = vmor %vm2678, %vm2679
          %v2681 = vsel %vm2680, %v2672, %v2677
          %v2682 = vrsqrt.pop %v2176
          %v2683 = vmul.f32 %v2682, %v2176
          %v2684 = vmul.f32 %v2683, %v2682
          %v2685 = vmul.f32 0.5, %v2684
          %v2686 = vsub.f32 1.5, %v2685
          %v2687 = vmul.f32 %v2682, %v2686
          %vm2688 = vweird.f32 %v2176
          %vm2689 = vweird.f32 %v2682
          %vm2690 = vmor %vm2688, %vm2689
          %v2691 = vsel %vm2690, %v2682, %v2687
          %v2692 = vrsqrt.pop %v2177
          %v2693 = vmul.f32 %v2692, %v2177
          %v2694 = vmul.f32 %v2693, %v2692
          %v2695 = vmul.f32 0.5, %v2694
          %v2696 = vsub.f32 1.5, %v2695
          %v2697 = vmul.f32 %v2692, %v2696
          %vm2698 = vweird.f32 %v2177
          %vm2699 = vweird.f32 %v2692
          %vm2700 = vmor %vm2698, %vm2699
          %v2701 = vsel %vm2700, %v2692, %v2697
          %v2702 = vrsqrt.pop %v2178
          %v2703 = vmul.f32 %v2702, %v2178
          %v2704 = vmul.f32 %v2703, %v2702
          %v2705 = vmul.f32 0.5, %v2704
          %v2706 = vsub.f32 1.5, %v2705
          %v2707 = vmul.f32 %v2702, %v2706
          %vm2708 = vweird.f32 %v2178
          %vm2709 = vweird.f32 %v2702
          %vm2710 = vmor %vm2708, %vm2709
          %v2711 = vsel %vm2710, %v2702, %v2707
          %v2712 = vrsqrt.pop %v2179
          %v2713 = vmul.f32 %v2712, %v2179
          %v2714 = vmul.f32 %v2713, %v2712
          %v2715 = vmul.f32 0.5, %v2714
          %v2716 = vsub.f32 1.5, %v2715
          %v2717 = vmul.f32 %v2712, %v2716
          %vm2718 = vweird.f32 %v2179
          %vm2719 = vweird.f32 %v2712
          %vm2720 = vmor %vm2718, %vm2719
          %v2721 = vsel %vm2720, %v2712, %v2717
          %v2722 = vrsqrt.pop %v2180
          %v2723 = vmul.f32 %v2722, %v2180
          %v2724 = vmul.f32 %v2723, %v2722
          %v2725 = vmul.f32 0.5, %v2724
          %v2726 = vsub.f32 1.5, %v2725
          %v2727 = vmul.f32 %v2722, %v2726
          %vm2728 = vweird.f32 %v2180
          %vm2729 = vweird.f32 %v2722
          %vm2730 = vmor %vm2728, %vm2729
          %v2731 = vsel %vm2730, %v2722, %v2727
          %v2732 = vrsqrt.pop %v2181
          %v2733 = vmul.f32 %v2732, %v2181
          %v2734 = vmul.f32 %v2733, %v2732
          %v2735 = vmul.f32 0.5, %v2734
          %v2736 = vsub.f32 1.5, %v2735
          %v2737 = vmul.f32 %v2732, %v2736
          %vm2738 = vweird.f32 %v2181
          %vm2739 = vweird.f32 %v2732
          %vm2740 = vmor %vm2738, %vm2739
          %v2741 = vsel %vm2740, %v2732, %v2737
          %v2742 = vrsqrt.pop %v2182
          %v2743 = vmul.f32 %v2742, %v2182
          %v2744 = vmul.f32 %v2743, %v2742
          %v2745 = vmul.f32 0.5, %v2744
          %v2746 = vsub.f32 1.5, %v2745
          %v2747 = vmul.f32 %v2742, %v2746
          %vm2748 = vweird.f32 %v2182
          %vm2749 = vweird.f32 %v2742
          %vm2750 = vmor %vm2748, %vm2749
          %v2751 = vsel %vm2750, %v2742, %v2747
          %v2752 = vrsqrt.pop %v2183
          %v2753 = vmul.f32 %v2752, %v2183
          %v2754 = vmul.f32 %v2753, %v2752
          %v2755 = vmul.f32 0.5, %v2754
          %v2756 = vsub.f32 1.5, %v2755
          %v2757 = vmul.f32 %v2752, %v2756
          %vm2758 = vweird.f32 %v2183
          %vm2759 = vweird.f32 %v2752
          %vm2760 = vmor %vm2758, %vm2759
          %v2761 = vsel %vm2760, %v2752, %v2757
          %v2762 = vrsqrt.pop %v2184
          %v2763 = vmul.f32 %v2762, %v2184
          %v2764 = vmul.f32 %v2763, %v2762
          %v2765 = vmul.f32 0.5, %v2764
          %v2766 = vsub.f32 1.5, %v2765
          %v2767 = vmul.f32 %v2762, %v2766
          %vm2768 = vweird.f32 %v2184
          %vm2769 = vweird.f32 %v2762
          %vm2770 = vmor %vm2768, %vm2769
          %v2771 = vsel %vm2770, %v2762, %v2767
          %v2772 = vrsqrt.pop %v2185
          %v2773 = vmul.f32 %v2772, %v2185
          %v2774 = vmul.f32 %v2773, %v2772
          %v2775 = vmul.f32 0.5, %v2774
          %v2776 = vsub.f32 1.5, %v2775
          %v2777 = vmul.f32 %v2772, %v2776
          %vm2778 = vweird.f32 %v2185
          %vm2779 = vweird.f32 %v2772
          %vm2780 = vmor %vm2778, %vm2779
          %v2781 = vsel %vm2780, %v2772, %v2777
          %v2782 = vrsqrt.pop %v2186
          %v2783 = vmul.f32 %v2782, %v2186
          %v2784 = vmul.f32 %v2783, %v2782
          %v2785 = vmul.f32 0.5, %v2784
          %v2786 = vsub.f32 1.5, %v2785
          %v2787 = vmul.f32 %v2782, %v2786
          %vm2788 = vweird.f32 %v2186
          %vm2789 = vweird.f32 %v2782
          %vm2790 = vmor %vm2788, %vm2789
          %v2791 = vsel %vm2790, %v2782, %v2787
          %v2792 = vrsqrt.pop %v2187
          %v2793 = vmul.f32 %v2792, %v2187
          %v2794 = vmul.f32 %v2793, %v2792
          %v2795 = vmul.f32 0.5, %v2794
          %v2796 = vsub.f32 1.5, %v2795
          %v2797 = vmul.f32 %v2792, %v2796
          %vm2798 = vweird.f32 %v2187
          %vm2799 = vweird.f32 %v2792
          %vm2800 = vmor %vm2798, %vm2799
          %v2801 = vsel %vm2800, %v2792, %v2797
          %v2802 = vrsqrt.pop %v2188
          %v2803 = vmul.f32 %v2802, %v2188
          %v2804 = vmul.f32 %v2803, %v2802
          %v2805 = vmul.f32 0.5, %v2804
          %v2806 = vsub.f32 1.5, %v2805
          %v2807 = vmul.f32 %v2802, %v2806
          %vm2808 = vweird.f32 %v2188
          %vm2809 = vweird.f32 %v2802
          %vm2810 = vmor %vm2808, %vm2809
          %v2811 = vsel %vm2810, %v2802, %v2807
          %v2812 = vrsqrt.pop %v2189
          %v2813 = vmul.f32 %v2812, %v2189
          %v2814 = vmul.f32 %v2813, %v2812
          %v2815 = vmul.f32 0.5, %v2814
          %v2816 = vsub.f32 1.5, %v2815
          %v2817 = vmul.f32 %v2812, %v2816
          %vm2818 = vweird.f32 %v2189
          %vm2819 = vweird.f32 %v2812
          %vm2820 = vmor %vm2818, %vm2819
          %v2821 = vsel %vm2820, %v2812, %v2817
          %v2822 = vrsqrt.pop %v2190
          %v2823 = vmul.f32 %v2822, %v2190
          %v2824 = vmul.f32 %v2823, %v2822
          %v2825 = vmul.f32 0.5, %v2824
          %v2826 = vsub.f32 1.5, %v2825
          %v2827 = vmul.f32 %v2822, %v2826
          %vm2828 = vweird.f32 %v2190
          %vm2829 = vweird.f32 %v2822
          %vm2830 = vmor %vm2828, %vm2829
          %v2831 = vsel %vm2830, %v2822, %v2827
          %v2832 = vrsqrt.pop %v2191
          %v2833 = vmul.f32 %v2832, %v2191
          %v2834 = vmul.f32 %v2833, %v2832
          %v2835 = vmul.f32 0.5, %v2834
          %v2836 = vsub.f32 1.5, %v2835
          %v2837 = vmul.f32 %v2832, %v2836
          %vm2838 = vweird.f32 %v2191
          %vm2839 = vweird.f32 %v2832
          %vm2840 = vmor %vm2838, %vm2839
          %v2841 = vsel %vm2840, %v2832, %v2837
          %v2842 = vrsqrt.pop %v2192
          %v2843 = vmul.f32 %v2842, %v2192
          %v2844 = vmul.f32 %v2843, %v2842
          %v2845 = vmul.f32 0.5, %v2844
          %v2846 = vsub.f32 1.5, %v2845
          %v2847 = vmul.f32 %v2842, %v2846
          %vm2848 = vweird.f32 %v2192
          %vm2849 = vweird.f32 %v2842
          %vm2850 = vmor %vm2848, %vm2849
          %v2851 = vsel %vm2850, %v2842, %v2847
          %v2852 = vrsqrt.pop %v2193
          %v2853 = vmul.f32 %v2852, %v2193
          %v2854 = vmul.f32 %v2853, %v2852
          %v2855 = vmul.f32 0.5, %v2854
          %v2856 = vsub.f32 1.5, %v2855
          %v2857 = vmul.f32 %v2852, %v2856
          %vm2858 = vweird.f32 %v2193
          %vm2859 = vweird.f32 %v2852
          %vm2860 = vmor %vm2858, %vm2859
          %v2861 = vsel %vm2860, %v2852, %v2857
          %v2862 = vrsqrt.pop %v2194
          %v2863 = vmul.f32 %v2862, %v2194
          %v2864 = vmul.f32 %v2863, %v2862
          %v2865 = vmul.f32 0.5, %v2864
          %v2866 = vsub.f32 1.5, %v2865
          %v2867 = vmul.f32 %v2862, %v2866
          %vm2868 = vweird.f32 %v2194
          %vm2869 = vweird.f32 %v2862
          %vm2870 = vmor %vm2868, %vm2869
          %v2871 = vsel %vm2870, %v2862, %v2867
          %v2872 = vrsqrt.pop %v2195
          %v2873 = vmul.f32 %v2872, %v2195
          %v2874 = vmul.f32 %v2873, %v2872
          %v2875 = vmul.f32 0.5, %v2874
          %v2876 = vsub.f32 1.5, %v2875
          %v2877 = vmul.f32 %v2872, %v2876
          %vm2878 = vweird.f32 %v2195
          %vm2879 = vweird.f32 %v2872
          %vm2880 = vmor %vm2878, %vm2879
          %v2881 = vsel %vm2880, %v2872, %v2877
          %v2882 = vrsqrt.pop %v2196
          %v2883 = vmul.f32 %v2882, %v2196
          %v2884 = vmul.f32 %v2883, %v2882
          %v2885 = vmul.f32 0.5, %v2884
          %v2886 = vsub.f32 1.5, %v2885
          %v2887 = vmul.f32 %v2882, %v2886
          %vm2888 = vweird.f32 %v2196
          %vm2889 = vweird.f32 %v2882
          %vm2890 = vmor %vm2888, %vm2889
          %v2891 = vsel %vm2890, %v2882, %v2887
          %v2892 = vrsqrt.pop %v2197
          %v2893 = vmul.f32 %v2892, %v2197
          %v2894 = vmul.f32 %v2893, %v2892
          %v2895 = vmul.f32 0.5, %v2894
          %v2896 = vsub.f32 1.5, %v2895
          %v2897 = vmul.f32 %v2892, %v2896
          %vm2898 = vweird.f32 %v2197
          %vm2899 = vweird.f32 %v2892
          %vm2900 = vmor %vm2898, %vm2899
          %v2901 = vsel %vm2900, %v2892, %v2897
          %v2902 = vsel %vm2198, %v2271, 0.0
          %v2903 = vsel %vm2199, %v2281, 0.0
          %v2904 = vsel %vm2200, %v2291, 0.0
          %v2905 = vsel %vm2201, %v2301, 0.0
          %v2906 = vsel %vm2202, %v2311, 0.0
          %v2907 = vsel %vm2203, %v2321, 0.0
          %v2908 = vsel %vm2204, %v2331, 0.0
          %v2909 = vsel %vm2205, %v2341, 0.0
          %v2910 = vsel %vm2206, %v2351, 0.0
          %v2911 = vsel %vm2207, %v2361, 0.0
          %v2912 = vsel %vm2208, %v2371, 0.0
          %v2913 = vsel %vm2209, %v2381, 0.0
          %v2914 = vsel %vm2210, %v2391, 0.0
          %v2915 = vsel %vm2211, %v2401, 0.0
          %v2916 = vsel %vm2212, %v2411, 0.0
          %v2917 = vsel %vm2213, %v2421, 0.0
          %v2918 = vsel %vm2214, %v2431, 0.0
          %v2919 = vsel %vm2215, %v2441, 0.0
          %v2920 = vsel %vm2216, %v2451, 0.0
          %v2921 = vsel %vm2217, %v2461, 0.0
          %v2922 = vsel %vm2218, %v2471, 0.0
          %v2923 = vsel %vm2219, %v2481, 0.0
          %v2924 = vsel %vm2220, %v2491, 0.0
          %v2925 = vsel %vm2221, %v2501, 0.0
          %v2926 = vsel %vm2222, %v2511, 0.0
          %v2927 = vsel %vm2223, %v2521, 0.0
          %v2928 = vsel %vm2224, %v2531, 0.0
          %v2929 = vsel %vm2225, %v2541, 0.0
          %v2930 = vsel %vm2226, %v2551, 0.0
          %v2931 = vsel %vm2227, %v2561, 0.0
          %v2932 = vsel %vm2228, %v2571, 0.0
          %v2933 = vsel %vm2229, %v2581, 0.0
          %v2934 = vsel %vm2230, %v2591, 0.0
          %v2935 = vsel %vm2231, %v2601, 0.0
          %v2936 = vsel %vm2232, %v2611, 0.0
          %v2937 = vsel %vm2233, %v2621, 0.0
          %v2938 = vsel %vm2234, %v2631, 0.0
          %v2939 = vsel %vm2235, %v2641, 0.0
          %v2940 = vsel %vm2236, %v2651, 0.0
          %v2941 = vsel %vm2237, %v2661, 0.0
          %v2942 = vsel %vm2238, %v2671, 0.0
          %v2943 = vsel %vm2239, %v2681, 0.0
          %v2944 = vsel %vm2240, %v2691, 0.0
          %v2945 = vsel %vm2241, %v2701, 0.0
          %v2946 = vsel %vm2242, %v2711, 0.0
          %v2947 = vsel %vm2243, %v2721, 0.0
          %v2948 = vsel %vm2244, %v2731, 0.0
          %v2949 = vsel %vm2245, %v2741, 0.0
          %v2950 = vsel %vm2246, %v2751, 0.0
          %v2951 = vsel %vm2247, %v2761, 0.0
          %v2952 = vsel %vm2248, %v2771, 0.0
          %v2953 = vsel %vm2249, %v2781, 0.0
          %v2954 = vsel %vm2250, %v2791, 0.0
          %v2955 = vsel %vm2251, %v2801, 0.0
          %v2956 = vsel %vm2252, %v2811, 0.0
          %v2957 = vsel %vm2253, %v2821, 0.0
          %v2958 = vsel %vm2254, %v2831, 0.0
          %v2959 = vsel %vm2255, %v2841, 0.0
          %v2960 = vsel %vm2256, %v2851, 0.0
          %v2961 = vsel %vm2257, %v2861, 0.0
          %v2962 = vsel %vm2258, %v2871, 0.0
          %v2963 = vsel %vm2259, %v2881, 0.0
          %v2964 = vsel %vm2260, %v2891, 0.0
          %v2965 = vsel %vm2261, %v2901, 0.0
          %vm2966 = vcmask 7168
          %2967 = vst.msk [vmem:[%s199] sm:$0xff] %vm2966, %v2902
          %2968 = vst.msk [vmem:[%s199 + $0x8] sm:$0xff] %vm2966, %v2903
          %2969 = vst.msk [vmem:[%s199 + $0x10] sm:$0xff] %vm2966, %v2904
          %2970 = vst.msk [vmem:[%s199 + $0x18] sm:$0xff] %vm2966, %v2905
          %2971 = vst.msk [vmem:[%s199 + $0x20] sm:$0xff] %vm2966, %v2906
          %2972 = vst.msk [vmem:[%s199 + $0x28] sm:$0xff] %vm2966, %v2907
          %2973 = vst.msk [vmem:[%s199 + $0x30] sm:$0xff] %vm2966, %v2908
          %2974 = vst.msk [vmem:[%s199 + $0x38] sm:$0xff] %vm2966, %v2909
          %2975 = vst.msk [vmem:[%s199 + $0x40] sm:$0xff] %vm2966, %v2910
          %2976 = vst.msk [vmem:[%s199 + $0x48] sm:$0xff] %vm2966, %v2911
          %2977 = vst.msk [vmem:[%s199 + $0x50] sm:$0xff] %vm2966, %v2912
          %2978 = vst.msk [vmem:[%s199 + $0x58] sm:$0xff] %vm2966, %v2913
          %2979 = vst.msk [vmem:[%s199 + $0x60] sm:$0xff] %vm2966, %v2914
          %2980 = vst.msk [vmem:[%s199 + $0x68] sm:$0xff] %vm2966, %v2915
          %2981 = vst.msk [vmem:[%s199 + $0x70] sm:$0xff] %vm2966, %v2916
          %2982 = vst.msk [vmem:[%s199 + $0x78] sm:$0xff] %vm2966, %v2917
          %2983 = vst.msk [vmem:[%s199 + $0x80] sm:$0xff] %vm2966, %v2918
          %2984 = vst.msk [vmem:[%s199 + $0x88] sm:$0xff] %vm2966, %v2919
          %2985 = vst.msk [vmem:[%s199 + $0x90] sm:$0xff] %vm2966, %v2920
          %2986 = vst.msk [vmem:[%s199 + $0x98] sm:$0xff] %vm2966, %v2921
          %2987 = vst.msk [vmem:[%s199 + $0xa0] sm:$0xff] %vm2966, %v2922
          %2988 = vst.msk [vmem:[%s199 + $0xa8] sm:$0xff] %vm2966, %v2923
          %2989 = vst.msk [vmem:[%s199 + $0xb0] sm:$0xff] %vm2966, %v2924
          %2990 = vst.msk [vmem:[%s199 + $0xb8] sm:$0xff] %vm2966, %v2925
          %2991 = vst.msk [vmem:[%s199 + $0xc0] sm:$0xff] %vm2966, %v2926
          %2992 = vst.msk [vmem:[%s199 + $0xc8] sm:$0xff] %vm2966, %v2927
          %2993 = vst.msk [vmem:[%s199 + $0xd0] sm:$0xff] %vm2966, %v2928
          %2994 = vst.msk [vmem:[%s199 + $0xd8] sm:$0xff] %vm2966, %v2929
          %2995 = vst.msk [vmem:[%s199 + $0xe0] sm:$0xff] %vm2966, %v2930
          %2996 = vst.msk [vmem:[%s199 + $0xe8] sm:$0xff] %vm2966, %v2931
          %2997 = vst.msk [vmem:[%s199 + $0xf0] sm:$0xff] %vm2966, %v2932
          %2998 = vst.msk [vmem:[%s199 + $0xf8] sm:$0xff] %vm2966, %v2933
          %2999 = vst.msk [vmem:[%s199 + $0x100] sm:$0xff] %vm2966, %v2934
          %3000 = vst.msk [vmem:[%s199 + $0x108] sm:$0xff] %vm2966, %v2935
          %3001 = vst.msk [vmem:[%s199 + $0x110] sm:$0xff] %vm2966, %v2936
          %3002 = vst.msk [vmem:[%s199 + $0x118] sm:$0xff] %vm2966, %v2937
          %3003 = vst.msk [vmem:[%s199 + $0x120] sm:$0xff] %vm2966, %v2938
          %3004 = vst.msk [vmem:[%s199 + $0x128] sm:$0xff] %vm2966, %v2939
          %3005 = vst.msk [vmem:[%s199 + $0x130] sm:$0xff] %vm2966, %v2940
          %3006 = vst.msk [vmem:[%s199 + $0x138] sm:$0xff] %vm2966, %v2941
          %3007 = vst.msk [vmem:[%s199 + $0x140] sm:$0xff] %vm2966, %v2942
          %3008 = vst.msk [vmem:[%s199 + $0x148] sm:$0xff] %vm2966, %v2943
          %3009 = vst.msk [vmem:[%s199 + $0x150] sm:$0xff] %vm2966, %v2944
          %3010 = vst.msk [vmem:[%s199 + $0x158] sm:$0xff] %vm2966, %v2945
          %3011 = vst.msk [vmem:[%s199 + $0x160] sm:$0xff] %vm2966, %v2946
          %3012 = vst.msk [vmem:[%s199 + $0x168] sm:$0xff] %vm2966, %v2947
          %3013 = vst.msk [vmem:[%s199 + $0x170] sm:$0xff] %vm2966, %v2948
          %3014 = vst.msk [vmem:[%s199 + $0x178] sm:$0xff] %vm2966, %v2949
          %3015 = vst.msk [vmem:[%s199 + $0x180] sm:$0xff] %vm2966, %v2950
          %3016 = vst.msk [vmem:[%s199 + $0x188] sm:$0xff] %vm2966, %v2951
          %3017 = vst.msk [vmem:[%s199 + $0x190] sm:$0xff] %vm2966, %v2952
          %3018 = vst.msk [vmem:[%s199 + $0x198] sm:$0xff] %vm2966, %v2953
          %3019 = vst.msk [vmem:[%s199 + $0x1a0] sm:$0xff] %vm2966, %v2954
          %3020 = vst.msk [vmem:[%s199 + $0x1a8] sm:$0xff] %vm2966, %v2955
          %3021 = vst.msk [vmem:[%s199 + $0x1b0] sm:$0xff] %vm2966, %v2956
          %3022 = vst.msk [vmem:[%s199 + $0x1b8] sm:$0xff] %vm2966, %v2957
          %3023 = vst.msk [vmem:[%s199 + $0x1c0] sm:$0xff] %vm2966, %v2958
          %3024 = vst.msk [vmem:[%s199 + $0x1c8] sm:$0xff] %vm2966, %v2959
          %3025 = vst.msk [vmem:[%s199 + $0x1d0] sm:$0xff] %vm2966, %v2960
          %3026 = vst.msk [vmem:[%s199 + $0x1d8] sm:$0xff] %vm2966, %v2961
          %3027 = vst.msk [vmem:[%s199 + $0x1e0] sm:$0xff] %vm2966, %v2962
          %3028 = vst.msk [vmem:[%s199 + $0x1e8] sm:$0xff] %vm2966, %v2963
          %3029 = vst.msk [vmem:[%s199 + $0x1f0] sm:$0xff] %vm2966, %v2964
          %3030 = vst.msk [vmem:[%s199 + $0x1f8] sm:$0xff] %vm2966, %v2965
        $region40: #{tpu_custom_call.1} parent=23 // pred_fallthru
          _
        %s3031 = sand.u32 %s70, 1
        %s3032 = scalar_lea.sflag [#allocation5], %s3031
        %s3033 = sand.u32 %s70, 1
        %s3034 = smul.addr %s3033, 2048
        %s3035 = scalar_lea.vmem [#allocation6], %s3034
        %s3036 = smul.u32 64, %s24
        %p3037 = scmp.lt.s32.totalorder %s3036, 127
        %s3038 = scalar_select %p3037, %s3036, 127
        %s3039 = smul.addr %s3038, 8
        %s3040 = scalar_lea.vmem %s2, %s3039
        // Predicated region
        $region41: #{tpu_custom_call.1} parent=23 // pred_check
          %p3041 = pneg %p80
        $region42: #{tpu_custom_call.1} parent=23 // pred_check_branch
          %3043 = sbr.rel (%p3041) target = $region44
        $region43: #{tpu_custom_call.1} parent=23 // pred_region
          %s3044 = smul.u32 64, %s24
          %s3045 = smul.u32 8, %s25
          %3047 = vsyncadd %s3032, 0
          %s3048 = smul.addr %s3044, 8
          %s3049 = sadd.s32 %s3045, %s3048
          %s3050 = smul.addr %s3049, 4
          %s3051 = scalar_lea.hbm %s1, %s3050
          %s3052 = sshll.u32 %s3035, 4
          %s3053 = int_to_ptr.vmem [resolvable:$true] %s3052
          %s3054 = sshll.u32 %s3051, 4
          %s3055 = int_to_ptr.hbm [resolvable:$true] %s3054
          %3060 = dma.vmem_to_hbm [thread:$0]  %s3053, 32768, %s3055, %s3032, 512, 512, 32
        $region44: #{tpu_custom_call.1} parent=23 // pred_fallthru
          _
        // Predicated region
        $region45: #{tpu_custom_call.1} parent=23 // pred_check
          %p3061 = pneg %p106
        $region46: #{tpu_custom_call.1} parent=23 // pred_check_branch
          %3063 = sbr.rel (%p3061) target = $region48
        $region47: #{tpu_custom_call.1} parent=23 // pred_region
          %s3064 = smul.u32 64, %s24
        $region48: #{tpu_custom_call.1} parent=23 // pred_fallthru
          _
      $region24: #{tpu_custom_call.1} parent=5 // pred_fallthru
        _
      %p3065 = scmp.le.s32.totalorder 2, %s15
      // Predicated region
      $region49: #{tpu_custom_call.1} parent=5 // pred_check
        %p3066 = pneg %p3065
      $region50: #{tpu_custom_call.1} parent=5 // pred_check_branch
        %3068 = sbr.rel (%p3066) target = $region52
      $region51: #{tpu_custom_call.1} parent=5 // pred_region
        %s3069 = ssub.s32 %s15, 2
        // Predicated region
        $region53: #{tpu_custom_call.1} parent=51 // pred_check
          %p3070 = pneg %p86
        $region54: #{tpu_custom_call.1} parent=51 // pred_check_branch
          %3072 = sbr.rel (%p3070) target = $region56
        $region55: #{tpu_custom_call.1} parent=51 // pred_region
          %s3073 = sand.u32 %s71, 1
          %s3074 = scalar_lea.sflag [#allocation5], %s3073
          %s3075 = sand.u32 %s71, 1
          %s3076 = smul.addr %s3075, 2048
          %s3077 = scalar_lea.vmem [#allocation6], %s3076
          %3079 = dma.done %s3074, 32768
        $region56: #{tpu_custom_call.1} parent=51 // pred_fallthru
          _
        // Predicated region
        $region57: #{tpu_custom_call.1} parent=51 // pred_check
          %p3080 = pneg %p112
        $region58: #{tpu_custom_call.1} parent=51 // pred_check_branch
          %3082 = sbr.rel (%p3080) target = $region60
        $region59: #{tpu_custom_call.1} parent=51 // pred_region
          %s3083 = smul.u32 64, %s26
          %p3084 = scmp.lt.s32.totalorder %s3083, 127
          %s3085 = scalar_select %p3084, %s3083, 127
          %s3086 = smul.addr %s3085, 8
          %s3087 = scalar_lea.vmem %s2, %s3086
        $region60: #{tpu_custom_call.1} parent=51 // pred_fallthru
          _
      $region52: #{tpu_custom_call.1} parent=5 // pred_fallthru
        _
    $region6: #{tpu_custom_call.1} parent=1 // loop_footer
      %s19 = sadd.s32 1, %s15
    $region7: #{tpu_custom_call.1} parent=1 // loop_footer_branch
      %14 = sbr.rel target = $region3
    $region8: #{tpu_custom_call.1} parent=1 // loop_exit
      _
    %3088 = vsyncpa [#allocation4], 1
    %s3089 = scalar_lea.sflag [#allocation4], 1
    %3090 = vsyncpa %s3089, 1
    %3091 = vsyncpa [#allocation5], 1
    %s3092 = scalar_lea.sflag [#allocation5], 1
    %3093 = vsyncpa %s3092, 1

</llo_original>
